<compile_context>
chip_gen: v5e
topology: v5e:2x2
jax: 0.10.0
libtpu: 0.0.40
codegen_flags: <defaults>
</compile_context>

<pallas_src>
import functools

import jax
import jax.numpy as jnp
import numpy as np
from jax import lax
from jax.experimental import pallas as pl
from jax.experimental.pallas import tpu as pltpu

PAD = 0            # Constants.PAD
NEG_INF = -1e30    # finite masked-fill (avoids NaN for fully-masked rows)

# Tile-size targets (collapse to full dims at small shapes; sized so that
# weight-resident blocks stay well inside the default scoped-VMEM limit).
_TM = 256    # rows (B*L) per grid step
_TN = 512    # vocab columns per grid step (output projection)
_TK = 512    # contraction tile (output projection)


def _pick_tile(dim, target, align):
    """Largest tile <= target that divides `dim` and is a multiple of `align`;
    otherwise fall back to the full dim (block == full dim is always legal)."""
    if dim <= target:
        return dim
    t = (target // align) * align
    while t >= align:
        if dim % t == 0:
            return t
        t -= align
    return dim


# ----------------------------------------------------------------------------
# Kernel 1: fused multi-output linear  (QKV / KV / Q projections)
# ----------------------------------------------------------------------------
def _linear_split_kernel(x_ref, w_ref, b_ref, *o_refs, splits):
    # y = x @ w + b, then split the output columns into len(splits) outputs.
    y = jnp.dot(x_ref[...], w_ref[...], preferred_element_type=jnp.float32)
    y = y + b_ref[...]
    off = 0
    for o_ref, s in zip(o_refs, splits):
        o_ref[...] = y[:, off:off + s].astype(o_ref.dtype)
        off += s


def fused_linear_split(x, w, b, splits, out_dtype=jnp.bfloat16):
    M, K = x.shape
    N = w.shape[1]
    assert sum(splits) == N
    tm = _pick_tile(M, _TM, 8)
    kernel = functools.partial(_linear_split_kernel, splits=tuple(splits))
    outs = pl.pallas_call(
        kernel,
        out_shape=tuple(jax.ShapeDtypeStruct((M, s), out_dtype) for s in splits),
        grid=(M // tm,),
        in_specs=[
            pl.BlockSpec((tm, K), lambda i: (i, 0)),
            pl.BlockSpec((K, N), lambda i: (0, 0)),   # weights resident over M
            pl.BlockSpec((1, N), lambda i: (0, 0)),
        ],
        out_specs=tuple(pl.BlockSpec((tm, s), lambda i: (i, 0)) for s in splits),
        compiler_params=pltpu.CompilerParams(dimension_semantics=("parallel",)),
    )(x.astype(jnp.bfloat16), w.astype(jnp.bfloat16), b.astype(jnp.float32))
    return tuple(outs) if isinstance(outs, (list, tuple)) else (outs,)


# ----------------------------------------------------------------------------
# Kernel 2: multi-head scaled-dot-product attention (all heads of one batch
# element per grid step; lane-dense (L, H*d) activations; additive mask bias)
# ----------------------------------------------------------------------------
def _mha_attention_kernel(q_ref, k_ref, v_ref, bias_ref, o_ref,
                          *, n_head, d_k, d_v, scale):
    q = q_ref[0]        # (Lq, H*dk)  bf16
    k = k_ref[0]        # (Lk, H*dk)  bf16
    v = v_ref[0]        # (Lk, H*dv)  bf16
    bias = bias_ref[0]  # (Lq, Lk)    f32 additive (-1e30 where masked)
    for h in range(n_head):
        qh = q[:, h * d_k:(h + 1) * d_k]
        kh = k[:, h * d_k:(h + 1) * d_k]
        vh = v[:, h * d_v:(h + 1) * d_v]
        s = lax.dot_general(qh, kh, (((1,), (1,)), ((), ())),
                            preferred_element_type=jnp.float32)
        s = s * scale + bias
        m = jnp.max(s, axis=-1, keepdims=True)
        e = jnp.exp(s - m)
        denom = jnp.sum(e, axis=-1, keepdims=True)
        p = (e * pl.reciprocal(denom, approx=True)).astype(vh.dtype)
        ctx = jnp.dot(p, vh, preferred_element_type=jnp.float32)
        o_ref[0, :, h * d_v:(h + 1) * d_v] = ctx.astype(o_ref.dtype)


def attention(q, k, v, bias, n_head, d_k, d_v):
    B, Lq, _ = q.shape
    Lk = k.shape[1]
    scale = 1.0 / float(np.sqrt(d_k))   # attn / temperature
    kernel = functools.partial(_mha_attention_kernel, n_head=n_head,
                               d_k=d_k, d_v=d_v, scale=scale)
    return pl.pallas_call(
        kernel,
        out_shape=jax.ShapeDtypeStruct((B, Lq, n_head * d_v), jnp.float32),
        grid=(B,),
        in_specs=[
            pl.BlockSpec((1, Lq, n_head * d_k), lambda b: (b, 0, 0)),
            pl.BlockSpec((1, Lk, n_head * d_k), lambda b: (b, 0, 0)),
            pl.BlockSpec((1, Lk, n_head * d_v), lambda b: (b, 0, 0)),
            pl.BlockSpec((1, Lq, Lk), lambda b: (b, 0, 0)),
        ],
        out_specs=pl.BlockSpec((1, Lq, n_head * d_v), lambda b: (b, 0, 0)),
        compiler_params=pltpu.CompilerParams(dimension_semantics=("parallel",)),
    )(q, k, v, bias)


# ----------------------------------------------------------------------------
# Kernel 3: linear + residual + LayerNorm + non-pad gate  (MHA output path)
# ----------------------------------------------------------------------------
def _linear_add_ln_kernel(x_ref, w_ref, b_ref, r_ref, g_ref, bb_ref, np_ref,
                          o_ref, *, eps):
    y = jnp.dot(x_ref[...], w_ref[...], preferred_element_type=jnp.float32)
    y = y + b_ref[...] + r_ref[...]
    mu = jnp.mean(y, axis=-1, keepdims=True)
    var = jnp.mean(jnp.square(y - mu), axis=-1, keepdims=True)
    ln = (y - mu) * lax.rsqrt(var + eps) * g_ref[...] + bb_ref[...]
    o_ref[...] = ln * np_ref[...]


def linear_add_ln(x, w, b, residual, gamma, beta, npad, eps=1e-5):
    M, K = x.shape
    N = w.shape[1]
    tm = _pick_tile(M, _TM, 8)
    kernel = functools.partial(_linear_add_ln_kernel, eps=eps)
    return pl.pallas_call(
        kernel,
        out_shape=jax.ShapeDtypeStruct((M, N), jnp.float32),
        grid=(M // tm,),
        in_specs=[
            pl.BlockSpec((tm, K), lambda i: (i, 0)),
            pl.BlockSpec((K, N), lambda i: (0, 0)),
            pl.BlockSpec((1, N), lambda i: (0, 0)),
            pl.BlockSpec((tm, N), lambda i: (i, 0)),
            pl.BlockSpec((1, N), lambda i: (0, 0)),
            pl.BlockSpec((1, N), lambda i: (0, 0)),
            pl.BlockSpec((tm, 1), lambda i: (i, 0)),
        ],
        out_specs=pl.BlockSpec((tm, N), lambda i: (i, 0)),
        compiler_params=pltpu.CompilerParams(dimension_semantics=("parallel",)),
    )(x.astype(jnp.bfloat16), w.astype(jnp.bfloat16), b,
      residual, gamma, beta, npad)


# ----------------------------------------------------------------------------
# Kernel 4: position-wise FFN + residual + LayerNorm + non-pad gate
# ----------------------------------------------------------------------------
def _ffn_add_ln_kernel(x_ref, w1_ref, b1_ref, w2_ref, b2_ref, r_ref, g_ref,
                       bb_ref, np_ref, o_ref, *, eps):
    h = jnp.dot(x_ref[...], w1_ref[...], preferred_element_type=jnp.float32)
    h = jnp.maximum(h + b1_ref[...], 0.0).astype(w2_ref.dtype)
    y = jnp.dot(h, w2_ref[...], preferred_element_type=jnp.float32)
    y = y + b2_ref[...] + r_ref[...]
    mu = jnp.mean(y, axis=-1, keepdims=True)
    var = jnp.mean(jnp.square(y - mu), axis=-1, keepdims=True)
    ln = (y - mu) * lax.rsqrt(var + eps) * g_ref[...] + bb_ref[...]
    o_ref[...] = ln * np_ref[...]


def ffn_add_ln(x, w1, b1, w2, b2, residual, gamma, beta, npad, eps=1e-5):
    M, D = x.shape
    Hd = w1.shape[1]
    tm = _pick_tile(M, _TM, 8)
    kernel = functools.partial(_ffn_add_ln_kernel, eps=eps)
    return pl.pallas_call(
        kernel,
        out_shape=jax.ShapeDtypeStruct((M, D), jnp.float32),
        grid=(M // tm,),
        in_specs=[
            pl.BlockSpec((tm, D), lambda i: (i, 0)),
            pl.BlockSpec((D, Hd), lambda i: (0, 0)),   # weights resident over M
            pl.BlockSpec((1, Hd), lambda i: (0, 0)),
            pl.BlockSpec((Hd, D), lambda i: (0, 0)),
            pl.BlockSpec((1, D), lambda i: (0, 0)),
            pl.BlockSpec((tm, D), lambda i: (i, 0)),
            pl.BlockSpec((1, D), lambda i: (0, 0)),
            pl.BlockSpec((1, D), lambda i: (0, 0)),
            pl.BlockSpec((tm, 1), lambda i: (i, 0)),
        ],
        out_specs=pl.BlockSpec((tm, D), lambda i: (i, 0)),
        compiler_params=pltpu.CompilerParams(dimension_semantics=("parallel",)),
    )(x.astype(jnp.bfloat16), w1.astype(jnp.bfloat16), b1,
      w2.astype(jnp.bfloat16), b2, residual, gamma, beta, npad)


# ----------------------------------------------------------------------------
# Kernel 5: tied-embedding vocab projection (x @ word_emb.T) * scale
# Tiled over (M, V, K) with f32 accumulator; no materialized transpose.
# ----------------------------------------------------------------------------
def _vocab_proj_kernel(x_ref, w_ref, o_ref, acc_ref, *, scale):
    @pl.when(pl.program_id(2) == 0)
    def _():
        acc_ref[...] = jnp.zeros_like(acc_ref)

    acc_ref[...] += lax.dot_general(
        x_ref[...], w_ref[...], (((1,), (1,)), ((), ())),
        preferred_element_type=jnp.float32)

    @pl.when(pl.program_id(2) == pl.num_programs(2) - 1)
    def _():
        o_ref[...] = acc_ref[...] * scale


def vocab_projection(x, emb, scale):
    M, K = x.shape
    V = emb.shape[0]
    tm = _pick_tile(M, _TM, 8)
    tn = _pick_tile(V, _TN, 128)
    tk = _pick_tile(K, _TK, 128)
    kernel = functools.partial(_vocab_proj_kernel, scale=scale)
    return pl.pallas_call(
        kernel,
        out_shape=jax.ShapeDtypeStruct((M, V), jnp.float32),
        grid=(M // tm, V // tn, K // tk),
        in_specs=[
            pl.BlockSpec((tm, tk), lambda i, j, k: (i, k)),
            pl.BlockSpec((tn, tk), lambda i, j, k: (j, k)),   # emb is (V, D)
        ],
        out_specs=pl.BlockSpec((tm, tn), lambda i, j, k: (i, j)),
        scratch_shapes=[pltpu.VMEM((tm, tn), jnp.float32)],
        compiler_params=pltpu.CompilerParams(
            dimension_semantics=("parallel", "parallel", "arbitrary")),
    )(x.astype(jnp.bfloat16), emb.astype(jnp.bfloat16))


# ----------------------------------------------------------------------------
# Masks (glue, mirrors the PyTorch helpers; additive finite biases)
# ----------------------------------------------------------------------------
def get_non_pad_mask(seq):
    return (seq != PAD).astype(jnp.float32)[:, :, None]           # (B, L, 1)


def pad_attn_bias(seq_k, len_q):
    pad = (seq_k == PAD)[:, None, :]                              # (B, 1, Lk)
    bias = jnp.where(pad, NEG_INF, 0.0).astype(jnp.float32)
    return jnp.broadcast_to(bias, (seq_k.shape[0], len_q, seq_k.shape[1]))


def subsequent_mask(L):
    return jnp.triu(jnp.ones((L, L), dtype=bool), k=1)            # (L, L)


def get_sinusoid_encoding_table(n_position, d_hid, padding_idx=None):
    pos = np.arange(n_position)[:, None].astype(np.float64)
    idx = np.arange(d_hid)[None, :]
    angle = pos / np.power(10000, 2 * (idx // 2) / d_hid)
    table = np.zeros((n_position, d_hid), dtype=np.float64)
    table[:, 0::2] = np.sin(angle[:, 0::2])
    table[:, 1::2] = np.cos(angle[:, 1::2])
    if padding_idx is not None:
        table[padding_idx] = 0.0
    return jnp.asarray(table, dtype=jnp.float32)


# ----------------------------------------------------------------------------
# Model pieces (glue around the Pallas kernels)
# ----------------------------------------------------------------------------
def multi_head_attention(x_q, x_kv, attn_bias, npad_flat, p,
                         n_head, d_k, d_v, self_attn):
    B, Lq, D = x_q.shape
    Lk = x_kv.shape[1]
    xq_flat = x_q.reshape(B * Lq, D)
    residual = xq_flat

    if self_attn:
        q, k, v = fused_linear_split(
            xq_flat, p["w_qkv"], p["b_qkv"],
            (n_head * d_k, n_head * d_k, n_head * d_v))
    else:
        xkv_flat = x_kv.reshape(B * Lk, -1)
        (q,) = fused_linear_split(xq_flat, p["w_q"], p["b_q"], (n_head * d_k,))
        k, v = fused_linear_split(xkv_flat, p["w_kv"], p["b_kv"],
                                  (n_head * d_k, n_head * d_v))

    q = q.reshape(B, Lq, n_head * d_k)
    k = k.reshape(B, Lk, n_head * d_k)
    v = v.reshape(B, Lk, n_head * d_v)

    ctx = attention(q, k, v, attn_bias, n_head, d_k, d_v)   # (B, Lq, H*dv) f32
    out = linear_add_ln(ctx.reshape(B * Lq, n_head * d_v), p["fc_w"], p["fc_b"],
                        residual, p["ln_g"], p["ln_b"], npad_flat)
    return out.reshape(B, Lq, D)


def pos_ffn(x, npad_flat, p):
    B, L, D = x.shape
    xf = x.reshape(B * L, D)
    out = ffn_add_ln(xf, p["w1"], p["b1"], p["w2"], p["b2"],
                     xf, p["ln_g"], p["ln_b"], npad_flat)
    return out.reshape(B, L, D)


def encoder_layer(x, npad_flat, slf_bias, p, n_head, d_k, d_v):
    out = multi_head_attention(x, x, slf_bias, npad_flat, p["slf"],
                               n_head, d_k, d_v, self_attn=True)
    out = pos_ffn(out, npad_flat, p["ffn"])
    return out


def decoder_layer(x, enc_out, npad_flat, slf_bias, enc_bias, p, n_head, d_k, d_v):
    out = multi_head_attention(x, x, slf_bias, npad_flat, p["slf"],
                               n_head, d_k, d_v, self_attn=True)
    out = multi_head_attention(out, enc_out, enc_bias, npad_flat, p["enc"],
                               n_head, d_k, d_v, self_attn=False)
    out = pos_ffn(out, npad_flat, p["ffn"])
    return out


def transformer_forward(params, cfg, src_seq, src_pos, tgt_seq, tgt_pos,
                        flat_logits=True):
    n_head, d_k, d_v = cfg["n_head"], cfg["d_k"], cfg["d_v"]
    d_model = cfg["d_model"]

    # tgt_seq, tgt_pos = tgt_seq[:, :-1], tgt_pos[:, :-1]
    tgt_seq = tgt_seq[:, :-1]
    tgt_pos = tgt_pos[:, :-1]

    B, Ls = src_seq.shape
    Lt = tgt_seq.shape[1]

    # ---------------- Encoder ----------------
    enc_slf_bias = pad_attn_bias(src_seq, Ls)                   # (B, Ls, Ls)
    enc_npad_flat = get_non_pad_mask(src_seq).reshape(B * Ls, 1)
    enc_out = jnp.take(params["word_emb"], src_seq, axis=0) + jnp.take(
        params["pos_enc"], src_pos, axis=0)
    for lp in params["enc_layers"]:
        enc_out = encoder_layer(enc_out, enc_npad_flat, enc_slf_bias, lp,
                                n_head, d_k, d_v)

    # ---------------- Decoder ----------------
    dec_npad_flat = get_non_pad_mask(tgt_seq).reshape(B * Lt, 1)
    dec_slf_mask = jnp.logical_or((tgt_seq == PAD)[:, None, :],
                                  subsequent_mask(Lt)[None, :, :])
    dec_slf_bias = jnp.where(dec_slf_mask, NEG_INF, 0.0).astype(jnp.float32)
    dec_enc_bias = pad_attn_bias(src_seq, Lt)                   # (B, Lt, Ls)

    dec_out = jnp.take(params["word_emb"], tgt_seq, axis=0) + jnp.take(
        params["pos_enc"], tgt_pos, axis=0)
    for lp in params["dec_layers"]:
        dec_out = decoder_layer(dec_out, enc_out, dec_npad_flat, dec_slf_bias,
                                dec_enc_bias, lp, n_head, d_k, d_v)

    # ------------- Output projection (weight tied to embedding) -------------
    logits = vocab_projection(dec_out.reshape(B * Lt, d_model),
                              params["word_emb"], float(d_model) ** -0.5)
    if flat_logits:
        return logits                                           # (B*Lt, V)
    return logits.reshape(B, Lt, -1)


# ----------------------------------------------------------------------------
# Deterministic parameter init (matmul weights stored bf16)
# ----------------------------------------------------------------------------
def _init_linear(key, d_in, d_out):
    kw, kb = jax.random.split(key)
    w = jax.random.normal(kw, (d_in, d_out), jnp.float32) / np.sqrt(d_in)
    b = jax.random.normal(kb, (1, d_out), jnp.float32) * 0.01
    return w, b


def _init_mha(key, d_model, d_enc, n_head, d_k, d_v, self_attn):
    ks = jax.random.split(key, 4)
    w_qs, b_qs = _init_linear(ks[0], d_model, n_head * d_k)
    w_ks, b_ks = _init_linear(ks[1], d_enc, n_head * d_k)
    w_vs, b_vs = _init_linear(ks[2], d_enc, n_head * d_v)
    fc_w, fc_b = _init_linear(ks[3], n_head * d_v, d_model)
    p = {
        "fc_w": fc_w.astype(jnp.bfloat16), "fc_b": fc_b,
        "ln_g": jnp.ones((1, d_model), jnp.float32),
        "ln_b": jnp.zeros((1, d_model), jnp.float32),
    }
    if self_attn:
        p["w_qkv"] = jnp.concatenate([w_qs, w_ks, w_vs], axis=1).astype(jnp.bfloat16)
        p["b_qkv"] = jnp.concatenate([b_qs, b_ks, b_vs], axis=1)
    else:
        p["w_q"] = w_qs.astype(jnp.bfloat16)
        p["b_q"] = b_qs
        p["w_kv"] = jnp.concatenate([w_ks, w_vs], axis=1).astype(jnp.bfloat16)
        p["b_kv"] = jnp.concatenate([b_ks, b_vs], axis=1)
    return p


def _init_ffn(key, d_model, d_inner):
    k1, k2 = jax.random.split(key)
    w1, b1 = _init_linear(k1, d_model, d_inner)
    w2, b2 = _init_linear(k2, d_inner, d_model)
    return {
        "w1": w1.astype(jnp.bfloat16), "b1": b1,
        "w2": w2.astype(jnp.bfloat16), "b2": b2,
        "ln_g": jnp.ones((1, d_model), jnp.float32),
        "ln_b": jnp.zeros((1, d_model), jnp.float32),
    }


def init_params(key, cfg):
    n_vocab, d_model, d_inner = cfg["n_vocab"], cfg["d_model"], cfg["d_inner"]
    n_layers, n_head, d_k, d_v = cfg["n_layers"], cfg["n_head"], cfg["d_k"], cfg["d_v"]
    len_max_seq = cfg["len_max_seq"]

    keys = jax.random.split(key, 1 + 2 * n_layers)
    word_emb = jax.random.normal(keys[0], (n_vocab, d_model), jnp.float32) * 0.1
    word_emb = word_emb.at[PAD].set(0.0)   # padding_idx=0 (shared src/tgt/proj)

    pos_enc = get_sinusoid_encoding_table(len_max_seq + 1, d_model, padding_idx=0)

    enc_layers, dec_layers = [], []
    for i in range(n_layers):
        ek = jax.random.split(keys[1 + i], 2)
        enc_layers.append({
            "slf": _init_mha(ek[0], d_model, d_model, n_head, d_k, d_v, True),
            "ffn": _init_ffn(ek[1], d_model, d_inner),
        })
        dk_ = jax.random.split(keys[1 + n_layers + i], 3)
        dec_layers.append({
            "slf": _init_mha(dk_[0], d_model, d_model, n_head, d_k, d_v, True),
            "enc": _init_mha(dk_[1], d_model, d_model, n_head, d_k, d_v, False),
            "ffn": _init_ffn(dk_[2], d_model, d_inner),
        })

    return {
        "word_emb": word_emb,
        "pos_enc": pos_enc,
        "enc_layers": enc_layers,
        "dec_layers": dec_layers,
    }


# ----------------------------------------------------------------------------
if __name__ == "__main__":
    cfg = dict(
        n_vocab=48,
        len_max_seq=16,
        d_model=32,
        d_inner=64,
        n_layers=2,
        n_head=4,
        d_k=8,
        d_v=8,
    )

    key = jax.random.PRNGKey(0)
    kp, ks, kt = jax.random.split(key, 3)
    params = init_params(kp, cfg)

    B, Ls, Lt = 2, 8, 8
    src_seq = jax.random.randint(ks, (B, Ls), 1, cfg["n_vocab"])
    tgt_seq = jax.random.randint(kt, (B, Lt), 1, cfg["n_vocab"])
    # introduce some padding at the tail of batch 1 (position 0 stays non-pad)
    src_seq = src_seq.at[1, 6:].set(PAD)
    tgt_seq = tgt_seq.at[1, 6:].set(PAD)

    src_pos = jnp.where(src_seq != PAD, jnp.arange(1, Ls + 1)[None, :], 0)
    tgt_pos = jnp.where(tgt_seq != PAD, jnp.arange(1, Lt + 1)[None, :], 0)

    fwd = jax.jit(functools.partial(transformer_forward, params, cfg))
    logits = fwd(src_seq, src_pos, tgt_seq, tgt_pos)
    logits = jax.block_until_ready(logits)

    assert logits.shape == (B * (Lt - 1), cfg["n_vocab"])
    assert bool(jnp.all(jnp.isfinite(logits)))
    print("KERNEL_OK")
</pallas_src>

<mosaic_0001>
module attributes {stable_mosaic.version = 11 : i64} {
  func.func @_linear_split_kernel(%arg0: i32, %arg1: memref<16x32xbf16, #tpu.memory_space<vmem>>, %arg2: memref<32x96xbf16, #tpu.memory_space<vmem>>, %arg3: memref<1x96xf32, #tpu.memory_space<vmem>>, %arg4: memref<16x32xbf16, #tpu.memory_space<vmem>>, %arg5: memref<16x32xbf16, #tpu.memory_space<vmem>>, %arg6: memref<16x32xbf16, #tpu.memory_space<vmem>>) attributes {dimension_semantics = [#tpu.dimension_semantics<parallel>], iteration_bounds = array<i64: 1>, scalar_prefetch = 0 : i64, scratch_operands = 0 : i64, tpu.core_type = #tpu.core_type<tc>, window_params = [{transform_indices = @transform_0, window_bounds = array<i64: 16, 32>}, {pipeline_mode = #tpu.pipeline_mode<synchronous>, transform_indices = @transform_1, window_bounds = array<i64: 32, 96>}, {pipeline_mode = #tpu.pipeline_mode<synchronous>, transform_indices = @transform_2, window_bounds = array<i64: 1, 96>}, {transform_indices = @transform_3, window_bounds = array<i64: 16, 32>}, {transform_indices = @transform_4, window_bounds = array<i64: 16, 32>}, {transform_indices = @transform_5, window_bounds = array<i64: 16, 32>}]} {
    %c0 = arith.constant 0 : index
    %c0_0 = arith.constant 0 : index
    %0 = vector.load %arg1[%c0, %c0_0] : memref<16x32xbf16, #tpu.memory_space<vmem>>, vector<16x32xbf16>
    %c0_1 = arith.constant 0 : index
    %c0_2 = arith.constant 0 : index
    %1 = vector.load %arg2[%c0_1, %c0_2] : memref<32x96xbf16, #tpu.memory_space<vmem>>, vector<32x96xbf16>
    %cst = arith.constant dense<0.000000e+00> : vector<16x96xf32>
    %2 = tpu.matmul %0, %1, %cst {dimension_numbers = #tpu.dot_dimension_numbers<[1], [0], [0], [1], [0, 0, 1, 1], [], []>} : vector<16x32xbf16>, vector<32x96xbf16>, vector<16x96xf32> -> vector<16x96xf32>
    %c0_3 = arith.constant 0 : index
    %c0_4 = arith.constant 0 : index
    %3 = vector.load %arg3[%c0_3, %c0_4] : memref<1x96xf32, #tpu.memory_space<vmem>>, vector<1x96xf32>
    %4 = vector.broadcast %3 : vector<1x96xf32> to vector<16x96xf32>
    %5 = arith.addf %2, %4 : vector<16x96xf32>
    %6 = vector.extract_strided_slice %5 {offsets = [0, 0], sizes = [16, 32], strides = [1, 1]} : vector<16x96xf32> to vector<16x32xf32>
    %7 = arith.truncf %6 : vector<16x32xf32> to vector<16x32xbf16>
    %c0_5 = arith.constant 0 : index
    %c0_6 = arith.constant 0 : index
    %8 = vector.load %arg4[%c0_5, %c0_6] : memref<16x32xbf16, #tpu.memory_space<vmem>>, vector<16x32xbf16>
    tpu.vector_store %arg4[%c0_5, %c0_6], %7 {strides = array<i32>} : memref<16x32xbf16, #tpu.memory_space<vmem>>, vector<16x32xbf16>,
    %9 = vector.extract_strided_slice %5 {offsets = [0, 32], sizes = [16, 32], strides = [1, 1]} : vector<16x96xf32> to vector<16x32xf32>
    %10 = arith.truncf %9 : vector<16x32xf32> to vector<16x32xbf16>
    %c0_7 = arith.constant 0 : index
    %c0_8 = arith.constant 0 : index
    %11 = vector.load %arg5[%c0_7, %c0_8] : memref<16x32xbf16, #tpu.memory_space<vmem>>, vector<16x32xbf16>
    tpu.vector_store %arg5[%c0_7, %c0_8], %10 {strides = array<i32>} : memref<16x32xbf16, #tpu.memory_space<vmem>>, vector<16x32xbf16>,
    %12 = vector.extract_strided_slice %5 {offsets = [0, 64], sizes = [16, 32], strides = [1, 1]} : vector<16x96xf32> to vector<16x32xf32>
    %13 = arith.truncf %12 : vector<16x32xf32> to vector<16x32xbf16>
    %c0_9 = arith.constant 0 : index
    %c0_10 = arith.constant 0 : index
    %14 = vector.load %arg6[%c0_9, %c0_10] : memref<16x32xbf16, #tpu.memory_space<vmem>>, vector<16x32xbf16>
    tpu.vector_store %arg6[%c0_9, %c0_10], %13 {strides = array<i32>} : memref<16x32xbf16, #tpu.memory_space<vmem>>, vector<16x32xbf16>,
    return
  }
  func.func @transform_0(%arg0: i32) -> (i32, i32) {
    %c0_i32 = arith.constant 0 : i32
    %c0_i32_0 = arith.constant 0 : i32
    return %arg0, %c0_i32 : i32, i32
  }
  func.func @transform_1(%arg0: i32) -> (i32, i32) {
    %c0_i32 = arith.constant 0 : i32
    %c0_i32_0 = arith.constant 0 : i32
    %c0_i32_1 = arith.constant 0 : i32
    return %c0_i32, %c0_i32_0 : i32, i32
  }
  func.func @transform_2(%arg0: i32) -> (i32, i32) {
    %c0_i32 = arith.constant 0 : i32
    %c0_i32_0 = arith.constant 0 : i32
    %c0_i32_1 = arith.constant 0 : i32
    return %c0_i32, %c0_i32_0 : i32, i32
  }
  func.func @transform_3(%arg0: i32) -> (i32, i32) {
    %c0_i32 = arith.constant 0 : i32
    %c0_i32_0 = arith.constant 0 : i32
    return %arg0, %c0_i32 : i32, i32
  }
  func.func @transform_4(%arg0: i32) -> (i32, i32) {
    %c0_i32 = arith.constant 0 : i32
    %c0_i32_0 = arith.constant 0 : i32
    return %arg0, %c0_i32 : i32, i32
  }
  func.func @transform_5(%arg0: i32) -> (i32, i32) {
    %c0_i32 = arith.constant 0 : i32
    %c0_i32_0 = arith.constant 0 : i32
    return %arg0, %c0_i32 : i32, i32
  }
}

module attributes {stable_mosaic.version = 11 : i64} {
  func.func @_mha_attention_kernel(%arg0: i32, %arg1: memref<1x8x32xbf16, #tpu.memory_space<vmem>>, %arg2: memref<1x8x32xbf16, #tpu.memory_space<vmem>>, %arg3: memref<1x8x32xbf16, #tpu.memory_space<vmem>>, %arg4: memref<1x8x8xf32, #tpu.memory_space<vmem>>, %arg5: memref<1x8x32xf32, #tpu.memory_space<vmem>>) attributes {dimension_semantics = [#tpu.dimension_semantics<parallel>], iteration_bounds = array<i64: 2>, scalar_prefetch = 0 : i64, scratch_operands = 0 : i64, tpu.core_type = #tpu.core_type<tc>, window_params = [{transform_indices = @transform_0, window_bounds = array<i64: 1, 8, 32>}, {transform_indices = @transform_1, window_bounds = array<i64: 1, 8, 32>}, {transform_indices = @transform_2, window_bounds = array<i64: 1, 8, 32>}, {transform_indices = @transform_3, window_bounds = array<i64: 1, 8, 8>}, {transform_indices = @transform_4, window_bounds = array<i64: 1, 8, 32>}]} {
    %c0 = arith.constant 0 : index
    %c0_0 = arith.constant 0 : index
    %c0_1 = arith.constant 0 : index
    %0 = vector.load %arg1[%c0, %c0_0, %c0_1] : memref<1x8x32xbf16, #tpu.memory_space<vmem>>, vector<1x8x32xbf16>
    %1 = vector.shape_cast %0 : vector<1x8x32xbf16> to vector<8x32xbf16>
    %c0_2 = arith.constant 0 : index
    %c0_3 = arith.constant 0 : index
    %c0_4 = arith.constant 0 : index
    %2 = vector.load %arg2[%c0_2, %c0_3, %c0_4] : memref<1x8x32xbf16, #tpu.memory_space<vmem>>, vector<1x8x32xbf16>
    %3 = vector.shape_cast %2 : vector<1x8x32xbf16> to vector<8x32xbf16>
    %c0_5 = arith.constant 0 : index
    %c0_6 = arith.constant 0 : index
    %c0_7 = arith.constant 0 : index
    %4 = vector.load %arg3[%c0_5, %c0_6, %c0_7] : memref<1x8x32xbf16, #tpu.memory_space<vmem>>, vector<1x8x32xbf16>
    %5 = vector.shape_cast %4 : vector<1x8x32xbf16> to vector<8x32xbf16>
    %c0_8 = arith.constant 0 : index
    %c0_9 = arith.constant 0 : index
    %c0_10 = arith.constant 0 : index
    %6 = vector.load %arg4[%c0_8, %c0_9, %c0_10] : memref<1x8x8xf32, #tpu.memory_space<vmem>>, vector<1x8x8xf32>
    %7 = vector.shape_cast %6 : vector<1x8x8xf32> to vector<8x8xf32>
    %8 = vector.extract_strided_slice %1 {offsets = [0, 0], sizes = [8, 8], strides = [1, 1]} : vector<8x32xbf16> to vector<8x8xbf16>
    %9 = vector.extract_strided_slice %3 {offsets = [0, 0], sizes = [8, 8], strides = [1, 1]} : vector<8x32xbf16> to vector<8x8xbf16>
    %10 = vector.extract_strided_slice %5 {offsets = [0, 0], sizes = [8, 8], strides = [1, 1]} : vector<8x32xbf16> to vector<8x8xbf16>
    %cst = arith.constant dense<0.000000e+00> : vector<8x8xf32>
    %11 = tpu.matmul %8, %9, %cst {dimension_numbers = #tpu.dot_dimension_numbers<[1], [1], [0], [0], [0, 0, 1, 0], [], []>} : vector<8x8xbf16>, vector<8x8xbf16>, vector<8x8xf32> -> vector<8x8xf32>
    %cst_11 = arith.constant 0.353553385 : f32
    %12 = vector.broadcast %cst_11 : f32 to vector<8x8xf32>
    %13 = arith.mulf %11, %12 : vector<8x8xf32>
    %14 = arith.addf %13, %7 : vector<8x8xf32>
    %cst_12 = arith.constant dense<0xFF800000> : vector<8xf32>
    %15 = vector.multi_reduction <maximumf>, %14, %cst_12 [1] : vector<8x8xf32> to vector<8xf32>
    %16 = vector.shape_cast %15 : vector<8xf32> to vector<8x1xf32>
    %17 = vector.broadcast %16 : vector<8x1xf32> to vector<8x8xf32>
    %18 = arith.subf %14, %17 : vector<8x8xf32>
    %19 = math.exp %18 : vector<8x8xf32>
    %cst_13 = arith.constant dense<0.000000e+00> : vector<8xf32>
    %20 = vector.multi_reduction <add>, %19, %cst_13 [1] : vector<8x8xf32> to vector<8xf32>
    %21 = vector.shape_cast %20 : vector<8xf32> to vector<8x1xf32>
    %22 = tpu.reciprocal %21 {approx = true} : vector<8x1xf32> -> vector<8x1xf32>
    %23 = vector.broadcast %22 : vector<8x1xf32> to vector<8x8xf32>
    %24 = arith.mulf %19, %23 : vector<8x8xf32>
    %25 = arith.truncf %24 : vector<8x8xf32> to vector<8x8xbf16>
    %cst_14 = arith.constant dense<0.000000e+00> : vector<8x8xf32>
    %26 = tpu.matmul %25, %10, %cst_14 {dimension_numbers = #tpu.dot_dimension_numbers<[1], [0], [0], [1], [0, 0, 1, 1], [], []>} : vector<8x8xbf16>, vector<8x8xbf16>, vector<8x8xf32> -> vector<8x8xf32>
    %c0_15 = arith.constant 0 : index
    %c0_16 = arith.constant 0 : index
    %c0_17 = arith.constant 0 : index
    %27 = vector.load %arg5[%c0_15, %c0_16, %c0_17] : memref<1x8x32xf32, #tpu.memory_space<vmem>>, vector<1x8x8xf32>
    %28 = vector.shape_cast %27 : vector<1x8x8xf32> to vector<8x8xf32>
    %29 = vector.shape_cast %26 : vector<8x8xf32> to vector<1x8x8xf32>
    tpu.vector_store %arg5[%c0_15, %c0_16, %c0_17], %29 {strides = array<i32>} : memref<1x8x32xf32, #tpu.memory_space<vmem>>, vector<1x8x8xf32>,
    %30 = vector.extract_strided_slice %1 {offsets = [0, 8], sizes = [8, 8], strides = [1, 1]} : vector<8x32xbf16> to vector<8x8xbf16>
    %31 = vector.extract_strided_slice %3 {offsets = [0, 8], sizes = [8, 8], strides = [1, 1]} : vector<8x32xbf16> to vector<8x8xbf16>
    %32 = vector.extract_strided_slice %5 {offsets = [0, 8], sizes = [8, 8], strides = [1, 1]} : vector<8x32xbf16> to vector<8x8xbf16>
    %cst_18 = arith.constant dense<0.000000e+00> : vector<8x8xf32>
    %33 = tpu.matmul %30, %31, %cst_18 {dimension_numbers = #tpu.dot_dimension_numbers<[1], [1], [0], [0], [0, 0, 1, 0], [], []>} : vector<8x8xbf16>, vector<8x8xbf16>, vector<8x8xf32> -> vector<8x8xf32>
    %cst_19 = arith.constant 0.353553385 : f32
    %34 = vector.broadcast %cst_19 : f32 to vector<8x8xf32>
    %35 = arith.mulf %33, %34 : vector<8x8xf32>
    %36 = arith.addf %35, %7 : vector<8x8xf32>
    %cst_20 = arith.constant dense<0xFF800000> : vector<8xf32>
    %37 = vector.multi_reduction <maximumf>, %36, %cst_20 [1] : vector<8x8xf32> to vector<8xf32>
    %38 = vector.shape_cast %37 : vector<8xf32> to vector<8x1xf32>
    %39 = vector.broadcast %38 : vector<8x1xf32> to vector<8x8xf32>
    %40 = arith.subf %36, %39 : vector<8x8xf32>
    %41 = math.exp %40 : vector<8x8xf32>
    %cst_21 = arith.constant dense<0.000000e+00> : vector<8xf32>
    %42 = vector.multi_reduction <add>, %41, %cst_21 [1] : vector<8x8xf32> to vector<8xf32>
    %43 = vector.shape_cast %42 : vector<8xf32> to vector<8x1xf32>
    %44 = tpu.reciprocal %43 {approx = true} : vector<8x1xf32> -> vector<8x1xf32>
    %45 = vector.broadcast %44 : vector<8x1xf32> to vector<8x8xf32>
    %46 = arith.mulf %41, %45 : vector<8x8xf32>
    %47 = arith.truncf %46 : vector<8x8xf32> to vector<8x8xbf16>
    %cst_22 = arith.constant dense<0.000000e+00> : vector<8x8xf32>
    %48 = tpu.matmul %47, %32, %cst_22 {dimension_numbers = #tpu.dot_dimension_numbers<[1], [0], [0], [1], [0, 0, 1, 1], [], []>} : vector<8x8xbf16>, vector<8x8xbf16>, vector<8x8xf32> -> vector<8x8xf32>
    %c0_23 = arith.constant 0 : index
    %c0_24 = arith.constant 0 : index
    %c8 = arith.constant 8 : index
    %49 = vector.load %arg5[%c0_23, %c0_24, %c8] : memref<1x8x32xf32, #tpu.memory_space<vmem>>, vector<1x8x8xf32>
    %50 = vector.shape_cast %49 : vector<1x8x8xf32> to vector<8x8xf32>
    %51 = vector.shape_cast %48 : vector<8x8xf32> to vector<1x8x8xf32>
    tpu.vector_store %arg5[%c0_23, %c0_24, %c8], %51 {strides = array<i32>} : memref<1x8x32xf32, #tpu.memory_space<vmem>>, vector<1x8x8xf32>,
    %52 = vector.extract_strided_slice %1 {offsets = [0, 16], sizes = [8, 8], strides = [1, 1]} : vector<8x32xbf16> to vector<8x8xbf16>
    %53 = vector.extract_strided_slice %3 {offsets = [0, 16], sizes = [8, 8], strides = [1, 1]} : vector<8x32xbf16> to vector<8x8xbf16>
    %54 = vector.extract_strided_slice %5 {offsets = [0, 16], sizes = [8, 8], strides = [1, 1]} : vector<8x32xbf16> to vector<8x8xbf16>
    %cst_25 = arith.constant dense<0.000000e+00> : vector<8x8xf32>
    %55 = tpu.matmul %52, %53, %cst_25 {dimension_numbers = #tpu.dot_dimension_numbers<[1], [1], [0], [0], [0, 0, 1, 0], [], []>} : vector<8x8xbf16>, vector<8x8xbf16>, vector<8x8xf32> -> vector<8x8xf32>
    %cst_26 = arith.constant 0.353553385 : f32
    %56 = vector.broadcast %cst_26 : f32 to vector<8x8xf32>
    %57 = arith.mulf %55, %56 : vector<8x8xf32>
    %58 = arith.addf %57, %7 : vector<8x8xf32>
    %cst_27 = arith.constant dense<0xFF800000> : vector<8xf32>
    %59 = vector.multi_reduction <maximumf>, %58, %cst_27 [1] : vector<8x8xf32> to vector<8xf32>
    %60 = vector.shape_cast %59 : vector<8xf32> to vector<8x1xf32>
    %61 = vector.broadcast %60 : vector<8x1xf32> to vector<8x8xf32>
    %62 = arith.subf %58, %61 : vector<8x8xf32>
    %63 = math.exp %62 : vector<8x8xf32>
    %cst_28 = arith.constant dense<0.000000e+00> : vector<8xf32>
    %64 = vector.multi_reduction <add>, %63, %cst_28 [1] : vector<8x8xf32> to vector<8xf32>
    %65 = vector.shape_cast %64 : vector<8xf32> to vector<8x1xf32>
    %66 = tpu.reciprocal %65 {approx = true} : vector<8x1xf32> -> vector<8x1xf32>
    %67 = vector.broadcast %66 : vector<8x1xf32> to vector<8x8xf32>
    %68 = arith.mulf %63, %67 : vector<8x8xf32>
    %69 = arith.truncf %68 : vector<8x8xf32> to vector<8x8xbf16>
    %cst_29 = arith.constant dense<0.000000e+00> : vector<8x8xf32>
    %70 = tpu.matmul %69, %54, %cst_29 {dimension_numbers = #tpu.dot_dimension_numbers<[1], [0], [0], [1], [0, 0, 1, 1], [], []>} : vector<8x8xbf16>, vector<8x8xbf16>, vector<8x8xf32> -> vector<8x8xf32>
    %c0_30 = arith.constant 0 : index
    %c0_31 = arith.constant 0 : index
    %c16 = arith.constant 16 : index
    %71 = vector.load %arg5[%c0_30, %c0_31, %c16] : memref<1x8x32xf32, #tpu.memory_space<vmem>>, vector<1x8x8xf32>
    %72 = vector.shape_cast %71 : vector<1x8x8xf32> to vector<8x8xf32>
    %73 = vector.shape_cast %70 : vector<8x8xf32> to vector<1x8x8xf32>
    tpu.vector_store %arg5[%c0_30, %c0_31, %c16], %73 {strides = array<i32>} : memref<1x8x32xf32, #tpu.memory_space<vmem>>, vector<1x8x8xf32>,
    %74 = vector.extract_strided_slice %1 {offsets = [0, 24], sizes = [8, 8], strides = [1, 1]} : vector<8x32xbf16> to vector<8x8xbf16>
    %75 = vector.extract_strided_slice %3 {offsets = [0, 24], sizes = [8, 8], strides = [1, 1]} : vector<8x32xbf16> to vector<8x8xbf16>
    %76 = vector.extract_strided_slice %5 {offsets = [0, 24], sizes = [8, 8], strides = [1, 1]} : vector<8x32xbf16> to vector<8x8xbf16>
    %cst_32 = arith.constant dense<0.000000e+00> : vector<8x8xf32>
    %77 = tpu.matmul %74, %75, %cst_32 {dimension_numbers = #tpu.dot_dimension_numbers<[1], [1], [0], [0], [0, 0, 1, 0], [], []>} : vector<8x8xbf16>, vector<8x8xbf16>, vector<8x8xf32> -> vector<8x8xf32>
    %cst_33 = arith.constant 0.353553385 : f32
    %78 = vector.broadcast %cst_33 : f32 to vector<8x8xf32>
    %79 = arith.mulf %77, %78 : vector<8x8xf32>
    %80 = arith.addf %79, %7 : vector<8x8xf32>
    %cst_34 = arith.constant dense<0xFF800000> : vector<8xf32>
    %81 = vector.multi_reduction <maximumf>, %80, %cst_34 [1] : vector<8x8xf32> to vector<8xf32>
    %82 = vector.shape_cast %81 : vector<8xf32> to vector<8x1xf32>
    %83 = vector.broadcast %82 : vector<8x1xf32> to vector<8x8xf32>
    %84 = arith.subf %80, %83 : vector<8x8xf32>
    %85 = math.exp %84 : vector<8x8xf32>
    %cst_35 = arith.constant dense<0.000000e+00> : vector<8xf32>
    %86 = vector.multi_reduction <add>, %85, %cst_35 [1] : vector<8x8xf32> to vector<8xf32>
    %87 = vector.shape_cast %86 : vector<8xf32> to vector<8x1xf32>
    %88 = tpu.reciprocal %87 {approx = true} : vector<8x1xf32> -> vector<8x1xf32>
    %89 = vector.broadcast %88 : vector<8x1xf32> to vector<8x8xf32>
    %90 = arith.mulf %85, %89 : vector<8x8xf32>
    %91 = arith.truncf %90 : vector<8x8xf32> to vector<8x8xbf16>
    %cst_36 = arith.constant dense<0.000000e+00> : vector<8x8xf32>
    %92 = tpu.matmul %91, %76, %cst_36 {dimension_numbers = #tpu.dot_dimension_numbers<[1], [0], [0], [1], [0, 0, 1, 1], [], []>} : vector<8x8xbf16>, vector<8x8xbf16>, vector<8x8xf32> -> vector<8x8xf32>
    %c0_37 = arith.constant 0 : index
    %c0_38 = arith.constant 0 : index
    %c24 = arith.constant 24 : index
    %93 = vector.load %arg5[%c0_37, %c0_38, %c24] : memref<1x8x32xf32, #tpu.memory_space<vmem>>, vector<1x8x8xf32>
    %94 = vector.shape_cast %93 : vector<1x8x8xf32> to vector<8x8xf32>
    %95 = vector.shape_cast %92 : vector<8x8xf32> to vector<1x8x8xf32>
    tpu.vector_store %arg5[%c0_37, %c0_38, %c24], %95 {strides = array<i32>} : memref<1x8x32xf32, #tpu.memory_space<vmem>>, vector<1x8x8xf32>,
    return
  }
  func.func @transform_0(%arg0: i32) -> (i32, i32, i32) {
    %c0_i32 = arith.constant 0 : i32
    %c0_i32_0 = arith.constant 0 : i32
    %c0_i32_1 = arith.constant 0 : i32
    return %arg0, %c0_i32, %c0_i32_0 : i32, i32, i32
  }
  func.func @transform_1(%arg0: i32) -> (i32, i32, i32) {
    %c0_i32 = arith.constant 0 : i32
    %c0_i32_0 = arith.constant 0 : i32
    %c0_i32_1 = arith.constant 0 : i32
    return %arg0, %c0_i32, %c0_i32_0 : i32, i32, i32
  }
  func.func @transform_2(%arg0: i32) -> (i32, i32, i32) {
    %c0_i32 = arith.constant 0 : i32
    %c0_i32_0 = arith.constant 0 : i32
    %c0_i32_1 = arith.constant 0 : i32
    return %arg0, %c0_i32, %c0_i32_0 : i32, i32, i32
  }
  func.func @transform_3(%arg0: i32) -> (i32, i32, i32) {
    %c0_i32 = arith.constant 0 : i32
    %c0_i32_0 = arith.constant 0 : i32
    %c0_i32_1 = arith.constant 0 : i32
    return %arg0, %c0_i32, %c0_i32_0 : i32, i32, i32
  }
  func.func @transform_4(%arg0: i32) -> (i32, i32, i32) {
    %c0_i32 = arith.constant 0 : i32
    %c0_i32_0 = arith.constant 0 : i32
    %c0_i32_1 = arith.constant 0 : i32
    return %arg0, %c0_i32, %c0_i32_0 : i32, i32, i32
  }
}

module attributes {stable_mosaic.version = 11 : i64} {
  func.func @_linear_add_ln_kernel(%arg0: i32, %arg1: memref<16x32xbf16, #tpu.memory_space<vmem>>, %arg2: memref<32x32xbf16, #tpu.memory_space<vmem>>, %arg3: memref<1x32xf32, #tpu.memory_space<vmem>>, %arg4: memref<16x32xf32, #tpu.memory_space<vmem>>, %arg5: memref<1x32xf32, #tpu.memory_space<vmem>>, %arg6: memref<1x32xf32, #tpu.memory_space<vmem>>, %arg7: memref<16x1xf32, #tpu.memory_space<vmem>>, %arg8: memref<16x32xf32, #tpu.memory_space<vmem>>) attributes {dimension_semantics = [#tpu.dimension_semantics<parallel>], iteration_bounds = array<i64: 1>, scalar_prefetch = 0 : i64, scratch_operands = 0 : i64, tpu.core_type = #tpu.core_type<tc>, window_params = [{transform_indices = @transform_0, window_bounds = array<i64: 16, 32>}, {pipeline_mode = #tpu.pipeline_mode<synchronous>, transform_indices = @transform_1, window_bounds = array<i64: 32, 32>}, {pipeline_mode = #tpu.pipeline_mode<synchronous>, transform_indices = @transform_2, window_bounds = array<i64: 1, 32>}, {transform_indices = @transform_3, window_bounds = array<i64: 16, 32>}, {pipeline_mode = #tpu.pipeline_mode<synchronous>, transform_indices = @transform_4, window_bounds = array<i64: 1, 32>}, {pipeline_mode = #tpu.pipeline_mode<synchronous>, transform_indices = @transform_5, window_bounds = array<i64: 1, 32>}, {transform_indices = @transform_6, window_bounds = array<i64: 16, 1>}, {transform_indices = @transform_7, window_bounds = array<i64: 16, 32>}]} {
    %c0 = arith.constant 0 : index
    %c0_0 = arith.constant 0 : index
    %0 = vector.load %arg1[%c0, %c0_0] : memref<16x32xbf16, #tpu.memory_space<vmem>>, vector<16x32xbf16>
    %c0_1 = arith.constant 0 : index
    %c0_2 = arith.constant 0 : index
    %1 = vector.load %arg2[%c0_1, %c0_2] : memref<32x32xbf16, #tpu.memory_space<vmem>>, vector<32x32xbf16>
    %cst = arith.constant dense<0.000000e+00> : vector<16x32xf32>
    %2 = tpu.matmul %0, %1, %cst {dimension_numbers = #tpu.dot_dimension_numbers<[1], [0], [0], [1], [0, 0, 1, 1], [], []>} : vector<16x32xbf16>, vector<32x32xbf16>, vector<16x32xf32> -> vector<16x32xf32>
    %c0_3 = arith.constant 0 : index
    %c0_4 = arith.constant 0 : index
    %3 = vector.load %arg3[%c0_3, %c0_4] : memref<1x32xf32, #tpu.memory_space<vmem>>, vector<1x32xf32>
    %4 = vector.broadcast %3 : vector<1x32xf32> to vector<16x32xf32>
    %5 = arith.addf %2, %4 : vector<16x32xf32>
    %c0_5 = arith.constant 0 : index
    %c0_6 = arith.constant 0 : index
    %6 = vector.load %arg4[%c0_5, %c0_6] : memref<16x32xf32, #tpu.memory_space<vmem>>, vector<16x32xf32>
    %7 = arith.addf %5, %6 : vector<16x32xf32>
    %cst_7 = arith.constant dense<0.000000e+00> : vector<16xf32>
    %8 = vector.multi_reduction <add>, %7, %cst_7 [1] : vector<16x32xf32> to vector<16xf32>
    %9 = vector.shape_cast %8 : vector<16xf32> to vector<16x1xf32>
    %cst_8 = arith.constant 3.200000e+01 : f32
    %10 = vector.broadcast %cst_8 : f32 to vector<16x1xf32>
    %11 = arith.divf %9, %10 : vector<16x1xf32>
    %12 = vector.broadcast %11 : vector<16x1xf32> to vector<16x32xf32>
    %13 = arith.subf %7, %12 : vector<16x32xf32>
    %14 = arith.mulf %13, %13 : vector<16x32xf32>
    %cst_9 = arith.constant dense<0.000000e+00> : vector<16xf32>
    %15 = vector.multi_reduction <add>, %14, %cst_9 [1] : vector<16x32xf32> to vector<16xf32>
    %16 = vector.shape_cast %15 : vector<16xf32> to vector<16x1xf32>
    %cst_10 = arith.constant 3.200000e+01 : f32
    %17 = vector.broadcast %cst_10 : f32 to vector<16x1xf32>
    %18 = arith.divf %16, %17 : vector<16x1xf32>
    %19 = vector.broadcast %11 : vector<16x1xf32> to vector<16x32xf32>
    %20 = arith.subf %7, %19 : vector<16x32xf32>
    %cst_11 = arith.constant 9.99999974E-6 : f32
    %21 = vector.broadcast %cst_11 : f32 to vector<16x1xf32>
    %22 = arith.addf %18, %21 : vector<16x1xf32>
    %23 = math.rsqrt %22 : vector<16x1xf32>
    %24 = vector.broadcast %23 : vector<16x1xf32> to vector<16x32xf32>
    %25 = arith.mulf %20, %24 : vector<16x32xf32>
    %c0_12 = arith.constant 0 : index
    %c0_13 = arith.constant 0 : index
    %26 = vector.load %arg5[%c0_12, %c0_13] : memref<1x32xf32, #tpu.memory_space<vmem>>, vector<1x32xf32>
    %27 = vector.broadcast %26 : vector<1x32xf32> to vector<16x32xf32>
    %28 = arith.mulf %25, %27 : vector<16x32xf32>
    %c0_14 = arith.constant 0 : index
    %c0_15 = arith.constant 0 : index
    %29 = vector.load %arg6[%c0_14, %c0_15] : memref<1x32xf32, #tpu.memory_space<vmem>>, vector<1x32xf32>
    %30 = vector.broadcast %29 : vector<1x32xf32> to vector<16x32xf32>
    %31 = arith.addf %28, %30 : vector<16x32xf32>
    %c0_16 = arith.constant 0 : index
    %c0_17 = arith.constant 0 : index
    %32 = vector.load %arg7[%c0_16, %c0_17] : memref<16x1xf32, #tpu.memory_space<vmem>>, vector<16x1xf32>
    %33 = vector.broadcast %32 : vector<16x1xf32> to vector<16x32xf32>
    %34 = arith.mulf %31, %33 : vector<16x32xf32>
    %c0_18 = arith.constant 0 : index
    %c0_19 = arith.constant 0 : index
    %35 = vector.load %arg8[%c0_18, %c0_19] : memref<16x32xf32, #tpu.memory_space<vmem>>, vector<16x32xf32>
    tpu.vector_store %arg8[%c0_18, %c0_19], %34 {strides = array<i32>} : memref<16x32xf32, #tpu.memory_space<vmem>>, vector<16x32xf32>,
    return
  }
  func.func @transform_0(%arg0: i32) -> (i32, i32) {
    %c0_i32 = arith.constant 0 : i32
    %c0_i32_0 = arith.constant 0 : i32
    return %arg0, %c0_i32 : i32, i32
  }
  func.func @transform_1(%arg0: i32) -> (i32, i32) {
    %c0_i32 = arith.constant 0 : i32
    %c0_i32_0 = arith.constant 0 : i32
    %c0_i32_1 = arith.constant 0 : i32
    return %c0_i32, %c0_i32_0 : i32, i32
  }
  func.func @transform_2(%arg0: i32) -> (i32, i32) {
    %c0_i32 = arith.constant 0 : i32
    %c0_i32_0 = arith.constant 0 : i32
    %c0_i32_1 = arith.constant 0 : i32
    return %c0_i32, %c0_i32_0 : i32, i32
  }
  func.func @transform_3(%arg0: i32) -> (i32, i32) {
    %c0_i32 = arith.constant 0 : i32
    %c0_i32_0 = arith.constant 0 : i32
    return %arg0, %c0_i32 : i32, i32
  }
  func.func @transform_4(%arg0: i32) -> (i32, i32) {
    %c0_i32 = arith.constant 0 : i32
    %c0_i32_0 = arith.constant 0 : i32
    %c0_i32_1 = arith.constant 0 : i32
    return %c0_i32, %c0_i32_0 : i32, i32
  }
  func.func @transform_5(%arg0: i32) -> (i32, i32) {
    %c0_i32 = arith.constant 0 : i32
    %c0_i32_0 = arith.constant 0 : i32
    %c0_i32_1 = arith.constant 0 : i32
    return %c0_i32, %c0_i32_0 : i32, i32
  }
  func.func @transform_6(%arg0: i32) -> (i32, i32) {
    %c0_i32 = arith.constant 0 : i32
    %c0_i32_0 = arith.constant 0 : i32
    return %arg0, %c0_i32 : i32, i32
  }
  func.func @transform_7(%arg0: i32) -> (i32, i32) {
    %c0_i32 = arith.constant 0 : i32
    %c0_i32_0 = arith.constant 0 : i32
    return %arg0, %c0_i32 : i32, i32
  }
}

module attributes {stable_mosaic.version = 11 : i64} {
  func.func @_ffn_add_ln_kernel(%arg0: i32, %arg1: memref<16x32xbf16, #tpu.memory_space<vmem>>, %arg2: memref<32x64xbf16, #tpu.memory_space<vmem>>, %arg3: memref<1x64xf32, #tpu.memory_space<vmem>>, %arg4: memref<64x32xbf16, #tpu.memory_space<vmem>>, %arg5: memref<1x32xf32, #tpu.memory_space<vmem>>, %arg6: memref<16x32xf32, #tpu.memory_space<vmem>>, %arg7: memref<1x32xf32, #tpu.memory_space<vmem>>, %arg8: memref<1x32xf32, #tpu.memory_space<vmem>>, %arg9: memref<16x1xf32, #tpu.memory_space<vmem>>, %arg10: memref<16x32xf32, #tpu.memory_space<vmem>>) attributes {dimension_semantics = [#tpu.dimension_semantics<parallel>], iteration_bounds = array<i64: 1>, scalar_prefetch = 0 : i64, scratch_operands = 0 : i64, tpu.core_type = #tpu.core_type<tc>, window_params = [{transform_indices = @transform_0, window_bounds = array<i64: 16, 32>}, {pipeline_mode = #tpu.pipeline_mode<synchronous>, transform_indices = @transform_1, window_bounds = array<i64: 32, 64>}, {pipeline_mode = #tpu.pipeline_mode<synchronous>, transform_indices = @transform_2, window_bounds = array<i64: 1, 64>}, {pipeline_mode = #tpu.pipeline_mode<synchronous>, transform_indices = @transform_3, window_bounds = array<i64: 64, 32>}, {pipeline_mode = #tpu.pipeline_mode<synchronous>, transform_indices = @transform_4, window_bounds = array<i64: 1, 32>}, {transform_indices = @transform_5, window_bounds = array<i64: 16, 32>}, {pipeline_mode = #tpu.pipeline_mode<synchronous>, transform_indices = @transform_6, window_bounds = array<i64: 1, 32>}, {pipeline_mode = #tpu.pipeline_mode<synchronous>, transform_indices = @transform_7, window_bounds = array<i64: 1, 32>}, {transform_indices = @transform_8, window_bounds = array<i64: 16, 1>}, {transform_indices = @transform_9, window_bounds = array<i64: 16, 32>}]} {
    %c0 = arith.constant 0 : index
    %c0_0 = arith.constant 0 : index
    %0 = vector.load %arg1[%c0, %c0_0] : memref<16x32xbf16, #tpu.memory_space<vmem>>, vector<16x32xbf16>
    %c0_1 = arith.constant 0 : index
    %c0_2 = arith.constant 0 : index
    %1 = vector.load %arg2[%c0_1, %c0_2] : memref<32x64xbf16, #tpu.memory_space<vmem>>, vector<32x64xbf16>
    %cst = arith.constant dense<0.000000e+00> : vector<16x64xf32>
    %2 = tpu.matmul %0, %1, %cst {dimension_numbers = #tpu.dot_dimension_numbers<[1], [0], [0], [1], [0, 0, 1, 1], [], []>} : vector<16x32xbf16>, vector<32x64xbf16>, vector<16x64xf32> -> vector<16x64xf32>
    %c0_3 = arith.constant 0 : index
    %c0_4 = arith.constant 0 : index
    %3 = vector.load %arg3[%c0_3, %c0_4] : memref<1x64xf32, #tpu.memory_space<vmem>>, vector<1x64xf32>
    %4 = vector.broadcast %3 : vector<1x64xf32> to vector<16x64xf32>
    %5 = arith.addf %2, %4 : vector<16x64xf32>
    %cst_5 = arith.constant 0.000000e+00 : f32
    %6 = vector.broadcast %cst_5 : f32 to vector<16x64xf32>
    %7 = arith.maximumf %5, %6 : vector<16x64xf32>
    %8 = arith.truncf %7 : vector<16x64xf32> to vector<16x64xbf16>
    %c0_6 = arith.constant 0 : index
    %c0_7 = arith.constant 0 : index
    %9 = vector.load %arg4[%c0_6, %c0_7] : memref<64x32xbf16, #tpu.memory_space<vmem>>, vector<64x32xbf16>
    %cst_8 = arith.constant dense<0.000000e+00> : vector<16x32xf32>
    %10 = tpu.matmul %8, %9, %cst_8 {dimension_numbers = #tpu.dot_dimension_numbers<[1], [0], [0], [1], [0, 0, 1, 1], [], []>} : vector<16x64xbf16>, vector<64x32xbf16>, vector<16x32xf32> -> vector<16x32xf32>
    %c0_9 = arith.constant 0 : index
    %c0_10 = arith.constant 0 : index
    %11 = vector.load %arg5[%c0_9, %c0_10] : memref<1x32xf32, #tpu.memory_space<vmem>>, vector<1x32xf32>
    %12 = vector.broadcast %11 : vector<1x32xf32> to vector<16x32xf32>
    %13 = arith.addf %10, %12 : vector<16x32xf32>
    %c0_11 = arith.constant 0 : index
    %c0_12 = arith.constant 0 : index
    %14 = vector.load %arg6[%c0_11, %c0_12] : memref<16x32xf32, #tpu.memory_space<vmem>>, vector<16x32xf32>
    %15 = arith.addf %13, %14 : vector<16x32xf32>
    %cst_13 = arith.constant dense<0.000000e+00> : vector<16xf32>
    %16 = vector.multi_reduction <add>, %15, %cst_13 [1] : vector<16x32xf32> to vector<16xf32>
    %17 = vector.shape_cast %16 : vector<16xf32> to vector<16x1xf32>
    %cst_14 = arith.constant 3.200000e+01 : f32
    %18 = vector.broadcast %cst_14 : f32 to vector<16x1xf32>
    %19 = arith.divf %17, %18 : vector<16x1xf32>
    %20 = vector.broadcast %19 : vector<16x1xf32> to vector<16x32xf32>
    %21 = arith.subf %15, %20 : vector<16x32xf32>
    %22 = arith.mulf %21, %21 : vector<16x32xf32>
    %cst_15 = arith.constant dense<0.000000e+00> : vector<16xf32>
    %23 = vector.multi_reduction <add>, %22, %cst_15 [1] : vector<16x32xf32> to vector<16xf32>
    %24 = vector.shape_cast %23 : vector<16xf32> to vector<16x1xf32>
    %cst_16 = arith.constant 3.200000e+01 : f32
    %25 = vector.broadcast %cst_16 : f32 to vector<16x1xf32>
    %26 = arith.divf %24, %25 : vector<16x1xf32>
    %27 = vector.broadcast %19 : vector<16x1xf32> to vector<16x32xf32>
    %28 = arith.subf %15, %27 : vector<16x32xf32>
    %cst_17 = arith.constant 9.99999974E-6 : f32
    %29 = vector.broadcast %cst_17 : f32 to vector<16x1xf32>
    %30 = arith.addf %26, %29 : vector<16x1xf32>
    %31 = math.rsqrt %30 : vector<16x1xf32>
    %32 = vector.broadcast %31 : vector<16x1xf32> to vector<16x32xf32>
    %33 = arith.mulf %28, %32 : vector<16x32xf32>
    %c0_18 = arith.constant 0 : index
    %c0_19 = arith.constant 0 : index
    %34 = vector.load %arg7[%c0_18, %c0_19] : memref<1x32xf32, #tpu.memory_space<vmem>>, vector<1x32xf32>
    %35 = vector.broadcast %34 : vector<1x32xf32> to vector<16x32xf32>
    %36 = arith.mulf %33, %35 : vector<16x32xf32>
    %c0_20 = arith.constant 0 : index
    %c0_21 = arith.constant 0 : index
    %37 = vector.load %arg8[%c0_20, %c0_21] : memref<1x32xf32, #tpu.memory_space<vmem>>, vector<1x32xf32>
    %38 = vector.broadcast %37 : vector<1x32xf32> to vector<16x32xf32>
    %39 = arith.addf %36, %38 : vector<16x32xf32>
    %c0_22 = arith.constant 0 : index
    %c0_23 = arith.constant 0 : index
    %40 = vector.load %arg9[%c0_22, %c0_23] : memref<16x1xf32, #tpu.memory_space<vmem>>, vector<16x1xf32>
    %41 = vector.broadcast %40 : vector<16x1xf32> to vector<16x32xf32>
    %42 = arith.mulf %39, %41 : vector<16x32xf32>
    %c0_24 = arith.constant 0 : index
    %c0_25 = arith.constant 0 : index
    %43 = vector.load %arg10[%c0_24, %c0_25] : memref<16x32xf32, #tpu.memory_space<vmem>>, vector<16x32xf32>
    tpu.vector_store %arg10[%c0_24, %c0_25], %42 {strides = array<i32>} : memref<16x32xf32, #tpu.memory_space<vmem>>, vector<16x32xf32>,
    return
  }
  func.func @transform_0(%arg0: i32) -> (i32, i32) {
    %c0_i32 = arith.constant 0 : i32
    %c0_i32_0 = arith.constant 0 : i32
    return %arg0, %c0_i32 : i32, i32
  }
  func.func @transform_1(%arg0: i32) -> (i32, i32) {
    %c0_i32 = arith.constant 0 : i32
    %c0_i32_0 = arith.constant 0 : i32
    %c0_i32_1 = arith.constant 0 : i32
    return %c0_i32, %c0_i32_0 : i32, i32
  }
  func.func @transform_2(%arg0: i32) -> (i32, i32) {
    %c0_i32 = arith.constant 0 : i32
    %c0_i32_0 = arith.constant 0 : i32
    %c0_i32_1 = arith.constant 0 : i32
    return %c0_i32, %c0_i32_0 : i32, i32
  }
  func.func @transform_3(%arg0: i32) -> (i32, i32) {
    %c0_i32 = arith.constant 0 : i32
    %c0_i32_0 = arith.constant 0 : i32
    %c0_i32_1 = arith.constant 0 : i32
    return %c0_i32, %c0_i32_0 : i32, i32
  }
  func.func @transform_4(%arg0: i32) -> (i32, i32) {
    %c0_i32 = arith.constant 0 : i32
    %c0_i32_0 = arith.constant 0 : i32
    %c0_i32_1 = arith.constant 0 : i32
    return %c0_i32, %c0_i32_0 : i32, i32
  }
  func.func @transform_5(%arg0: i32) -> (i32, i32) {
    %c0_i32 = arith.constant 0 : i32
    %c0_i32_0 = arith.constant 0 : i32
    return %arg0, %c0_i32 : i32, i32
  }
  func.func @transform_6(%arg0: i32) -> (i32, i32) {
    %c0_i32 = arith.constant 0 : i32
    %c0_i32_0 = arith.constant 0 : i32
    %c0_i32_1 = arith.constant 0 : i32
    return %c0_i32, %c0_i32_0 : i32, i32
  }
  func.func @transform_7(%arg0: i32) -> (i32, i32) {
    %c0_i32 = arith.constant 0 : i32
    %c0_i32_0 = arith.constant 0 : i32
    %c0_i32_1 = arith.constant 0 : i32
    return %c0_i32, %c0_i32_0 : i32, i32
  }
  func.func @transform_8(%arg0: i32) -> (i32, i32) {
    %c0_i32 = arith.constant 0 : i32
    %c0_i32_0 = arith.constant 0 : i32
    return %arg0, %c0_i32 : i32, i32
  }
  func.func @transform_9(%arg0: i32) -> (i32, i32) {
    %c0_i32 = arith.constant 0 : i32
    %c0_i32_0 = arith.constant 0 : i32
    return %arg0, %c0_i32 : i32, i32
  }
}

module attributes {stable_mosaic.version = 11 : i64} {
  func.func @_linear_split_kernel(%arg0: i32, %arg1: memref<16x32xbf16, #tpu.memory_space<vmem>>, %arg2: memref<32x64xbf16, #tpu.memory_space<vmem>>, %arg3: memref<1x64xf32, #tpu.memory_space<vmem>>, %arg4: memref<16x32xbf16, #tpu.memory_space<vmem>>, %arg5: memref<16x32xbf16, #tpu.memory_space<vmem>>) attributes {dimension_semantics = [#tpu.dimension_semantics<parallel>], iteration_bounds = array<i64: 1>, scalar_prefetch = 0 : i64, scratch_operands = 0 : i64, tpu.core_type = #tpu.core_type<tc>, window_params = [{transform_indices = @transform_0, window_bounds = array<i64: 16, 32>}, {pipeline_mode = #tpu.pipeline_mode<synchronous>, transform_indices = @transform_1, window_bounds = array<i64: 32, 64>}, {pipeline_mode = #tpu.pipeline_mode<synchronous>, transform_indices = @transform_2, window_bounds = array<i64: 1, 64>}, {transform_indices = @transform_3, window_bounds = array<i64: 16, 32>}, {transform_indices = @transform_4, window_bounds = array<i64: 16, 32>}]} {
    %c0 = arith.constant 0 : index
    %c0_0 = arith.constant 0 : index
    %0 = vector.load %arg1[%c0, %c0_0] : memref<16x32xbf16, #tpu.memory_space<vmem>>, vector<16x32xbf16>
    %c0_1 = arith.constant 0 : index
    %c0_2 = arith.constant 0 : index
    %1 = vector.load %arg2[%c0_1, %c0_2] : memref<32x64xbf16, #tpu.memory_space<vmem>>, vector<32x64xbf16>
    %cst = arith.constant dense<0.000000e+00> : vector<16x64xf32>
    %2 = tpu.matmul %0, %1, %cst {dimension_numbers = #tpu.dot_dimension_numbers<[1], [0], [0], [1], [0, 0, 1, 1], [], []>} : vector<16x32xbf16>, vector<32x64xbf16>, vector<16x64xf32> -> vector<16x64xf32>
    %c0_3 = arith.constant 0 : index
    %c0_4 = arith.constant 0 : index
    %3 = vector.load %arg3[%c0_3, %c0_4] : memref<1x64xf32, #tpu.memory_space<vmem>>, vector<1x64xf32>
    %4 = vector.broadcast %3 : vector<1x64xf32> to vector<16x64xf32>
    %5 = arith.addf %2, %4 : vector<16x64xf32>
    %6 = vector.extract_strided_slice %5 {offsets = [0, 0], sizes = [16, 32], strides = [1, 1]} : vector<16x64xf32> to vector<16x32xf32>
    %7 = arith.truncf %6 : vector<16x32xf32> to vector<16x32xbf16>
    %c0_5 = arith.constant 0 : index
    %c0_6 = arith.constant 0 : index
    %8 = vector.load %arg4[%c0_5, %c0_6] : memref<16x32xbf16, #tpu.memory_space<vmem>>, vector<16x32xbf16>
    tpu.vector_store %arg4[%c0_5, %c0_6], %7 {strides = array<i32>} : memref<16x32xbf16, #tpu.memory_space<vmem>>, vector<16x32xbf16>,
    %9 = vector.extract_strided_slice %5 {offsets = [0, 32], sizes = [16, 32], strides = [1, 1]} : vector<16x64xf32> to vector<16x32xf32>
    %10 = arith.truncf %9 : vector<16x32xf32> to vector<16x32xbf16>
    %c0_7 = arith.constant 0 : index
    %c0_8 = arith.constant 0 : index
    %11 = vector.load %arg5[%c0_7, %c0_8] : memref<16x32xbf16, #tpu.memory_space<vmem>>, vector<16x32xbf16>
    tpu.vector_store %arg5[%c0_7, %c0_8], %10 {strides = array<i32>} : memref<16x32xbf16, #tpu.memory_space<vmem>>, vector<16x32xbf16>,
    return
  }
  func.func @transform_0(%arg0: i32) -> (i32, i32) {
    %c0_i32 = arith.constant 0 : i32
    %c0_i32_0 = arith.constant 0 : i32
    return %arg0, %c0_i32 : i32, i32
  }
  func.func @transform_1(%arg0: i32) -> (i32, i32) {
    %c0_i32 = arith.constant 0 : i32
    %c0_i32_0 = arith.constant 0 : i32
    %c0_i32_1 = arith.constant 0 : i32
    return %c0_i32, %c0_i32_0 : i32, i32
  }
  func.func @transform_2(%arg0: i32) -> (i32, i32) {
    %c0_i32 = arith.constant 0 : i32
    %c0_i32_0 = arith.constant 0 : i32
    %c0_i32_1 = arith.constant 0 : i32
    return %c0_i32, %c0_i32_0 : i32, i32
  }
  func.func @transform_3(%arg0: i32) -> (i32, i32) {
    %c0_i32 = arith.constant 0 : i32
    %c0_i32_0 = arith.constant 0 : i32
    return %arg0, %c0_i32 : i32, i32
  }
  func.func @transform_4(%arg0: i32) -> (i32, i32) {
    %c0_i32 = arith.constant 0 : i32
    %c0_i32_0 = arith.constant 0 : i32
    return %arg0, %c0_i32 : i32, i32
  }
}

module attributes {stable_mosaic.version = 11 : i64} {
  func.func @_linear_split_kernel(%arg0: i32, %arg1: memref<14x32xbf16, #tpu.memory_space<vmem>>, %arg2: memref<32x96xbf16, #tpu.memory_space<vmem>>, %arg3: memref<1x96xf32, #tpu.memory_space<vmem>>, %arg4: memref<14x32xbf16, #tpu.memory_space<vmem>>, %arg5: memref<14x32xbf16, #tpu.memory_space<vmem>>, %arg6: memref<14x32xbf16, #tpu.memory_space<vmem>>) attributes {dimension_semantics = [#tpu.dimension_semantics<parallel>], iteration_bounds = array<i64: 1>, scalar_prefetch = 0 : i64, scratch_operands = 0 : i64, tpu.core_type = #tpu.core_type<tc>, window_params = [{transform_indices = @transform_0, window_bounds = array<i64: 14, 32>}, {pipeline_mode = #tpu.pipeline_mode<synchronous>, transform_indices = @transform_1, window_bounds = array<i64: 32, 96>}, {pipeline_mode = #tpu.pipeline_mode<synchronous>, transform_indices = @transform_2, window_bounds = array<i64: 1, 96>}, {transform_indices = @transform_3, window_bounds = array<i64: 14, 32>}, {transform_indices = @transform_4, window_bounds = array<i64: 14, 32>}, {transform_indices = @transform_5, window_bounds = array<i64: 14, 32>}]} {
    %c0 = arith.constant 0 : index
    %c0_0 = arith.constant 0 : index
    %0 = vector.load %arg1[%c0, %c0_0] : memref<14x32xbf16, #tpu.memory_space<vmem>>, vector<14x32xbf16>
    %c0_1 = arith.constant 0 : index
    %c0_2 = arith.constant 0 : index
    %1 = vector.load %arg2[%c0_1, %c0_2] : memref<32x96xbf16, #tpu.memory_space<vmem>>, vector<32x96xbf16>
    %cst = arith.constant dense<0.000000e+00> : vector<14x96xf32>
    %2 = tpu.matmul %0, %1, %cst {dimension_numbers = #tpu.dot_dimension_numbers<[1], [0], [0], [1], [0, 0, 1, 1], [], []>} : vector<14x32xbf16>, vector<32x96xbf16>, vector<14x96xf32> -> vector<14x96xf32>
    %c0_3 = arith.constant 0 : index
    %c0_4 = arith.constant 0 : index
    %3 = vector.load %arg3[%c0_3, %c0_4] : memref<1x96xf32, #tpu.memory_space<vmem>>, vector<1x96xf32>
    %4 = vector.broadcast %3 : vector<1x96xf32> to vector<14x96xf32>
    %5 = arith.addf %2, %4 : vector<14x96xf32>
    %6 = vector.extract_strided_slice %5 {offsets = [0, 0], sizes = [14, 32], strides = [1, 1]} : vector<14x96xf32> to vector<14x32xf32>
    %7 = arith.truncf %6 : vector<14x32xf32> to vector<14x32xbf16>
    %c0_5 = arith.constant 0 : index
    %c0_6 = arith.constant 0 : index
    %8 = vector.load %arg4[%c0_5, %c0_6] : memref<14x32xbf16, #tpu.memory_space<vmem>>, vector<14x32xbf16>
    tpu.vector_store %arg4[%c0_5, %c0_6], %7 {strides = array<i32>} : memref<14x32xbf16, #tpu.memory_space<vmem>>, vector<14x32xbf16>,
    %9 = vector.extract_strided_slice %5 {offsets = [0, 32], sizes = [14, 32], strides = [1, 1]} : vector<14x96xf32> to vector<14x32xf32>
    %10 = arith.truncf %9 : vector<14x32xf32> to vector<14x32xbf16>
    %c0_7 = arith.constant 0 : index
    %c0_8 = arith.constant 0 : index
    %11 = vector.load %arg5[%c0_7, %c0_8] : memref<14x32xbf16, #tpu.memory_space<vmem>>, vector<14x32xbf16>
    tpu.vector_store %arg5[%c0_7, %c0_8], %10 {strides = array<i32>} : memref<14x32xbf16, #tpu.memory_space<vmem>>, vector<14x32xbf16>,
    %12 = vector.extract_strided_slice %5 {offsets = [0, 64], sizes = [14, 32], strides = [1, 1]} : vector<14x96xf32> to vector<14x32xf32>
    %13 = arith.truncf %12 : vector<14x32xf32> to vector<14x32xbf16>
    %c0_9 = arith.constant 0 : index
    %c0_10 = arith.constant 0 : index
    %14 = vector.load %arg6[%c0_9, %c0_10] : memref<14x32xbf16, #tpu.memory_space<vmem>>, vector<14x32xbf16>
    tpu.vector_store %arg6[%c0_9, %c0_10], %13 {strides = array<i32>} : memref<14x32xbf16, #tpu.memory_space<vmem>>, vector<14x32xbf16>,
    return
  }
  func.func @transform_0(%arg0: i32) -> (i32, i32) {
    %c0_i32 = arith.constant 0 : i32
    %c0_i32_0 = arith.constant 0 : i32
    return %arg0, %c0_i32 : i32, i32
  }
  func.func @transform_1(%arg0: i32) -> (i32, i32) {
    %c0_i32 = arith.constant 0 : i32
    %c0_i32_0 = arith.constant 0 : i32
    %c0_i32_1 = arith.constant 0 : i32
    return %c0_i32, %c0_i32_0 : i32, i32
  }
  func.func @transform_2(%arg0: i32) -> (i32, i32) {
    %c0_i32 = arith.constant 0 : i32
    %c0_i32_0 = arith.constant 0 : i32
    %c0_i32_1 = arith.constant 0 : i32
    return %c0_i32, %c0_i32_0 : i32, i32
  }
  func.func @transform_3(%arg0: i32) -> (i32, i32) {
    %c0_i32 = arith.constant 0 : i32
    %c0_i32_0 = arith.constant 0 : i32
    return %arg0, %c0_i32 : i32, i32
  }
  func.func @transform_4(%arg0: i32) -> (i32, i32) {
    %c0_i32 = arith.constant 0 : i32
    %c0_i32_0 = arith.constant 0 : i32
    return %arg0, %c0_i32 : i32, i32
  }
  func.func @transform_5(%arg0: i32) -> (i32, i32) {
    %c0_i32 = arith.constant 0 : i32
    %c0_i32_0 = arith.constant 0 : i32
    return %arg0, %c0_i32 : i32, i32
  }
}

module attributes {stable_mosaic.version = 11 : i64} {
  func.func @_mha_attention_kernel(%arg0: i32, %arg1: memref<1x7x32xbf16, #tpu.memory_space<vmem>>, %arg2: memref<1x7x32xbf16, #tpu.memory_space<vmem>>, %arg3: memref<1x7x32xbf16, #tpu.memory_space<vmem>>, %arg4: memref<1x7x7xf32, #tpu.memory_space<vmem>>, %arg5: memref<1x7x32xf32, #tpu.memory_space<vmem>>) attributes {dimension_semantics = [#tpu.dimension_semantics<parallel>], iteration_bounds = array<i64: 2>, scalar_prefetch = 0 : i64, scratch_operands = 0 : i64, tpu.core_type = #tpu.core_type<tc>, window_params = [{transform_indices = @transform_0, window_bounds = array<i64: 1, 7, 32>}, {transform_indices = @transform_1, window_bounds = array<i64: 1, 7, 32>}, {transform_indices = @transform_2, window_bounds = array<i64: 1, 7, 32>}, {transform_indices = @transform_3, window_bounds = array<i64: 1, 7, 7>}, {transform_indices = @transform_4, window_bounds = array<i64: 1, 7, 32>}]} {
    %c0 = arith.constant 0 : index
    %c0_0 = arith.constant 0 : index
    %c0_1 = arith.constant 0 : index
    %0 = vector.load %arg1[%c0, %c0_0, %c0_1] : memref<1x7x32xbf16, #tpu.memory_space<vmem>>, vector<1x7x32xbf16>
    %1 = vector.shape_cast %0 : vector<1x7x32xbf16> to vector<7x32xbf16>
    %c0_2 = arith.constant 0 : index
    %c0_3 = arith.constant 0 : index
    %c0_4 = arith.constant 0 : index
    %2 = vector.load %arg2[%c0_2, %c0_3, %c0_4] : memref<1x7x32xbf16, #tpu.memory_space<vmem>>, vector<1x7x32xbf16>
    %3 = vector.shape_cast %2 : vector<1x7x32xbf16> to vector<7x32xbf16>
    %c0_5 = arith.constant 0 : index
    %c0_6 = arith.constant 0 : index
    %c0_7 = arith.constant 0 : index
    %4 = vector.load %arg3[%c0_5, %c0_6, %c0_7] : memref<1x7x32xbf16, #tpu.memory_space<vmem>>, vector<1x7x32xbf16>
    %5 = vector.shape_cast %4 : vector<1x7x32xbf16> to vector<7x32xbf16>
    %c0_8 = arith.constant 0 : index
    %c0_9 = arith.constant 0 : index
    %c0_10 = arith.constant 0 : index
    %6 = vector.load %arg4[%c0_8, %c0_9, %c0_10] : memref<1x7x7xf32, #tpu.memory_space<vmem>>, vector<1x7x7xf32>
    %7 = vector.shape_cast %6 : vector<1x7x7xf32> to vector<7x7xf32>
    %8 = vector.extract_strided_slice %1 {offsets = [0, 0], sizes = [7, 8], strides = [1, 1]} : vector<7x32xbf16> to vector<7x8xbf16>
    %9 = vector.extract_strided_slice %3 {offsets = [0, 0], sizes = [7, 8], strides = [1, 1]} : vector<7x32xbf16> to vector<7x8xbf16>
    %10 = vector.extract_strided_slice %5 {offsets = [0, 0], sizes = [7, 8], strides = [1, 1]} : vector<7x32xbf16> to vector<7x8xbf16>
    %cst = arith.constant dense<0.000000e+00> : vector<7x7xf32>
    %11 = tpu.matmul %8, %9, %cst {dimension_numbers = #tpu.dot_dimension_numbers<[1], [1], [0], [0], [0, 0, 1, 0], [], []>} : vector<7x8xbf16>, vector<7x8xbf16>, vector<7x7xf32> -> vector<7x7xf32>
    %cst_11 = arith.constant 0.353553385 : f32
    %12 = vector.broadcast %cst_11 : f32 to vector<7x7xf32>
    %13 = arith.mulf %11, %12 : vector<7x7xf32>
    %14 = arith.addf %13, %7 : vector<7x7xf32>
    %cst_12 = arith.constant dense<0xFF800000> : vector<7xf32>
    %15 = vector.multi_reduction <maximumf>, %14, %cst_12 [1] : vector<7x7xf32> to vector<7xf32>
    %16 = vector.shape_cast %15 : vector<7xf32> to vector<7x1xf32>
    %17 = vector.broadcast %16 : vector<7x1xf32> to vector<7x7xf32>
    %18 = arith.subf %14, %17 : vector<7x7xf32>
    %19 = math.exp %18 : vector<7x7xf32>
    %cst_13 = arith.constant dense<0.000000e+00> : vector<7xf32>
    %20 = vector.multi_reduction <add>, %19, %cst_13 [1] : vector<7x7xf32> to vector<7xf32>
    %21 = vector.shape_cast %20 : vector<7xf32> to vector<7x1xf32>
    %22 = tpu.reciprocal %21 {approx = true} : vector<7x1xf32> -> vector<7x1xf32>
    %23 = vector.broadcast %22 : vector<7x1xf32> to vector<7x7xf32>
    %24 = arith.mulf %19, %23 : vector<7x7xf32>
    %25 = arith.truncf %24 : vector<7x7xf32> to vector<7x7xbf16>
    %cst_14 = arith.constant dense<0.000000e+00> : vector<7x8xf32>
    %26 = tpu.matmul %25, %10, %cst_14 {dimension_numbers = #tpu.dot_dimension_numbers<[1], [0], [0], [1], [0, 0, 1, 1], [], []>} : vector<7x7xbf16>, vector<7x8xbf16>, vector<7x8xf32> -> vector<7x8xf32>
    %c0_15 = arith.constant 0 : index
    %c0_16 = arith.constant 0 : index
    %c0_17 = arith.constant 0 : index
    %27 = vector.load %arg5[%c0_15, %c0_16, %c0_17] : memref<1x7x32xf32, #tpu.memory_space<vmem>>, vector<1x7x8xf32>
    %28 = vector.shape_cast %27 : vector<1x7x8xf32> to vector<7x8xf32>
    %29 = vector.shape_cast %26 : vector<7x8xf32> to vector<1x7x8xf32>
    tpu.vector_store %arg5[%c0_15, %c0_16, %c0_17], %29 {strides = array<i32>} : memref<1x7x32xf32, #tpu.memory_space<vmem>>, vector<1x7x8xf32>,
    %30 = vector.extract_strided_slice %1 {offsets = [0, 8], sizes = [7, 8], strides = [1, 1]} : vector<7x32xbf16> to vector<7x8xbf16>
    %31 = vector.extract_strided_slice %3 {offsets = [0, 8], sizes = [7, 8], strides = [1, 1]} : vector<7x32xbf16> to vector<7x8xbf16>
    %32 = vector.extract_strided_slice %5 {offsets = [0, 8], sizes = [7, 8], strides = [1, 1]} : vector<7x32xbf16> to vector<7x8xbf16>
    %cst_18 = arith.constant dense<0.000000e+00> : vector<7x7xf32>
    %33 = tpu.matmul %30, %31, %cst_18 {dimension_numbers = #tpu.dot_dimension_numbers<[1], [1], [0], [0], [0, 0, 1, 0], [], []>} : vector<7x8xbf16>, vector<7x8xbf16>, vector<7x7xf32> -> vector<7x7xf32>
    %cst_19 = arith.constant 0.353553385 : f32
    %34 = vector.broadcast %cst_19 : f32 to vector<7x7xf32>
    %35 = arith.mulf %33, %34 : vector<7x7xf32>
    %36 = arith.addf %35, %7 : vector<7x7xf32>
    %cst_20 = arith.constant dense<0xFF800000> : vector<7xf32>
    %37 = vector.multi_reduction <maximumf>, %36, %cst_20 [1] : vector<7x7xf32> to vector<7xf32>
    %38 = vector.shape_cast %37 : vector<7xf32> to vector<7x1xf32>
    %39 = vector.broadcast %38 : vector<7x1xf32> to vector<7x7xf32>
    %40 = arith.subf %36, %39 : vector<7x7xf32>
    %41 = math.exp %40 : vector<7x7xf32>
    %cst_21 = arith.constant dense<0.000000e+00> : vector<7xf32>
    %42 = vector.multi_reduction <add>, %41, %cst_21 [1] : vector<7x7xf32> to vector<7xf32>
    %43 = vector.shape_cast %42 : vector<7xf32> to vector<7x1xf32>
    %44 = tpu.reciprocal %43 {approx = true} : vector<7x1xf32> -> vector<7x1xf32>
    %45 = vector.broadcast %44 : vector<7x1xf32> to vector<7x7xf32>
    %46 = arith.mulf %41, %45 : vector<7x7xf32>
    %47 = arith.truncf %46 : vector<7x7xf32> to vector<7x7xbf16>
    %cst_22 = arith.constant dense<0.000000e+00> : vector<7x8xf32>
    %48 = tpu.matmul %47, %32, %cst_22 {dimension_numbers = #tpu.dot_dimension_numbers<[1], [0], [0], [1], [0, 0, 1, 1], [], []>} : vector<7x7xbf16>, vector<7x8xbf16>, vector<7x8xf32> -> vector<7x8xf32>
    %c0_23 = arith.constant 0 : index
    %c0_24 = arith.constant 0 : index
    %c8 = arith.constant 8 : index
    %49 = vector.load %arg5[%c0_23, %c0_24, %c8] : memref<1x7x32xf32, #tpu.memory_space<vmem>>, vector<1x7x8xf32>
    %50 = vector.shape_cast %49 : vector<1x7x8xf32> to vector<7x8xf32>
    %51 = vector.shape_cast %48 : vector<7x8xf32> to vector<1x7x8xf32>
    tpu.vector_store %arg5[%c0_23, %c0_24, %c8], %51 {strides = array<i32>} : memref<1x7x32xf32, #tpu.memory_space<vmem>>, vector<1x7x8xf32>,
    %52 = vector.extract_strided_slice %1 {offsets = [0, 16], sizes = [7, 8], strides = [1, 1]} : vector<7x32xbf16> to vector<7x8xbf16>
    %53 = vector.extract_strided_slice %3 {offsets = [0, 16], sizes = [7, 8], strides = [1, 1]} : vector<7x32xbf16> to vector<7x8xbf16>
    %54 = vector.extract_strided_slice %5 {offsets = [0, 16], sizes = [7, 8], strides = [1, 1]} : vector<7x32xbf16> to vector<7x8xbf16>
    %cst_25 = arith.constant dense<0.000000e+00> : vector<7x7xf32>
    %55 = tpu.matmul %52, %53, %cst_25 {dimension_numbers = #tpu.dot_dimension_numbers<[1], [1], [0], [0], [0, 0, 1, 0], [], []>} : vector<7x8xbf16>, vector<7x8xbf16>, vector<7x7xf32> -> vector<7x7xf32>
    %cst_26 = arith.constant 0.353553385 : f32
    %56 = vector.broadcast %cst_26 : f32 to vector<7x7xf32>
    %57 = arith.mulf %55, %56 : vector<7x7xf32>
    %58 = arith.addf %57, %7 : vector<7x7xf32>
    %cst_27 = arith.constant dense<0xFF800000> : vector<7xf32>
    %59 = vector.multi_reduction <maximumf>, %58, %cst_27 [1] : vector<7x7xf32> to vector<7xf32>
    %60 = vector.shape_cast %59 : vector<7xf32> to vector<7x1xf32>
    %61 = vector.broadcast %60 : vector<7x1xf32> to vector<7x7xf32>
    %62 = arith.subf %58, %61 : vector<7x7xf32>
    %63 = math.exp %62 : vector<7x7xf32>
    %cst_28 = arith.constant dense<0.000000e+00> : vector<7xf32>
    %64 = vector.multi_reduction <add>, %63, %cst_28 [1] : vector<7x7xf32> to vector<7xf32>
    %65 = vector.shape_cast %64 : vector<7xf32> to vector<7x1xf32>
    %66 = tpu.reciprocal %65 {approx = true} : vector<7x1xf32> -> vector<7x1xf32>
    %67 = vector.broadcast %66 : vector<7x1xf32> to vector<7x7xf32>
    %68 = arith.mulf %63, %67 : vector<7x7xf32>
    %69 = arith.truncf %68 : vector<7x7xf32> to vector<7x7xbf16>
    %cst_29 = arith.constant dense<0.000000e+00> : vector<7x8xf32>
    %70 = tpu.matmul %69, %54, %cst_29 {dimension_numbers = #tpu.dot_dimension_numbers<[1], [0], [0], [1], [0, 0, 1, 1], [], []>} : vector<7x7xbf16>, vector<7x8xbf16>, vector<7x8xf32> -> vector<7x8xf32>
    %c0_30 = arith.constant 0 : index
    %c0_31 = arith.constant 0 : index
    %c16 = arith.constant 16 : index
    %71 = vector.load %arg5[%c0_30, %c0_31, %c16] : memref<1x7x32xf32, #tpu.memory_space<vmem>>, vector<1x7x8xf32>
    %72 = vector.shape_cast %71 : vector<1x7x8xf32> to vector<7x8xf32>
    %73 = vector.shape_cast %70 : vector<7x8xf32> to vector<1x7x8xf32>
    tpu.vector_store %arg5[%c0_30, %c0_31, %c16], %73 {strides = array<i32>} : memref<1x7x32xf32, #tpu.memory_space<vmem>>, vector<1x7x8xf32>,
    %74 = vector.extract_strided_slice %1 {offsets = [0, 24], sizes = [7, 8], strides = [1, 1]} : vector<7x32xbf16> to vector<7x8xbf16>
    %75 = vector.extract_strided_slice %3 {offsets = [0, 24], sizes = [7, 8], strides = [1, 1]} : vector<7x32xbf16> to vector<7x8xbf16>
    %76 = vector.extract_strided_slice %5 {offsets = [0, 24], sizes = [7, 8], strides = [1, 1]} : vector<7x32xbf16> to vector<7x8xbf16>
    %cst_32 = arith.constant dense<0.000000e+00> : vector<7x7xf32>
    %77 = tpu.matmul %74, %75, %cst_32 {dimension_numbers = #tpu.dot_dimension_numbers<[1], [1], [0], [0], [0, 0, 1, 0], [], []>} : vector<7x8xbf16>, vector<7x8xbf16>, vector<7x7xf32> -> vector<7x7xf32>
    %cst_33 = arith.constant 0.353553385 : f32
    %78 = vector.broadcast %cst_33 : f32 to vector<7x7xf32>
    %79 = arith.mulf %77, %78 : vector<7x7xf32>
    %80 = arith.addf %79, %7 : vector<7x7xf32>
    %cst_34 = arith.constant dense<0xFF800000> : vector<7xf32>
    %81 = vector.multi_reduction <maximumf>, %80, %cst_34 [1] : vector<7x7xf32> to vector<7xf32>
    %82 = vector.shape_cast %81 : vector<7xf32> to vector<7x1xf32>
    %83 = vector.broadcast %82 : vector<7x1xf32> to vector<7x7xf32>
    %84 = arith.subf %80, %83 : vector<7x7xf32>
    %85 = math.exp %84 : vector<7x7xf32>
    %cst_35 = arith.constant dense<0.000000e+00> : vector<7xf32>
    %86 = vector.multi_reduction <add>, %85, %cst_35 [1] : vector<7x7xf32> to vector<7xf32>
    %87 = vector.shape_cast %86 : vector<7xf32> to vector<7x1xf32>
    %88 = tpu.reciprocal %87 {approx = true} : vector<7x1xf32> -> vector<7x1xf32>
    %89 = vector.broadcast %88 : vector<7x1xf32> to vector<7x7xf32>
    %90 = arith.mulf %85, %89 : vector<7x7xf32>
    %91 = arith.truncf %90 : vector<7x7xf32> to vector<7x7xbf16>
    %cst_36 = arith.constant dense<0.000000e+00> : vector<7x8xf32>
    %92 = tpu.matmul %91, %76, %cst_36 {dimension_numbers = #tpu.dot_dimension_numbers<[1], [0], [0], [1], [0, 0, 1, 1], [], []>} : vector<7x7xbf16>, vector<7x8xbf16>, vector<7x8xf32> -> vector<7x8xf32>
    %c0_37 = arith.constant 0 : index
    %c0_38 = arith.constant 0 : index
    %c24 = arith.constant 24 : index
    %93 = vector.load %arg5[%c0_37, %c0_38, %c24] : memref<1x7x32xf32, #tpu.memory_space<vmem>>, vector<1x7x8xf32>
    %94 = vector.shape_cast %93 : vector<1x7x8xf32> to vector<7x8xf32>
    %95 = vector.shape_cast %92 : vector<7x8xf32> to vector<1x7x8xf32>
    tpu.vector_store %arg5[%c0_37, %c0_38, %c24], %95 {strides = array<i32>} : memref<1x7x32xf32, #tpu.memory_space<vmem>>, vector<1x7x8xf32>,
    return
  }
  func.func @transform_0(%arg0: i32) -> (i32, i32, i32) {
    %c0_i32 = arith.constant 0 : i32
    %c0_i32_0 = arith.constant 0 : i32
    %c0_i32_1 = arith.constant 0 : i32
    return %arg0, %c0_i32, %c0_i32_0 : i32, i32, i32
  }
  func.func @transform_1(%arg0: i32) -> (i32, i32, i32) {
    %c0_i32 = arith.constant 0 : i32
    %c0_i32_0 = arith.constant 0 : i32
    %c0_i32_1 = arith.constant 0 : i32
    return %arg0, %c0_i32, %c0_i32_0 : i32, i32, i32
  }
  func.func @transform_2(%arg0: i32) -> (i32, i32, i32) {
    %c0_i32 = arith.constant 0 : i32
    %c0_i32_0 = arith.constant 0 : i32
    %c0_i32_1 = arith.constant 0 : i32
    return %arg0, %c0_i32, %c0_i32_0 : i32, i32, i32
  }
  func.func @transform_3(%arg0: i32) -> (i32, i32, i32) {
    %c0_i32 = arith.constant 0 : i32
    %c0_i32_0 = arith.constant 0 : i32
    %c0_i32_1 = arith.constant 0 : i32
    return %arg0, %c0_i32, %c0_i32_0 : i32, i32, i32
  }
  func.func @transform_4(%arg0: i32) -> (i32, i32, i32) {
    %c0_i32 = arith.constant 0 : i32
    %c0_i32_0 = arith.constant 0 : i32
    %c0_i32_1 = arith.constant 0 : i32
    return %arg0, %c0_i32, %c0_i32_0 : i32, i32, i32
  }
}

module attributes {stable_mosaic.version = 11 : i64} {
  func.func @_linear_split_kernel(%arg0: i32, %arg1: memref<14x32xbf16, #tpu.memory_space<vmem>>, %arg2: memref<32x32xbf16, #tpu.memory_space<vmem>>, %arg3: memref<1x32xf32, #tpu.memory_space<vmem>>, %arg4: memref<14x32xbf16, #tpu.memory_space<vmem>>) attributes {dimension_semantics = [#tpu.dimension_semantics<parallel>], iteration_bounds = array<i64: 1>, scalar_prefetch = 0 : i64, scratch_operands = 0 : i64, tpu.core_type = #tpu.core_type<tc>, window_params = [{transform_indices = @transform_0, window_bounds = array<i64: 14, 32>}, {pipeline_mode = #tpu.pipeline_mode<synchronous>, transform_indices = @transform_1, window_bounds = array<i64: 32, 32>}, {pipeline_mode = #tpu.pipeline_mode<synchronous>, transform_indices = @transform_2, window_bounds = array<i64: 1, 32>}, {transform_indices = @transform_3, window_bounds = array<i64: 14, 32>}]} {
    %c0 = arith.constant 0 : index
    %c0_0 = arith.constant 0 : index
    %0 = vector.load %arg1[%c0, %c0_0] : memref<14x32xbf16, #tpu.memory_space<vmem>>, vector<14x32xbf16>
    %c0_1 = arith.constant 0 : index
    %c0_2 = arith.constant 0 : index
    %1 = vector.load %arg2[%c0_1, %c0_2] : memref<32x32xbf16, #tpu.memory_space<vmem>>, vector<32x32xbf16>
    %cst = arith.constant dense<0.000000e+00> : vector<14x32xf32>
    %2 = tpu.matmul %0, %1, %cst {dimension_numbers = #tpu.dot_dimension_numbers<[1], [0], [0], [1], [0, 0, 1, 1], [], []>} : vector<14x32xbf16>, vector<32x32xbf16>, vector<14x32xf32> -> vector<14x32xf32>
    %c0_3 = arith.constant 0 : index
    %c0_4 = arith.constant 0 : index
    %3 = vector.load %arg3[%c0_3, %c0_4] : memref<1x32xf32, #tpu.memory_space<vmem>>, vector<1x32xf32>
    %4 = vector.broadcast %3 : vector<1x32xf32> to vector<14x32xf32>
    %5 = arith.addf %2, %4 : vector<14x32xf32>
    %6 = arith.truncf %5 : vector<14x32xf32> to vector<14x32xbf16>
    %c0_5 = arith.constant 0 : index
    %c0_6 = arith.constant 0 : index
    %7 = vector.load %arg4[%c0_5, %c0_6] : memref<14x32xbf16, #tpu.memory_space<vmem>>, vector<14x32xbf16>
    tpu.vector_store %arg4[%c0_5, %c0_6], %6 {strides = array<i32>} : memref<14x32xbf16, #tpu.memory_space<vmem>>, vector<14x32xbf16>,
    return
  }
  func.func @transform_0(%arg0: i32) -> (i32, i32) {
    %c0_i32 = arith.constant 0 : i32
    %c0_i32_0 = arith.constant 0 : i32
    return %arg0, %c0_i32 : i32, i32
  }
  func.func @transform_1(%arg0: i32) -> (i32, i32) {
    %c0_i32 = arith.constant 0 : i32
    %c0_i32_0 = arith.constant 0 : i32
    %c0_i32_1 = arith.constant 0 : i32
    return %c0_i32, %c0_i32_0 : i32, i32
  }
  func.func @transform_2(%arg0: i32) -> (i32, i32) {
    %c0_i32 = arith.constant 0 : i32
    %c0_i32_0 = arith.constant 0 : i32
    %c0_i32_1 = arith.constant 0 : i32
    return %c0_i32, %c0_i32_0 : i32, i32
  }
  func.func @transform_3(%arg0: i32) -> (i32, i32) {
    %c0_i32 = arith.constant 0 : i32
    %c0_i32_0 = arith.constant 0 : i32
    return %arg0, %c0_i32 : i32, i32
  }
}

module attributes {stable_mosaic.version = 11 : i64} {
  func.func @_linear_add_ln_kernel(%arg0: i32, %arg1: memref<14x32xbf16, #tpu.memory_space<vmem>>, %arg2: memref<32x32xbf16, #tpu.memory_space<vmem>>, %arg3: memref<1x32xf32, #tpu.memory_space<vmem>>, %arg4: memref<14x32xf32, #tpu.memory_space<vmem>>, %arg5: memref<1x32xf32, #tpu.memory_space<vmem>>, %arg6: memref<1x32xf32, #tpu.memory_space<vmem>>, %arg7: memref<14x1xf32, #tpu.memory_space<vmem>>, %arg8: memref<14x32xf32, #tpu.memory_space<vmem>>) attributes {dimension_semantics = [#tpu.dimension_semantics<parallel>], iteration_bounds = array<i64: 1>, scalar_prefetch = 0 : i64, scratch_operands = 0 : i64, tpu.core_type = #tpu.core_type<tc>, window_params = [{transform_indices = @transform_0, window_bounds = array<i64: 14, 32>}, {pipeline_mode = #tpu.pipeline_mode<synchronous>, transform_indices = @transform_1, window_bounds = array<i64: 32, 32>}, {pipeline_mode = #tpu.pipeline_mode<synchronous>, transform_indices = @transform_2, window_bounds = array<i64: 1, 32>}, {transform_indices = @transform_3, window_bounds = array<i64: 14, 32>}, {pipeline_mode = #tpu.pipeline_mode<synchronous>, transform_indices = @transform_4, window_bounds = array<i64: 1, 32>}, {pipeline_mode = #tpu.pipeline_mode<synchronous>, transform_indices = @transform_5, window_bounds = array<i64: 1, 32>}, {transform_indices = @transform_6, window_bounds = array<i64: 14, 1>}, {transform_indices = @transform_7, window_bounds = array<i64: 14, 32>}]} {
    %c0 = arith.constant 0 : index
    %c0_0 = arith.constant 0 : index
    %0 = vector.load %arg1[%c0, %c0_0] : memref<14x32xbf16, #tpu.memory_space<vmem>>, vector<14x32xbf16>
    %c0_1 = arith.constant 0 : index
    %c0_2 = arith.constant 0 : index
    %1 = vector.load %arg2[%c0_1, %c0_2] : memref<32x32xbf16, #tpu.memory_space<vmem>>, vector<32x32xbf16>
    %cst = arith.constant dense<0.000000e+00> : vector<14x32xf32>
    %2 = tpu.matmul %0, %1, %cst {dimension_numbers = #tpu.dot_dimension_numbers<[1], [0], [0], [1], [0, 0, 1, 1], [], []>} : vector<14x32xbf16>, vector<32x32xbf16>, vector<14x32xf32> -> vector<14x32xf32>
    %c0_3 = arith.constant 0 : index
    %c0_4 = arith.constant 0 : index
    %3 = vector.load %arg3[%c0_3, %c0_4] : memref<1x32xf32, #tpu.memory_space<vmem>>, vector<1x32xf32>
    %4 = vector.broadcast %3 : vector<1x32xf32> to vector<14x32xf32>
    %5 = arith.addf %2, %4 : vector<14x32xf32>
    %c0_5 = arith.constant 0 : index
    %c0_6 = arith.constant 0 : index
    %6 = vector.load %arg4[%c0_5, %c0_6] : memref<14x32xf32, #tpu.memory_space<vmem>>, vector<14x32xf32>
    %7 = arith.addf %5, %6 : vector<14x32xf32>
    %cst_7 = arith.constant dense<0.000000e+00> : vector<14xf32>
    %8 = vector.multi_reduction <add>, %7, %cst_7 [1] : vector<14x32xf32> to vector<14xf32>
    %9 = vector.shape_cast %8 : vector<14xf32> to vector<14x1xf32>
    %cst_8 = arith.constant 3.200000e+01 : f32
    %10 = vector.broadcast %cst_8 : f32 to vector<14x1xf32>
    %11 = arith.divf %9, %10 : vector<14x1xf32>
    %12 = vector.broadcast %11 : vector<14x1xf32> to vector<14x32xf32>
    %13 = arith.subf %7, %12 : vector<14x32xf32>
    %14 = arith.mulf %13, %13 : vector<14x32xf32>
    %cst_9 = arith.constant dense<0.000000e+00> : vector<14xf32>
    %15 = vector.multi_reduction <add>, %14, %cst_9 [1] : vector<14x32xf32> to vector<14xf32>
    %16 = vector.shape_cast %15 : vector<14xf32> to vector<14x1xf32>
    %cst_10 = arith.constant 3.200000e+01 : f32
    %17 = vector.broadcast %cst_10 : f32 to vector<14x1xf32>
    %18 = arith.divf %16, %17 : vector<14x1xf32>
    %19 = vector.broadcast %11 : vector<14x1xf32> to vector<14x32xf32>
    %20 = arith.subf %7, %19 : vector<14x32xf32>
    %cst_11 = arith.constant 9.99999974E-6 : f32
    %21 = vector.broadcast %cst_11 : f32 to vector<14x1xf32>
    %22 = arith.addf %18, %21 : vector<14x1xf32>
    %23 = math.rsqrt %22 : vector<14x1xf32>
    %24 = vector.broadcast %23 : vector<14x1xf32> to vector<14x32xf32>
    %25 = arith.mulf %20, %24 : vector<14x32xf32>
    %c0_12 = arith.constant 0 : index
    %c0_13 = arith.constant 0 : index
    %26 = vector.load %arg5[%c0_12, %c0_13] : memref<1x32xf32, #tpu.memory_space<vmem>>, vector<1x32xf32>
    %27 = vector.broadcast %26 : vector<1x32xf32> to vector<14x32xf32>
    %28 = arith.mulf %25, %27 : vector<14x32xf32>
    %c0_14 = arith.constant 0 : index
    %c0_15 = arith.constant 0 : index
    %29 = vector.load %arg6[%c0_14, %c0_15] : memref<1x32xf32, #tpu.memory_space<vmem>>, vector<1x32xf32>
    %30 = vector.broadcast %29 : vector<1x32xf32> to vector<14x32xf32>
    %31 = arith.addf %28, %30 : vector<14x32xf32>
    %c0_16 = arith.constant 0 : index
    %c0_17 = arith.constant 0 : index
    %32 = vector.load %arg7[%c0_16, %c0_17] : memref<14x1xf32, #tpu.memory_space<vmem>>, vector<14x1xf32>
    %33 = vector.broadcast %32 : vector<14x1xf32> to vector<14x32xf32>
    %34 = arith.mulf %31, %33 : vector<14x32xf32>
    %c0_18 = arith.constant 0 : index
    %c0_19 = arith.constant 0 : index
    %35 = vector.load %arg8[%c0_18, %c0_19] : memref<14x32xf32, #tpu.memory_space<vmem>>, vector<14x32xf32>
    tpu.vector_store %arg8[%c0_18, %c0_19], %34 {strides = array<i32>} : memref<14x32xf32, #tpu.memory_space<vmem>>, vector<14x32xf32>,
    return
  }
  func.func @transform_0(%arg0: i32) -> (i32, i32) {
    %c0_i32 = arith.constant 0 : i32
    %c0_i32_0 = arith.constant 0 : i32
    return %arg0, %c0_i32 : i32, i32
  }
  func.func @transform_1(%arg0: i32) -> (i32, i32) {
    %c0_i32 = arith.constant 0 : i32
    %c0_i32_0 = arith.constant 0 : i32
    %c0_i32_1 = arith.constant 0 : i32
    return %c0_i32, %c0_i32_0 : i32, i32
  }
  func.func @transform_2(%arg0: i32) -> (i32, i32) {
    %c0_i32 = arith.constant 0 : i32
    %c0_i32_0 = arith.constant 0 : i32
    %c0_i32_1 = arith.constant 0 : i32
    return %c0_i32, %c0_i32_0 : i32, i32
  }
  func.func @transform_3(%arg0: i32) -> (i32, i32) {
    %c0_i32 = arith.constant 0 : i32
    %c0_i32_0 = arith.constant 0 : i32
    return %arg0, %c0_i32 : i32, i32
  }
  func.func @transform_4(%arg0: i32) -> (i32, i32) {
    %c0_i32 = arith.constant 0 : i32
    %c0_i32_0 = arith.constant 0 : i32
    %c0_i32_1 = arith.constant 0 : i32
    return %c0_i32, %c0_i32_0 : i32, i32
  }
  func.func @transform_5(%arg0: i32) -> (i32, i32) {
    %c0_i32 = arith.constant 0 : i32
    %c0_i32_0 = arith.constant 0 : i32
    %c0_i32_1 = arith.constant 0 : i32
    return %c0_i32, %c0_i32_0 : i32, i32
  }
  func.func @transform_6(%arg0: i32) -> (i32, i32) {
    %c0_i32 = arith.constant 0 : i32
    %c0_i32_0 = arith.constant 0 : i32
    return %arg0, %c0_i32 : i32, i32
  }
  func.func @transform_7(%arg0: i32) -> (i32, i32) {
    %c0_i32 = arith.constant 0 : i32
    %c0_i32_0 = arith.constant 0 : i32
    return %arg0, %c0_i32 : i32, i32
  }
}

module attributes {stable_mosaic.version = 11 : i64} {
  func.func @_mha_attention_kernel(%arg0: i32, %arg1: memref<1x7x32xbf16, #tpu.memory_space<vmem>>, %arg2: memref<1x8x32xbf16, #tpu.memory_space<vmem>>, %arg3: memref<1x8x32xbf16, #tpu.memory_space<vmem>>, %arg4: memref<1x7x8xf32, #tpu.memory_space<vmem>>, %arg5: memref<1x7x32xf32, #tpu.memory_space<vmem>>) attributes {dimension_semantics = [#tpu.dimension_semantics<parallel>], iteration_bounds = array<i64: 2>, scalar_prefetch = 0 : i64, scratch_operands = 0 : i64, tpu.core_type = #tpu.core_type<tc>, window_params = [{transform_indices = @transform_0, window_bounds = array<i64: 1, 7, 32>}, {transform_indices = @transform_1, window_bounds = array<i64: 1, 8, 32>}, {transform_indices = @transform_2, window_bounds = array<i64: 1, 8, 32>}, {transform_indices = @transform_3, window_bounds = array<i64: 1, 7, 8>}, {transform_indices = @transform_4, window_bounds = array<i64: 1, 7, 32>}]} {
    %c0 = arith.constant 0 : index
    %c0_0 = arith.constant 0 : index
    %c0_1 = arith.constant 0 : index
    %0 = vector.load %arg1[%c0, %c0_0, %c0_1] : memref<1x7x32xbf16, #tpu.memory_space<vmem>>, vector<1x7x32xbf16>
    %1 = vector.shape_cast %0 : vector<1x7x32xbf16> to vector<7x32xbf16>
    %c0_2 = arith.constant 0 : index
    %c0_3 = arith.constant 0 : index
    %c0_4 = arith.constant 0 : index
    %2 = vector.load %arg2[%c0_2, %c0_3, %c0_4] : memref<1x8x32xbf16, #tpu.memory_space<vmem>>, vector<1x8x32xbf16>
    %3 = vector.shape_cast %2 : vector<1x8x32xbf16> to vector<8x32xbf16>
    %c0_5 = arith.constant 0 : index
    %c0_6 = arith.constant 0 : index
    %c0_7 = arith.constant 0 : index
    %4 = vector.load %arg3[%c0_5, %c0_6, %c0_7] : memref<1x8x32xbf16, #tpu.memory_space<vmem>>, vector<1x8x32xbf16>
    %5 = vector.shape_cast %4 : vector<1x8x32xbf16> to vector<8x32xbf16>
    %c0_8 = arith.constant 0 : index
    %c0_9 = arith.constant 0 : index
    %c0_10 = arith.constant 0 : index
    %6 = vector.load %arg4[%c0_8, %c0_9, %c0_10] : memref<1x7x8xf32, #tpu.memory_space<vmem>>, vector<1x7x8xf32>
    %7 = vector.shape_cast %6 : vector<1x7x8xf32> to vector<7x8xf32>
    %8 = vector.extract_strided_slice %1 {offsets = [0, 0], sizes = [7, 8], strides = [1, 1]} : vector<7x32xbf16> to vector<7x8xbf16>
    %9 = vector.extract_strided_slice %3 {offsets = [0, 0], sizes = [8, 8], strides = [1, 1]} : vector<8x32xbf16> to vector<8x8xbf16>
    %10 = vector.extract_strided_slice %5 {offsets = [0, 0], sizes = [8, 8], strides = [1, 1]} : vector<8x32xbf16> to vector<8x8xbf16>
    %cst = arith.constant dense<0.000000e+00> : vector<7x8xf32>
    %11 = tpu.matmul %8, %9, %cst {dimension_numbers = #tpu.dot_dimension_numbers<[1], [1], [0], [0], [0, 0, 1, 0], [], []>} : vector<7x8xbf16>, vector<8x8xbf16>, vector<7x8xf32> -> vector<7x8xf32>
    %cst_11 = arith.constant 0.353553385 : f32
    %12 = vector.broadcast %cst_11 : f32 to vector<7x8xf32>
    %13 = arith.mulf %11, %12 : vector<7x8xf32>
    %14 = arith.addf %13, %7 : vector<7x8xf32>
    %cst_12 = arith.constant dense<0xFF800000> : vector<7xf32>
    %15 = vector.multi_reduction <maximumf>, %14, %cst_12 [1] : vector<7x8xf32> to vector<7xf32>
    %16 = vector.shape_cast %15 : vector<7xf32> to vector<7x1xf32>
    %17 = vector.broadcast %16 : vector<7x1xf32> to vector<7x8xf32>
    %18 = arith.subf %14, %17 : vector<7x8xf32>
    %19 = math.exp %18 : vector<7x8xf32>
    %cst_13 = arith.constant dense<0.000000e+00> : vector<7xf32>
    %20 = vector.multi_reduction <add>, %19, %cst_13 [1] : vector<7x8xf32> to vector<7xf32>
    %21 = vector.shape_cast %20 : vector<7xf32> to vector<7x1xf32>
    %22 = tpu.reciprocal %21 {approx = true} : vector<7x1xf32> -> vector<7x1xf32>
    %23 = vector.broadcast %22 : vector<7x1xf32> to vector<7x8xf32>
    %24 = arith.mulf %19, %23 : vector<7x8xf32>
    %25 = arith.truncf %24 : vector<7x8xf32> to vector<7x8xbf16>
    %cst_14 = arith.constant dense<0.000000e+00> : vector<7x8xf32>
    %26 = tpu.matmul %25, %10, %cst_14 {dimension_numbers = #tpu.dot_dimension_numbers<[1], [0], [0], [1], [0, 0, 1, 1], [], []>} : vector<7x8xbf16>, vector<8x8xbf16>, vector<7x8xf32> -> vector<7x8xf32>
    %c0_15 = arith.constant 0 : index
    %c0_16 = arith.constant 0 : index
    %c0_17 = arith.constant 0 : index
    %27 = vector.load %arg5[%c0_15, %c0_16, %c0_17] : memref<1x7x32xf32, #tpu.memory_space<vmem>>, vector<1x7x8xf32>
    %28 = vector.shape_cast %27 : vector<1x7x8xf32> to vector<7x8xf32>
    %29 = vector.shape_cast %26 : vector<7x8xf32> to vector<1x7x8xf32>
    tpu.vector_store %arg5[%c0_15, %c0_16, %c0_17], %29 {strides = array<i32>} : memref<1x7x32xf32, #tpu.memory_space<vmem>>, vector<1x7x8xf32>,
    %30 = vector.extract_strided_slice %1 {offsets = [0, 8], sizes = [7, 8], strides = [1, 1]} : vector<7x32xbf16> to vector<7x8xbf16>
    %31 = vector.extract_strided_slice %3 {offsets = [0, 8], sizes = [8, 8], strides = [1, 1]} : vector<8x32xbf16> to vector<8x8xbf16>
    %32 = vector.extract_strided_slice %5 {offsets = [0, 8], sizes = [8, 8], strides = [1, 1]} : vector<8x32xbf16> to vector<8x8xbf16>
    %cst_18 = arith.constant dense<0.000000e+00> : vector<7x8xf32>
    %33 = tpu.matmul %30, %31, %cst_18 {dimension_numbers = #tpu.dot_dimension_numbers<[1], [1], [0], [0], [0, 0, 1, 0], [], []>} : vector<7x8xbf16>, vector<8x8xbf16>, vector<7x8xf32> -> vector<7x8xf32>
    %cst_19 = arith.constant 0.353553385 : f32
    %34 = vector.broadcast %cst_19 : f32 to vector<7x8xf32>
    %35 = arith.mulf %33, %34 : vector<7x8xf32>
    %36 = arith.addf %35, %7 : vector<7x8xf32>
    %cst_20 = arith.constant dense<0xFF800000> : vector<7xf32>
    %37 = vector.multi_reduction <maximumf>, %36, %cst_20 [1] : vector<7x8xf32> to vector<7xf32>
    %38 = vector.shape_cast %37 : vector<7xf32> to vector<7x1xf32>
    %39 = vector.broadcast %38 : vector<7x1xf32> to vector<7x8xf32>
    %40 = arith.subf %36, %39 : vector<7x8xf32>
    %41 = math.exp %40 : vector<7x8xf32>
    %cst_21 = arith.constant dense<0.000000e+00> : vector<7xf32>
    %42 = vector.multi_reduction <add>, %41, %cst_21 [1] : vector<7x8xf32> to vector<7xf32>
    %43 = vector.shape_cast %42 : vector<7xf32> to vector<7x1xf32>
    %44 = tpu.reciprocal %43 {approx = true} : vector<7x1xf32> -> vector<7x1xf32>
    %45 = vector.broadcast %44 : vector<7x1xf32> to vector<7x8xf32>
    %46 = arith.mulf %41, %45 : vector<7x8xf32>
    %47 = arith.truncf %46 : vector<7x8xf32> to vector<7x8xbf16>
    %cst_22 = arith.constant dense<0.000000e+00> : vector<7x8xf32>
    %48 = tpu.matmul %47, %32, %cst_22 {dimension_numbers = #tpu.dot_dimension_numbers<[1], [0], [0], [1], [0, 0, 1, 1], [], []>} : vector<7x8xbf16>, vector<8x8xbf16>, vector<7x8xf32> -> vector<7x8xf32>
    %c0_23 = arith.constant 0 : index
    %c0_24 = arith.constant 0 : index
    %c8 = arith.constant 8 : index
    %49 = vector.load %arg5[%c0_23, %c0_24, %c8] : memref<1x7x32xf32, #tpu.memory_space<vmem>>, vector<1x7x8xf32>
    %50 = vector.shape_cast %49 : vector<1x7x8xf32> to vector<7x8xf32>
    %51 = vector.shape_cast %48 : vector<7x8xf32> to vector<1x7x8xf32>
    tpu.vector_store %arg5[%c0_23, %c0_24, %c8], %51 {strides = array<i32>} : memref<1x7x32xf32, #tpu.memory_space<vmem>>, vector<1x7x8xf32>,
    %52 = vector.extract_strided_slice %1 {offsets = [0, 16], sizes = [7, 8], strides = [1, 1]} : vector<7x32xbf16> to vector<7x8xbf16>
    %53 = vector.extract_strided_slice %3 {offsets = [0, 16], sizes = [8, 8], strides = [1, 1]} : vector<8x32xbf16> to vector<8x8xbf16>
    %54 = vector.extract_strided_slice %5 {offsets = [0, 16], sizes = [8, 8], strides = [1, 1]} : vector<8x32xbf16> to vector<8x8xbf16>
    %cst_25 = arith.constant dense<0.000000e+00> : vector<7x8xf32>
    %55 = tpu.matmul %52, %53, %cst_25 {dimension_numbers = #tpu.dot_dimension_numbers<[1], [1], [0], [0], [0, 0, 1, 0], [], []>} : vector<7x8xbf16>, vector<8x8xbf16>, vector<7x8xf32> -> vector<7x8xf32>
    %cst_26 = arith.constant 0.353553385 : f32
    %56 = vector.broadcast %cst_26 : f32 to vector<7x8xf32>
    %57 = arith.mulf %55, %56 : vector<7x8xf32>
    %58 = arith.addf %57, %7 : vector<7x8xf32>
    %cst_27 = arith.constant dense<0xFF800000> : vector<7xf32>
    %59 = vector.multi_reduction <maximumf>, %58, %cst_27 [1] : vector<7x8xf32> to vector<7xf32>
    %60 = vector.shape_cast %59 : vector<7xf32> to vector<7x1xf32>
    %61 = vector.broadcast %60 : vector<7x1xf32> to vector<7x8xf32>
    %62 = arith.subf %58, %61 : vector<7x8xf32>
    %63 = math.exp %62 : vector<7x8xf32>
    %cst_28 = arith.constant dense<0.000000e+00> : vector<7xf32>
    %64 = vector.multi_reduction <add>, %63, %cst_28 [1] : vector<7x8xf32> to vector<7xf32>
    %65 = vector.shape_cast %64 : vector<7xf32> to vector<7x1xf32>
    %66 = tpu.reciprocal %65 {approx = true} : vector<7x1xf32> -> vector<7x1xf32>
    %67 = vector.broadcast %66 : vector<7x1xf32> to vector<7x8xf32>
    %68 = arith.mulf %63, %67 : vector<7x8xf32>
    %69 = arith.truncf %68 : vector<7x8xf32> to vector<7x8xbf16>
    %cst_29 = arith.constant dense<0.000000e+00> : vector<7x8xf32>
    %70 = tpu.matmul %69, %54, %cst_29 {dimension_numbers = #tpu.dot_dimension_numbers<[1], [0], [0], [1], [0, 0, 1, 1], [], []>} : vector<7x8xbf16>, vector<8x8xbf16>, vector<7x8xf32> -> vector<7x8xf32>
    %c0_30 = arith.constant 0 : index
    %c0_31 = arith.constant 0 : index
    %c16 = arith.constant 16 : index
    %71 = vector.load %arg5[%c0_30, %c0_31, %c16] : memref<1x7x32xf32, #tpu.memory_space<vmem>>, vector<1x7x8xf32>
    %72 = vector.shape_cast %71 : vector<1x7x8xf32> to vector<7x8xf32>
    %73 = vector.shape_cast %70 : vector<7x8xf32> to vector<1x7x8xf32>
    tpu.vector_store %arg5[%c0_30, %c0_31, %c16], %73 {strides = array<i32>} : memref<1x7x32xf32, #tpu.memory_space<vmem>>, vector<1x7x8xf32>,
    %74 = vector.extract_strided_slice %1 {offsets = [0, 24], sizes = [7, 8], strides = [1, 1]} : vector<7x32xbf16> to vector<7x8xbf16>
    %75 = vector.extract_strided_slice %3 {offsets = [0, 24], sizes = [8, 8], strides = [1, 1]} : vector<8x32xbf16> to vector<8x8xbf16>
    %76 = vector.extract_strided_slice %5 {offsets = [0, 24], sizes = [8, 8], strides = [1, 1]} : vector<8x32xbf16> to vector<8x8xbf16>
    %cst_32 = arith.constant dense<0.000000e+00> : vector<7x8xf32>
    %77 = tpu.matmul %74, %75, %cst_32 {dimension_numbers = #tpu.dot_dimension_numbers<[1], [1], [0], [0], [0, 0, 1, 0], [], []>} : vector<7x8xbf16>, vector<8x8xbf16>, vector<7x8xf32> -> vector<7x8xf32>
    %cst_33 = arith.constant 0.353553385 : f32
    %78 = vector.broadcast %cst_33 : f32 to vector<7x8xf32>
    %79 = arith.mulf %77, %78 : vector<7x8xf32>
    %80 = arith.addf %79, %7 : vector<7x8xf32>
    %cst_34 = arith.constant dense<0xFF800000> : vector<7xf32>
    %81 = vector.multi_reduction <maximumf>, %80, %cst_34 [1] : vector<7x8xf32> to vector<7xf32>
    %82 = vector.shape_cast %81 : vector<7xf32> to vector<7x1xf32>
    %83 = vector.broadcast %82 : vector<7x1xf32> to vector<7x8xf32>
    %84 = arith.subf %80, %83 : vector<7x8xf32>
    %85 = math.exp %84 : vector<7x8xf32>
    %cst_35 = arith.constant dense<0.000000e+00> : vector<7xf32>
    %86 = vector.multi_reduction <add>, %85, %cst_35 [1] : vector<7x8xf32> to vector<7xf32>
    %87 = vector.shape_cast %86 : vector<7xf32> to vector<7x1xf32>
    %88 = tpu.reciprocal %87 {approx = true} : vector<7x1xf32> -> vector<7x1xf32>
    %89 = vector.broadcast %88 : vector<7x1xf32> to vector<7x8xf32>
    %90 = arith.mulf %85, %89 : vector<7x8xf32>
    %91 = arith.truncf %90 : vector<7x8xf32> to vector<7x8xbf16>
    %cst_36 = arith.constant dense<0.000000e+00> : vector<7x8xf32>
    %92 = tpu.matmul %91, %76, %cst_36 {dimension_numbers = #tpu.dot_dimension_numbers<[1], [0], [0], [1], [0, 0, 1, 1], [], []>} : vector<7x8xbf16>, vector<8x8xbf16>, vector<7x8xf32> -> vector<7x8xf32>
    %c0_37 = arith.constant 0 : index
    %c0_38 = arith.constant 0 : index
    %c24 = arith.constant 24 : index
    %93 = vector.load %arg5[%c0_37, %c0_38, %c24] : memref<1x7x32xf32, #tpu.memory_space<vmem>>, vector<1x7x8xf32>
    %94 = vector.shape_cast %93 : vector<1x7x8xf32> to vector<7x8xf32>
    %95 = vector.shape_cast %92 : vector<7x8xf32> to vector<1x7x8xf32>
    tpu.vector_store %arg5[%c0_37, %c0_38, %c24], %95 {strides = array<i32>} : memref<1x7x32xf32, #tpu.memory_space<vmem>>, vector<1x7x8xf32>,
    return
  }
  func.func @transform_0(%arg0: i32) -> (i32, i32, i32) {
    %c0_i32 = arith.constant 0 : i32
    %c0_i32_0 = arith.constant 0 : i32
    %c0_i32_1 = arith.constant 0 : i32
    return %arg0, %c0_i32, %c0_i32_0 : i32, i32, i32
  }
  func.func @transform_1(%arg0: i32) -> (i32, i32, i32) {
    %c0_i32 = arith.constant 0 : i32
    %c0_i32_0 = arith.constant 0 : i32
    %c0_i32_1 = arith.constant 0 : i32
    return %arg0, %c0_i32, %c0_i32_0 : i32, i32, i32
  }
  func.func @transform_2(%arg0: i32) -> (i32, i32, i32) {
    %c0_i32 = arith.constant 0 : i32
    %c0_i32_0 = arith.constant 0 : i32
    %c0_i32_1 = arith.constant 0 : i32
    return %arg0, %c0_i32, %c0_i32_0 : i32, i32, i32
  }
  func.func @transform_3(%arg0: i32) -> (i32, i32, i32) {
    %c0_i32 = arith.constant 0 : i32
    %c0_i32_0 = arith.constant 0 : i32
    %c0_i32_1 = arith.constant 0 : i32
    return %arg0, %c0_i32, %c0_i32_0 : i32, i32, i32
  }
  func.func @transform_4(%arg0: i32) -> (i32, i32, i32) {
    %c0_i32 = arith.constant 0 : i32
    %c0_i32_0 = arith.constant 0 : i32
    %c0_i32_1 = arith.constant 0 : i32
    return %arg0, %c0_i32, %c0_i32_0 : i32, i32, i32
  }
}

module attributes {stable_mosaic.version = 11 : i64} {
  func.func @_ffn_add_ln_kernel(%arg0: i32, %arg1: memref<14x32xbf16, #tpu.memory_space<vmem>>, %arg2: memref<32x64xbf16, #tpu.memory_space<vmem>>, %arg3: memref<1x64xf32, #tpu.memory_space<vmem>>, %arg4: memref<64x32xbf16, #tpu.memory_space<vmem>>, %arg5: memref<1x32xf32, #tpu.memory_space<vmem>>, %arg6: memref<14x32xf32, #tpu.memory_space<vmem>>, %arg7: memref<1x32xf32, #tpu.memory_space<vmem>>, %arg8: memref<1x32xf32, #tpu.memory_space<vmem>>, %arg9: memref<14x1xf32, #tpu.memory_space<vmem>>, %arg10: memref<14x32xf32, #tpu.memory_space<vmem>>) attributes {dimension_semantics = [#tpu.dimension_semantics<parallel>], iteration_bounds = array<i64: 1>, scalar_prefetch = 0 : i64, scratch_operands = 0 : i64, tpu.core_type = #tpu.core_type<tc>, window_params = [{transform_indices = @transform_0, window_bounds = array<i64: 14, 32>}, {pipeline_mode = #tpu.pipeline_mode<synchronous>, transform_indices = @transform_1, window_bounds = array<i64: 32, 64>}, {pipeline_mode = #tpu.pipeline_mode<synchronous>, transform_indices = @transform_2, window_bounds = array<i64: 1, 64>}, {pipeline_mode = #tpu.pipeline_mode<synchronous>, transform_indices = @transform_3, window_bounds = array<i64: 64, 32>}, {pipeline_mode = #tpu.pipeline_mode<synchronous>, transform_indices = @transform_4, window_bounds = array<i64: 1, 32>}, {transform_indices = @transform_5, window_bounds = array<i64: 14, 32>}, {pipeline_mode = #tpu.pipeline_mode<synchronous>, transform_indices = @transform_6, window_bounds = array<i64: 1, 32>}, {pipeline_mode = #tpu.pipeline_mode<synchronous>, transform_indices = @transform_7, window_bounds = array<i64: 1, 32>}, {transform_indices = @transform_8, window_bounds = array<i64: 14, 1>}, {transform_indices = @transform_9, window_bounds = array<i64: 14, 32>}]} {
    %c0 = arith.constant 0 : index
    %c0_0 = arith.constant 0 : index
    %0 = vector.load %arg1[%c0, %c0_0] : memref<14x32xbf16, #tpu.memory_space<vmem>>, vector<14x32xbf16>
    %c0_1 = arith.constant 0 : index
    %c0_2 = arith.constant 0 : index
    %1 = vector.load %arg2[%c0_1, %c0_2] : memref<32x64xbf16, #tpu.memory_space<vmem>>, vector<32x64xbf16>
    %cst = arith.constant dense<0.000000e+00> : vector<14x64xf32>
    %2 = tpu.matmul %0, %1, %cst {dimension_numbers = #tpu.dot_dimension_numbers<[1], [0], [0], [1], [0, 0, 1, 1], [], []>} : vector<14x32xbf16>, vector<32x64xbf16>, vector<14x64xf32> -> vector<14x64xf32>
    %c0_3 = arith.constant 0 : index
    %c0_4 = arith.constant 0 : index
    %3 = vector.load %arg3[%c0_3, %c0_4] : memref<1x64xf32, #tpu.memory_space<vmem>>, vector<1x64xf32>
    %4 = vector.broadcast %3 : vector<1x64xf32> to vector<14x64xf32>
    %5 = arith.addf %2, %4 : vector<14x64xf32>
    %cst_5 = arith.constant 0.000000e+00 : f32
    %6 = vector.broadcast %cst_5 : f32 to vector<14x64xf32>
    %7 = arith.maximumf %5, %6 : vector<14x64xf32>
    %8 = arith.truncf %7 : vector<14x64xf32> to vector<14x64xbf16>
    %c0_6 = arith.constant 0 : index
    %c0_7 = arith.constant 0 : index
    %9 = vector.load %arg4[%c0_6, %c0_7] : memref<64x32xbf16, #tpu.memory_space<vmem>>, vector<64x32xbf16>
    %cst_8 = arith.constant dense<0.000000e+00> : vector<14x32xf32>
    %10 = tpu.matmul %8, %9, %cst_8 {dimension_numbers = #tpu.dot_dimension_numbers<[1], [0], [0], [1], [0, 0, 1, 1], [], []>} : vector<14x64xbf16>, vector<64x32xbf16>, vector<14x32xf32> -> vector<14x32xf32>
    %c0_9 = arith.constant 0 : index
    %c0_10 = arith.constant 0 : index
    %11 = vector.load %arg5[%c0_9, %c0_10] : memref<1x32xf32, #tpu.memory_space<vmem>>, vector<1x32xf32>
    %12 = vector.broadcast %11 : vector<1x32xf32> to vector<14x32xf32>
    %13 = arith.addf %10, %12 : vector<14x32xf32>
    %c0_11 = arith.constant 0 : index
    %c0_12 = arith.constant 0 : index
    %14 = vector.load %arg6[%c0_11, %c0_12] : memref<14x32xf32, #tpu.memory_space<vmem>>, vector<14x32xf32>
    %15 = arith.addf %13, %14 : vector<14x32xf32>
    %cst_13 = arith.constant dense<0.000000e+00> : vector<14xf32>
    %16 = vector.multi_reduction <add>, %15, %cst_13 [1] : vector<14x32xf32> to vector<14xf32>
    %17 = vector.shape_cast %16 : vector<14xf32> to vector<14x1xf32>
    %cst_14 = arith.constant 3.200000e+01 : f32
    %18 = vector.broadcast %cst_14 : f32 to vector<14x1xf32>
    %19 = arith.divf %17, %18 : vector<14x1xf32>
    %20 = vector.broadcast %19 : vector<14x1xf32> to vector<14x32xf32>
    %21 = arith.subf %15, %20 : vector<14x32xf32>
    %22 = arith.mulf %21, %21 : vector<14x32xf32>
    %cst_15 = arith.constant dense<0.000000e+00> : vector<14xf32>
    %23 = vector.multi_reduction <add>, %22, %cst_15 [1] : vector<14x32xf32> to vector<14xf32>
    %24 = vector.shape_cast %23 : vector<14xf32> to vector<14x1xf32>
    %cst_16 = arith.constant 3.200000e+01 : f32
    %25 = vector.broadcast %cst_16 : f32 to vector<14x1xf32>
    %26 = arith.divf %24, %25 : vector<14x1xf32>
    %27 = vector.broadcast %19 : vector<14x1xf32> to vector<14x32xf32>
    %28 = arith.subf %15, %27 : vector<14x32xf32>
    %cst_17 = arith.constant 9.99999974E-6 : f32
    %29 = vector.broadcast %cst_17 : f32 to vector<14x1xf32>
    %30 = arith.addf %26, %29 : vector<14x1xf32>
    %31 = math.rsqrt %30 : vector<14x1xf32>
    %32 = vector.broadcast %31 : vector<14x1xf32> to vector<14x32xf32>
    %33 = arith.mulf %28, %32 : vector<14x32xf32>
    %c0_18 = arith.constant 0 : index
    %c0_19 = arith.constant 0 : index
    %34 = vector.load %arg7[%c0_18, %c0_19] : memref<1x32xf32, #tpu.memory_space<vmem>>, vector<1x32xf32>
    %35 = vector.broadcast %34 : vector<1x32xf32> to vector<14x32xf32>
    %36 = arith.mulf %33, %35 : vector<14x32xf32>
    %c0_20 = arith.constant 0 : index
    %c0_21 = arith.constant 0 : index
    %37 = vector.load %arg8[%c0_20, %c0_21] : memref<1x32xf32, #tpu.memory_space<vmem>>, vector<1x32xf32>
    %38 = vector.broadcast %37 : vector<1x32xf32> to vector<14x32xf32>
    %39 = arith.addf %36, %38 : vector<14x32xf32>
    %c0_22 = arith.constant 0 : index
    %c0_23 = arith.constant 0 : index
    %40 = vector.load %arg9[%c0_22, %c0_23] : memref<14x1xf32, #tpu.memory_space<vmem>>, vector<14x1xf32>
    %41 = vector.broadcast %40 : vector<14x1xf32> to vector<14x32xf32>
    %42 = arith.mulf %39, %41 : vector<14x32xf32>
    %c0_24 = arith.constant 0 : index
    %c0_25 = arith.constant 0 : index
    %43 = vector.load %arg10[%c0_24, %c0_25] : memref<14x32xf32, #tpu.memory_space<vmem>>, vector<14x32xf32>
    tpu.vector_store %arg10[%c0_24, %c0_25], %42 {strides = array<i32>} : memref<14x32xf32, #tpu.memory_space<vmem>>, vector<14x32xf32>,
    return
  }
  func.func @transform_0(%arg0: i32) -> (i32, i32) {
    %c0_i32 = arith.constant 0 : i32
    %c0_i32_0 = arith.constant 0 : i32
    return %arg0, %c0_i32 : i32, i32
  }
  func.func @transform_1(%arg0: i32) -> (i32, i32) {
    %c0_i32 = arith.constant 0 : i32
    %c0_i32_0 = arith.constant 0 : i32
    %c0_i32_1 = arith.constant 0 : i32
    return %c0_i32, %c0_i32_0 : i32, i32
  }
  func.func @transform_2(%arg0: i32) -> (i32, i32) {
    %c0_i32 = arith.constant 0 : i32
    %c0_i32_0 = arith.constant 0 : i32
    %c0_i32_1 = arith.constant 0 : i32
    return %c0_i32, %c0_i32_0 : i32, i32
  }
  func.func @transform_3(%arg0: i32) -> (i32, i32) {
    %c0_i32 = arith.constant 0 : i32
    %c0_i32_0 = arith.constant 0 : i32
    %c0_i32_1 = arith.constant 0 : i32
    return %c0_i32, %c0_i32_0 : i32, i32
  }
  func.func @transform_4(%arg0: i32) -> (i32, i32) {
    %c0_i32 = arith.constant 0 : i32
    %c0_i32_0 = arith.constant 0 : i32
    %c0_i32_1 = arith.constant 0 : i32
    return %c0_i32, %c0_i32_0 : i32, i32
  }
  func.func @transform_5(%arg0: i32) -> (i32, i32) {
    %c0_i32 = arith.constant 0 : i32
    %c0_i32_0 = arith.constant 0 : i32
    return %arg0, %c0_i32 : i32, i32
  }
  func.func @transform_6(%arg0: i32) -> (i32, i32) {
    %c0_i32 = arith.constant 0 : i32
    %c0_i32_0 = arith.constant 0 : i32
    %c0_i32_1 = arith.constant 0 : i32
    return %c0_i32, %c0_i32_0 : i32, i32
  }
  func.func @transform_7(%arg0: i32) -> (i32, i32) {
    %c0_i32 = arith.constant 0 : i32
    %c0_i32_0 = arith.constant 0 : i32
    %c0_i32_1 = arith.constant 0 : i32
    return %c0_i32, %c0_i32_0 : i32, i32
  }
  func.func @transform_8(%arg0: i32) -> (i32, i32) {
    %c0_i32 = arith.constant 0 : i32
    %c0_i32_0 = arith.constant 0 : i32
    return %arg0, %c0_i32 : i32, i32
  }
  func.func @transform_9(%arg0: i32) -> (i32, i32) {
    %c0_i32 = arith.constant 0 : i32
    %c0_i32_0 = arith.constant 0 : i32
    return %arg0, %c0_i32 : i32, i32
  }
}

module attributes {stable_mosaic.version = 11 : i64} {
  func.func @_vocab_proj_kernel(%arg0: i32, %arg1: i32, %arg2: i32, %arg3: memref<14x32xbf16, #tpu.memory_space<vmem>>, %arg4: memref<48x32xbf16, #tpu.memory_space<vmem>>, %arg5: memref<14x48xf32, #tpu.memory_space<vmem>>, %arg6: memref<14x48xf32, #tpu.memory_space<vmem>>) attributes {dimension_semantics = [#tpu.dimension_semantics<parallel>, #tpu.dimension_semantics<parallel>, #tpu.dimension_semantics<arbitrary>], iteration_bounds = array<i64: 1, 1, 1>, scalar_prefetch = 0 : i64, scratch_operands = 1 : i64, tpu.core_type = #tpu.core_type<tc>, window_params = [{transform_indices = @transform_0, window_bounds = array<i64: 14, 32>}, {transform_indices = @transform_1, window_bounds = array<i64: 48, 32>}, {transform_indices = @transform_2, window_bounds = array<i64: 14, 48>}]} {
    %c0_i32 = arith.constant 0 : i32
    %0 = arith.cmpi eq, %arg2, %c0_i32 : i32
    %1 = arith.extui %0 : i1 to i32
    %c0_i32_0 = arith.constant 0 : i32
    %2 = arith.cmpi ne, %1, %c0_i32_0 : i32
    scf.if %2 {
      %cst_10 = arith.constant 0.000000e+00 : f32
      %12 = vector.broadcast %cst_10 : f32 to vector<14x48xf32>
      %c0_11 = arith.constant 0 : index
      %c0_12 = arith.constant 0 : index
      %13 = vector.load %arg6[%c0_11, %c0_12] : memref<14x48xf32, #tpu.memory_space<vmem>>, vector<14x48xf32>
      tpu.vector_store %arg6[%c0_11, %c0_12], %12 {strides = array<i32>} : memref<14x48xf32, #tpu.memory_space<vmem>>, vector<14x48xf32>,
    } else {
    }
    %c0 = arith.constant 0 : index
    %c0_1 = arith.constant 0 : index
    %3 = vector.load %arg6[%c0, %c0_1] : memref<14x48xf32, #tpu.memory_space<vmem>>, vector<14x48xf32>
    %c0_2 = arith.constant 0 : index
    %c0_3 = arith.constant 0 : index
    %4 = vector.load %arg3[%c0_2, %c0_3] : memref<14x32xbf16, #tpu.memory_space<vmem>>, vector<14x32xbf16>
    %c0_4 = arith.constant 0 : index
    %c0_5 = arith.constant 0 : index
    %5 = vector.load %arg4[%c0_4, %c0_5] : memref<48x32xbf16, #tpu.memory_space<vmem>>, vector<48x32xbf16>
    %cst = arith.constant dense<0.000000e+00> : vector<14x48xf32>
    %6 = tpu.matmul %4, %5, %cst {dimension_numbers = #tpu.dot_dimension_numbers<[1], [1], [0], [0], [0, 0, 1, 0], [], []>} : vector<14x32xbf16>, vector<48x32xbf16>, vector<14x48xf32> -> vector<14x48xf32>
    %7 = arith.addf %3, %6 : vector<14x48xf32>
    %c0_6 = arith.constant 0 : index
    %c0_7 = arith.constant 0 : index
    %8 = vector.load %arg6[%c0_6, %c0_7] : memref<14x48xf32, #tpu.memory_space<vmem>>, vector<14x48xf32>
    tpu.vector_store %arg6[%c0_6, %c0_7], %7 {strides = array<i32>} : memref<14x48xf32, #tpu.memory_space<vmem>>, vector<14x48xf32>,
    %c0_i32_8 = arith.constant 0 : i32
    %9 = arith.cmpi eq, %arg2, %c0_i32_8 : i32
    %10 = arith.extui %9 : i1 to i32
    %c0_i32_9 = arith.constant 0 : i32
    %11 = arith.cmpi ne, %10, %c0_i32_9 : i32
    scf.if %11 {
      %c0_10 = arith.constant 0 : index
      %c0_11 = arith.constant 0 : index
      %12 = vector.load %arg6[%c0_10, %c0_11] : memref<14x48xf32, #tpu.memory_space<vmem>>, vector<14x48xf32>
      %cst_12 = arith.constant 0.176776692 : f32
      %13 = vector.broadcast %cst_12 : f32 to vector<14x48xf32>
      %14 = arith.mulf %12, %13 : vector<14x48xf32>
      %c0_13 = arith.constant 0 : index
      %c0_14 = arith.constant 0 : index
      %15 = vector.load %arg5[%c0_13, %c0_14] : memref<14x48xf32, #tpu.memory_space<vmem>>, vector<14x48xf32>
      tpu.vector_store %arg5[%c0_13, %c0_14], %14 {strides = array<i32>} : memref<14x48xf32, #tpu.memory_space<vmem>>, vector<14x48xf32>,
    } else {
    }
    return
  }
  func.func @transform_0(%arg0: i32, %arg1: i32, %arg2: i32) -> (i32, i32) {
    %c0_i32 = arith.constant 0 : i32
    return %arg0, %arg2 : i32, i32
  }
  func.func @transform_1(%arg0: i32, %arg1: i32, %arg2: i32) -> (i32, i32) {
    %c0_i32 = arith.constant 0 : i32
    return %arg1, %arg2 : i32, i32
  }
  func.func @transform_2(%arg0: i32, %arg1: i32, %arg2: i32) -> (i32, i32) {
    %c0_i32 = arith.constant 0 : i32
    return %arg0, %arg1 : i32, i32
  }
}

</mosaic_0001>

<llo_original>
// kernel: transformer_forward.27
$region0: #{transformer_forward.27}
  #allocation0 [shape = 'u32[]', space=smem, size = 0x4, offset = 0x4, fixed_abs, tag = 'smem constant byte address 0x4 - core index']
  #allocation1 [shape = 'u32[72,128]{1,0:T(1,128)}', space=vmem, size = 0x9000, scoped, tag = 'internal scratch']
  %s0 = inlined_call_operand.vmem [shape: bf16[16,32], index: 0, kind: input, shape index: {}]
  %s1 = inlined_call_operand.vmem [shape: bf16[32,32], index: 1, kind: input, shape index: {}]
  %s2 = inlined_call_operand.vmem [shape: f32[1,32], index: 2, kind: input, shape index: {}]
  %s3 = inlined_call_operand.vmem [shape: f32[16,32], index: 3, kind: input, shape index: {}]
  %s4 = inlined_call_operand.vmem [shape: f32[1,32], index: 4, kind: input, shape index: {}]
  %s5 = inlined_call_operand.vmem [shape: f32[1,32], index: 5, kind: input, shape index: {}]
  %s6 = inlined_call_operand.vmem [shape: f32[16,1], index: 6, kind: input, shape index: {}]
  %s7 = inlined_call_operand.vmem [shape: f32[16,32], index: 7, kind: output, shape index: {}]
  %s8 = sld [smem:[#allocation0]]
  $region38: #{transformer_forward.27} parent=0
    _
  %s10 = ssub.s32 1, %s8
  %s11 = scalar_select 0, %s10, %s8
  // Predicated region
  $region2: #{transformer_forward.27} parent=0 // pred_check
    _
  $region3: #{transformer_forward.27} parent=0 // pred_check_branch
    %13 = sbr.rel (0) target = $region5
  $region4: #{transformer_forward.27} parent=0 // pred_region
    _
  $region5: #{transformer_forward.27} parent=0 // pred_fallthru
    _
  // Predicated region
  $region6: #{transformer_forward.27} parent=0 // pred_check
    _
  $region7: #{transformer_forward.27} parent=0 // pred_check_branch
    %15 = sbr.rel (0) target = $region9
  $region8: #{transformer_forward.27} parent=0 // pred_region
    _
  $region9: #{transformer_forward.27} parent=0 // pred_fallthru
    _
  // Predicated region
  $region10: #{transformer_forward.27} parent=0 // pred_check
    _
  $region11: #{transformer_forward.27} parent=0 // pred_check_branch
    %17 = sbr.rel (0) target = $region13
  $region12: #{transformer_forward.27} parent=0 // pred_region
    _
  $region13: #{transformer_forward.27} parent=0 // pred_fallthru
    _
  // Predicated region
  $region14: #{transformer_forward.27} parent=0 // pred_check
    _
  $region15: #{transformer_forward.27} parent=0 // pred_check_branch
    %19 = sbr.rel (0) target = $region17
  $region16: #{transformer_forward.27} parent=0 // pred_region
    _
  $region17: #{transformer_forward.27} parent=0 // pred_fallthru
    _
  // Predicated region
  $region18: #{transformer_forward.27} parent=0 // pred_check
    _
  $region19: #{transformer_forward.27} parent=0 // pred_check_branch
    %21 = sbr.rel (0) target = $region21
  $region20: #{transformer_forward.27} parent=0 // pred_region
    _
  $region21: #{transformer_forward.27} parent=0 // pred_fallthru
    _
  // Predicated region
  $region22: #{transformer_forward.27} parent=0 // pred_check
    _
  $region23: #{transformer_forward.27} parent=0 // pred_check_branch
    %23 = sbr.rel (0) target = $region25
  $region24: #{transformer_forward.27} parent=0 // pred_region
    _
  $region25: #{transformer_forward.27} parent=0 // pred_fallthru
    _
  // Predicated region
  $region26: #{transformer_forward.27} parent=0 // pred_check
    _
  $region27: #{transformer_forward.27} parent=0 // pred_check_branch
    %25 = sbr.rel (0) target = $region29
  $region28: #{transformer_forward.27} parent=0 // pred_region
    _
  $region29: #{transformer_forward.27} parent=0 // pred_fallthru
    _
  %v27 = vld [vmem:[%s0] sm:$0xf]
  %v28 = vld [vmem:[%s0 + $0x4] sm:$0xf]
  %v29 = vld [vmem:[%s1] sm:$0xf]
  %v30 = vld [vmem:[%s1 + $0x4] sm:$0xf]
  %v31 = vld [vmem:[%s1 + $0x8] sm:$0xf]
  %v32 = vld [vmem:[%s1 + $0xc] sm:$0xf]
  %v33 = vld [vmem:[%s2] sm:$0x1]
  %v35 = vperm.slane %v33, 0
  %v39 = vunpack.c.l.b16 %v27
  %v40 = vunpack.c.l.b16 %v28
  %v41 = vpack.c.b16 %v40, %v39
  %v46 = vunpack.c.l.b16 %v29
  %v47 = vunpack.c.l.b16 %v30
  %v48 = vunpack.c.l.b16 %v31
  %v49 = vunpack.c.l.b16 %v32
  %v50 = vpack.c.b16 %v47, %v46
  %v51 = vpack.c.b16 %v49, %v48
  %vm54 = vcmask 261120
  %v56 = vsel %vm54, %v41, 0
  %58 = vmatpush.bf16.msra.mxu0 0
  %59 = vmatpush.bf16.msra.mxu0 0
  %60 = vmatpush.bf16.msra.mxu0 0
  %61 = vmatpush.bf16.msra.mxu0 0
  %62 = vmatpush.bf16.msra.mxu0 0
  %63 = vmatpush.bf16.msra.mxu0 0
  %64 = vmatpush.bf16.msra.mxu0 %v51
  %65 = vmatpush.bf16.msra.mxu0 %v50
  %66 = vmatmul.bf16.gmra.mxu0 %v56
  %v67 = vpop.f32.mrf.mxu0
  %v68 = vadd.f32 %v35, %v67
  %v69 = vpop.f32.mrf.mxu0
  %v70 = vadd.f32 %v35, %v69
  %71 = vdwg.mxu0
  %v72 = vld [vmem:[%s3] sm:$0xff]
  %v73 = vld [vmem:[%s3 + $0x8] sm:$0xff]
  %v74 = vadd.f32 %v68, %v72
  %v75 = vadd.f32 %v70, %v73
  %v76 = vsel %vm54, %v74, 0.0
  %77 = vadd.xlane.f32.xlu0 %v76
  %v78 = vpop.xlane.xlu0 %77
  %v79 = vsel %vm54, %v75, 0.0
  %80 = vadd.xlane.f32.xlu0 %v79
  %v81 = vpop.xlane.xlu0 %80
  %v82 = vrcp.pop 32.0
  %v83 = vmul.f32 32.0, %v82
  %v84 = vsub.f32 1.0, %v83
  %v85 = vmul.f32 %v82, %v84
  %v86 = vadd.f32 %v82, %v85
  %vm87 = vweird.f32 %v82
  %v88 = vsel %vm87, %v82, %v86
  %v89 = vmul.f32 %v78, %v88
  %v90 = vmul.f32 %v81, %v88
  %v91 = vsub.f32 %v74, %v89
  %v92 = vsub.f32 %v75, %v90
  %v93 = vmul.f32 %v91, %v91
  %v94 = vmul.f32 %v92, %v92
  %v95 = vsel %vm54, %v93, 0.0
  %96 = vadd.xlane.f32.xlu0 %v95
  %v97 = vpop.xlane.xlu0 %96
  %v98 = vsel %vm54, %v94, 0.0
  %99 = vadd.xlane.f32.xlu0 %v98
  %v100 = vpop.xlane.xlu0 %99
  %v101 = vmul.f32 %v97, %v88
  %v102 = vmul.f32 %v100, %v88
  %v103 = vadd.f32 %v101, 1e-05
  %v104 = vadd.f32 %v102, 1e-05
  %v105 = vrsqrt.pop %v103
  %v106 = vmul.f32 %v105, %v103
  %v107 = vmul.f32 %v106, %v105
  %v108 = vmul.f32 0.5, %v107
  %v109 = vsub.f32 1.5, %v108
  %v110 = vmul.f32 %v105, %v109
  %vm111 = vweird.f32 %v103
  %vm112 = vweird.f32 %v105
  %vm113 = vmor %vm111, %vm112
  %v114 = vsel %vm113, %v105, %v110
  %v115 = vrsqrt.pop %v104
  %v116 = vmul.f32 %v115, %v104
  %v117 = vmul.f32 %v116, %v115
  %v118 = vmul.f32 0.5, %v117
  %v119 = vsub.f32 1.5, %v118
  %v120 = vmul.f32 %v115, %v119
  %vm121 = vweird.f32 %v104
  %vm122 = vweird.f32 %v115
  %vm123 = vmor %vm121, %vm122
  %v124 = vsel %vm123, %v115, %v120
  %v125 = vmul.f32 %v91, %v114
  %v126 = vmul.f32 %v92, %v124
  %v127 = vld [vmem:[%s4] sm:$0x1]
  %v129 = vperm.slane %v127, 0
  %v131 = vmul.f32 %v125, %v129
  %v132 = vmul.f32 %v126, %v129
  %v133 = vld [vmem:[%s5] sm:$0x1]
  %v135 = vperm.slane %v133, 0
  %v137 = vadd.f32 %v131, %v135
  %v138 = vadd.f32 %v132, %v135
  %v139 = vld [vmem:[%s6] sm:$0xff]
  %v140 = vld [vmem:[%s6 + $0x8] sm:$0xff]
  %142 = vset.pattern.permute.xlu0 0
  %143 = vperm.xlu0 %142, %v139
  %v144 = vpop.permute.xlu0 %143
  %147 = vset.pattern.permute.xlu0 0
  %148 = vperm.xlu0 %147, %v140
  %v149 = vpop.permute.xlu0 %148
  %v151 = vmul.f32 %v137, %v144
  %v152 = vmul.f32 %v138, %v149
  %153 = vst.msk [vmem:[%s7] sm:$0xff] %vm54, %v151
  %154 = vst.msk [vmem:[%s7 + $0x8] sm:$0xff] %vm54, %v152
  // Predicated region
  $region30: #{transformer_forward.27} parent=0 // pred_check
    _
  $region31: #{transformer_forward.27} parent=0 // pred_check_branch
    %156 = sbr.rel (0) target = $region33
  $region32: #{transformer_forward.27} parent=0 // pred_region
    _
  $region33: #{transformer_forward.27} parent=0 // pred_fallthru
    _
  // Predicated region
  $region34: #{transformer_forward.27} parent=0 // pred_check
    _
  $region35: #{transformer_forward.27} parent=0 // pred_check_branch
    %158 = sbr.rel (0) target = $region37
  $region36: #{transformer_forward.27} parent=0 // pred_region
    _
  $region37: #{transformer_forward.27} parent=0 // pred_fallthru
    _

// kernel: transformer_forward.25
$region0: #{transformer_forward.25}
  #allocation0 [shape = 'u32[]', space=smem, size = 0x4, offset = 0x4, fixed_abs, tag = 'smem constant byte address 0x4 - core index']
  #allocation1 [shape = 'u32[72,128]{1,0:T(1,128)}', space=vmem, size = 0x9000, scoped, tag = 'internal scratch']
  %s0 = inlined_call_operand.vmem [shape: bf16[16,32], index: 0, kind: input, shape index: {}]
  %s1 = inlined_call_operand.vmem [shape: bf16[32,96], index: 1, kind: input, shape index: {}]
  %s2 = inlined_call_operand.vmem [shape: f32[1,96], index: 2, kind: input, shape index: {}]
  %s3 = inlined_call_operand.vmem [shape: bf16[16,32], index: 3, kind: output, shape index: {0}]
  %s4 = inlined_call_operand.vmem [shape: bf16[16,32], index: 4, kind: output, shape index: {1}]
  %s5 = inlined_call_operand.vmem [shape: bf16[16,32], index: 5, kind: output, shape index: {2}]
  %6 = xla_tuple %s3, %s4, %s5
  %s7 = sld [smem:[#allocation0]]
  $region38: #{transformer_forward.25} parent=0
    _
  %s9 = ssub.s32 1, %s7
  %s10 = scalar_select 0, %s9, %s7
  // Predicated region
  $region2: #{transformer_forward.25} parent=0 // pred_check
    _
  $region3: #{transformer_forward.25} parent=0 // pred_check_branch
    %12 = sbr.rel (0) target = $region5
  $region4: #{transformer_forward.25} parent=0 // pred_region
    _
  $region5: #{transformer_forward.25} parent=0 // pred_fallthru
    _
  // Predicated region
  $region6: #{transformer_forward.25} parent=0 // pred_check
    _
  $region7: #{transformer_forward.25} parent=0 // pred_check_branch
    %14 = sbr.rel (0) target = $region9
  $region8: #{transformer_forward.25} parent=0 // pred_region
    _
  $region9: #{transformer_forward.25} parent=0 // pred_fallthru
    _
  // Predicated region
  $region10: #{transformer_forward.25} parent=0 // pred_check
    _
  $region11: #{transformer_forward.25} parent=0 // pred_check_branch
    %16 = sbr.rel (0) target = $region13
  $region12: #{transformer_forward.25} parent=0 // pred_region
    _
  $region13: #{transformer_forward.25} parent=0 // pred_fallthru
    _
  %v18 = vld [vmem:[%s0] sm:$0xf]
  %v19 = vld [vmem:[%s0 + $0x4] sm:$0xf]
  %v20 = vld [vmem:[%s1] sm:$0xf]
  %v21 = vld [vmem:[%s1 + $0x4] sm:$0xf]
  %v22 = vld [vmem:[%s1 + $0x8] sm:$0xf]
  %v23 = vld [vmem:[%s1 + $0xc] sm:$0xf]
  %v24 = vld [vmem:[%s2] sm:$0x1]
  %v26 = vperm.slane %v24, 0
  %v30 = vunpack.c.l.b16 %v18
  %v31 = vunpack.c.l.b16 %v19
  %v32 = vpack.c.b16 %v31, %v30
  %v37 = vunpack.c.l.b16 %v20
  %v38 = vunpack.c.l.b16 %v21
  %v39 = vunpack.c.l.b16 %v22
  %v40 = vunpack.c.l.b16 %v23
  %v41 = vpack.c.b16 %v38, %v37
  %v42 = vpack.c.b16 %v40, %v39
  %vm45 = vcmask 261120
  %v47 = vsel %vm45, %v32, 0
  %49 = vmatpush.bf16.msra.mxu0 0
  %50 = vmatpush.bf16.msra.mxu0 0
  %51 = vmatpush.bf16.msra.mxu0 0
  %52 = vmatpush.bf16.msra.mxu0 0
  %53 = vmatpush.bf16.msra.mxu0 0
  %54 = vmatpush.bf16.msra.mxu0 0
  %55 = vmatpush.bf16.msra.mxu0 %v42
  %56 = vmatpush.bf16.msra.mxu0 %v41
  %57 = vmatmul.bf16.gmra.mxu0 %v47
  %v58 = vpop.f32.mrf.mxu0
  %v59 = vadd.f32 %v26, %v58
  %v60 = vpop.f32.mrf.mxu0
  %v61 = vadd.f32 %v26, %v60
  %62 = vdwg.mxu0
  %v63 = vpack.c.bf16 %v59, %v59
  %v64 = vpack.c.bf16 %v61, %v61
  %vm65 = vcmask 257024
  %66 = vst.msk [vmem:[%s3] sm:$0xf] %vm65, %v63
  %67 = vst.msk [vmem:[%s3 + $0x4] sm:$0xf] %vm65, %v64
  %70 = vrot.lane.b32.xlu0 %v63, 96
  %v71 = vpop.permute.xlu0 %70
  %72 = vrot.lane.b32.xlu0 %v64, 96
  %v73 = vpop.permute.xlu0 %72
  %76 = vst.msk [vmem:[%s4] sm:$0xf] %vm65, %v71
  %77 = vst.msk [vmem:[%s4 + $0x4] sm:$0xf] %vm65, %v73
  %78 = vrot.lane.b32.xlu0 %v63, 64
  %v79 = vpop.permute.xlu0 %78
  %80 = vrot.lane.b32.xlu0 %v64, 64
  %v81 = vpop.permute.xlu0 %80
  %84 = vst.msk [vmem:[%s5] sm:$0xf] %vm65, %v79
  %85 = vst.msk [vmem:[%s5 + $0x4] sm:$0xf] %vm65, %v81
  // Predicated region
  $region14: #{transformer_forward.25} parent=0 // pred_check
    _
  $region15: #{transformer_forward.25} parent=0 // pred_check_branch
    %87 = sbr.rel (0) target = $region17
  $region16: #{transformer_forward.25} parent=0 // pred_region
    _
  $region17: #{transformer_forward.25} parent=0 // pred_fallthru
    _
  // Predicated region
  $region18: #{transformer_forward.25} parent=0 // pred_check
    _
  $region19: #{transformer_forward.25} parent=0 // pred_check_branch
    %89 = sbr.rel (0) target = $region21
  $region20: #{transformer_forward.25} parent=0 // pred_region
    _
  $region21: #{transformer_forward.25} parent=0 // pred_fallthru
    _
  // Predicated region
  $region22: #{transformer_forward.25} parent=0 // pred_check
    _
  $region23: #{transformer_forward.25} parent=0 // pred_check_branch
    %91 = sbr.rel (0) target = $region25
  $region24: #{transformer_forward.25} parent=0 // pred_region
    _
  $region25: #{transformer_forward.25} parent=0 // pred_fallthru
    _
  // Predicated region
  $region26: #{transformer_forward.25} parent=0 // pred_check
    _
  $region27: #{transformer_forward.25} parent=0 // pred_check_branch
    %93 = sbr.rel (0) target = $region29
  $region28: #{transformer_forward.25} parent=0 // pred_region
    _
  $region29: #{transformer_forward.25} parent=0 // pred_fallthru
    _
  // Predicated region
  $region30: #{transformer_forward.25} parent=0 // pred_check
    _
  $region31: #{transformer_forward.25} parent=0 // pred_check_branch
    %95 = sbr.rel (0) target = $region33
  $region32: #{transformer_forward.25} parent=0 // pred_region
    _
  $region33: #{transformer_forward.25} parent=0 // pred_fallthru
    _
  // Predicated region
  $region34: #{transformer_forward.25} parent=0 // pred_check
    _
  $region35: #{transformer_forward.25} parent=0 // pred_check_branch
    %97 = sbr.rel (0) target = $region37
  $region36: #{transformer_forward.25} parent=0 // pred_region
    _
  $region37: #{transformer_forward.25} parent=0 // pred_fallthru
    _

// kernel: transformer_forward.26
$region0: #{transformer_forward.26}
  #allocation0 [shape = 'u32[]', space=smem, size = 0x4, offset = 0x4, fixed_abs, tag = 'smem constant byte address 0x4 - core index']
  #allocation1 [shape = 'u32[72,128]{1,0:T(1,128)}', space=vmem, size = 0x9000, scoped, tag = 'internal scratch']
  %s0 = inlined_call_operand.vmem [shape: bf16[2,8,32], index: 0, kind: input, shape index: {}]
  %s1 = inlined_call_operand.vmem [shape: bf16[2,8,32], index: 1, kind: input, shape index: {}]
  %s2 = inlined_call_operand.vmem [shape: bf16[2,8,32], index: 2, kind: input, shape index: {}]
  %s3 = inlined_call_operand.vmem [shape: f32[2,8,8], index: 3, kind: input, shape index: {}]
  %s4 = inlined_call_operand.vmem [shape: f32[2,8,32], index: 4, kind: output, shape index: {}]
  %s5 = sld [smem:[#allocation0]]
  $region49: #{transformer_forward.26} parent=0
    _
  %s7 = ssub.s32 1, %s5
  %s8 = scalar_select 0, %s7, %s5
  loop: start=0, step=1, limit=4
  $region2: #{transformer_forward.26} parent=0 // loop_pre_header
    _
  $region3: #{transformer_forward.26} parent=0 // loop_header
    %s10 = sphi 0, %s14
    %p11 = scmp.ge.s32.totalorder %s10, 4
    %s20 = sphi 0, %s22
    %s23 = sphi 0, %s20
    %s24 = sphi 0, %s23
    %s40 = sphi 0, %s24
    %s46 = sphi 0, %s48
    %s49 = sphi 0, %s46
    %s50 = sphi 0, %s49
    %s66 = sphi 0, %s50
    %s72 = sphi 0, %s74
    %s75 = sphi 0, %s72
    %s76 = sphi 0, %s75
    %s92 = sphi 0, %s76
    %s98 = sphi 0, %s100
    %s101 = sphi 0, %s98
    %s102 = sphi 0, %s101
    %s118 = sphi 0, %s102
    %s124 = sphi 0, %s126
    %s127 = sphi 0, %s124
    %s128 = sphi 0, %s127
    %s144 = sphi 0, %s128
  $region4: #{transformer_forward.26} parent=0 // loop_header_branch
    %13 = sbr.rel (%p11) target = $region8
  $region5: #{transformer_forward.26} parent=0 // loop_body
    %s15 = ssub.s32 %s10, 1
    %s16 = ssub.s32 %s10, 2
    %s17 = sadd.s32 %s10, 1
    %s18 = ssub.s32 %s10, %s17
    %p19 = scmp.eq.s32.totalorder %s18, 0
    %s21 = sadd.s32 %s20, 1
    %s22 = scalar_select %p19, %s20, %s21
    %p25 = pneg %p19
    %p26 = scmp.eq.s32.totalorder %s10, 1
    %p27 = por %p25, %p26
    %p28 = scmp.ne.s32.totalorder %s20, %s23
    %p29 = scmp.eq.s32.totalorder %s10, 0
    %p30 = por %p28, %p29
    %p31 = scmp.ne.s32.totalorder %s20, %s23
    %p32 = scmp.eq.s32.totalorder %s15, 1
    %p33 = por %p31, %p32
    %p34 = scmp.ne.s32.totalorder %s23, %s24
    %p35 = scmp.eq.s32.totalorder %s15, 0
    %p36 = por %p34, %p35
    %p37 = scmp.ne.s32.totalorder %s23, %s24
    %p38 = scmp.eq.s32.totalorder %s16, 1
    %p39 = por %p37, %p38
    %p41 = scmp.ne.s32.totalorder %s24, %s40
    %p42 = scmp.eq.s32.totalorder %s16, 0
    %p43 = por %p41, %p42
    %s44 = ssub.s32 %s10, %s17
    %p45 = scmp.eq.s32.totalorder %s44, 0
    %s47 = sadd.s32 %s46, 1
    %s48 = scalar_select %p45, %s46, %s47
    %p51 = pneg %p45
    %p52 = scmp.eq.s32.totalorder %s10, 1
    %p53 = por %p51, %p52
    %p54 = scmp.ne.s32.totalorder %s46, %s49
    %p55 = scmp.eq.s32.totalorder %s10, 0
    %p56 = por %p54, %p55
    %p57 = scmp.ne.s32.totalorder %s46, %s49
    %p58 = scmp.eq.s32.totalorder %s15, 1
    %p59 = por %p57, %p58
    %p60 = scmp.ne.s32.totalorder %s49, %s50
    %p61 = scmp.eq.s32.totalorder %s15, 0
    %p62 = por %p60, %p61
    %p63 = scmp.ne.s32.totalorder %s49, %s50
    %p64 = scmp.eq.s32.totalorder %s16, 1
    %p65 = por %p63, %p64
    %p67 = scmp.ne.s32.totalorder %s50, %s66
    %p68 = scmp.eq.s32.totalorder %s16, 0
    %p69 = por %p67, %p68
    %s70 = ssub.s32 %s10, %s17
    %p71 = scmp.eq.s32.totalorder %s70, 0
    %s73 = sadd.s32 %s72, 1
    %s74 = scalar_select %p71, %s72, %s73
    %p77 = pneg %p71
    %p78 = scmp.eq.s32.totalorder %s10, 1
    %p79 = por %p77, %p78
    %p80 = scmp.ne.s32.totalorder %s72, %s75
    %p81 = scmp.eq.s32.totalorder %s10, 0
    %p82 = por %p80, %p81
    %p83 = scmp.ne.s32.totalorder %s72, %s75
    %p84 = scmp.eq.s32.totalorder %s15, 1
    %p85 = por %p83, %p84
    %p86 = scmp.ne.s32.totalorder %s75, %s76
    %p87 = scmp.eq.s32.totalorder %s15, 0
    %p88 = por %p86, %p87
    %p89 = scmp.ne.s32.totalorder %s75, %s76
    %p90 = scmp.eq.s32.totalorder %s16, 1
    %p91 = por %p89, %p90
    %p93 = scmp.ne.s32.totalorder %s76, %s92
    %p94 = scmp.eq.s32.totalorder %s16, 0
    %p95 = por %p93, %p94
    %s96 = ssub.s32 %s10, %s17
    %p97 = scmp.eq.s32.totalorder %s96, 0
    %s99 = sadd.s32 %s98, 1
    %s100 = scalar_select %p97, %s98, %s99
    %p103 = pneg %p97
    %p104 = scmp.eq.s32.totalorder %s10, 1
    %p105 = por %p103, %p104
    %p106 = scmp.ne.s32.totalorder %s98, %s101
    %p107 = scmp.eq.s32.totalorder %s10, 0
    %p108 = por %p106, %p107
    %p109 = scmp.ne.s32.totalorder %s98, %s101
    %p110 = scmp.eq.s32.totalorder %s15, 1
    %p111 = por %p109, %p110
    %p112 = scmp.ne.s32.totalorder %s101, %s102
    %p113 = scmp.eq.s32.totalorder %s15, 0
    %p114 = por %p112, %p113
    %p115 = scmp.ne.s32.totalorder %s101, %s102
    %p116 = scmp.eq.s32.totalorder %s16, 1
    %p117 = por %p115, %p116
    %p119 = scmp.ne.s32.totalorder %s102, %s118
    %p120 = scmp.eq.s32.totalorder %s16, 0
    %p121 = por %p119, %p120
    %s122 = ssub.s32 %s10, %s17
    %p123 = scmp.eq.s32.totalorder %s122, 0
    %s125 = sadd.s32 %s124, 1
    %s126 = scalar_select %p123, %s124, %s125
    %p129 = pneg %p123
    %p130 = scmp.eq.s32.totalorder %s10, 1
    %p131 = por %p129, %p130
    %p132 = scmp.ne.s32.totalorder %s124, %s127
    %p133 = scmp.eq.s32.totalorder %s10, 0
    %p134 = por %p132, %p133
    %p135 = scmp.ne.s32.totalorder %s124, %s127
    %p136 = scmp.eq.s32.totalorder %s15, 1
    %p137 = por %p135, %p136
    %p138 = scmp.ne.s32.totalorder %s127, %s128
    %p139 = scmp.eq.s32.totalorder %s15, 0
    %p140 = por %p138, %p139
    %p141 = scmp.ne.s32.totalorder %s127, %s128
    %p142 = scmp.eq.s32.totalorder %s16, 1
    %p143 = por %p141, %p142
    %p145 = scmp.ne.s32.totalorder %s128, %s144
    %p146 = scmp.eq.s32.totalorder %s16, 0
    %p147 = por %p145, %p146
    %p148 = scmp.le.s32.totalorder 1, %s10
    %p149 = scmp.lt.s32.totalorder %s10, 3
    %p150 = pnand %p148, %p149
    %p151 = pneg %p150
    // Predicated region
    $region9: #{transformer_forward.26} parent=5 // pred_check
      _
    $region10: #{transformer_forward.26} parent=5 // pred_check_branch
      %153 = sbr.rel (%p150) target = $region12
    $region11: #{transformer_forward.26} parent=5 // pred_region
      %s154 = ssub.s32 %s10, 1
    $region12: #{transformer_forward.26} parent=5 // pred_fallthru
      _
    %p155 = scmp.lt.s32.totalorder %s10, 2
    // Predicated region
    $region13: #{transformer_forward.26} parent=5 // pred_check
      %p156 = pneg %p155
    $region14: #{transformer_forward.26} parent=5 // pred_check_branch
      %158 = sbr.rel (%p156) target = $region16
    $region15: #{transformer_forward.26} parent=5 // pred_region
      // Predicated region
      $region17: #{transformer_forward.26} parent=15 // pred_check
        %p159 = pneg %p30
      $region18: #{transformer_forward.26} parent=15 // pred_check_branch
        %161 = sbr.rel (%p159) target = $region20
      $region19: #{transformer_forward.26} parent=15 // pred_region
        %p162 = scmp.lt.s32.totalorder %s10, 1
        %s163 = scalar_select %p162, %s10, 1
        %s164 = smul.addr %s163, 4
        %s165 = scalar_lea.vmem %s0, %s164
      $region20: #{transformer_forward.26} parent=15 // pred_fallthru
        _
      // Predicated region
      $region21: #{transformer_forward.26} parent=15 // pred_check
        %p166 = pneg %p56
      $region22: #{transformer_forward.26} parent=15 // pred_check_branch
        %168 = sbr.rel (%p166) target = $region24
      $region23: #{transformer_forward.26} parent=15 // pred_region
        %p169 = scmp.lt.s32.totalorder %s10, 1
        %s170 = scalar_select %p169, %s10, 1
        %s171 = smul.addr %s170, 4
        %s172 = scalar_lea.vmem %s1, %s171
      $region24: #{transformer_forward.26} parent=15 // pred_fallthru
        _
      // Predicated region
      $region25: #{transformer_forward.26} parent=15 // pred_check
        %p173 = pneg %p82
      $region26: #{transformer_forward.26} parent=15 // pred_check_branch
        %175 = sbr.rel (%p173) target = $region28
      $region27: #{transformer_forward.26} parent=15 // pred_region
        %p176 = scmp.lt.s32.totalorder %s10, 1
        %s177 = scalar_select %p176, %s10, 1
        %s178 = smul.addr %s177, 4
        %s179 = scalar_lea.vmem %s2, %s178
      $region28: #{transformer_forward.26} parent=15 // pred_fallthru
        _
      // Predicated region
      $region29: #{transformer_forward.26} parent=15 // pred_check
        %p180 = pneg %p108
      $region30: #{transformer_forward.26} parent=15 // pred_check_branch
        %182 = sbr.rel (%p180) target = $region32
      $region31: #{transformer_forward.26} parent=15 // pred_region
        %p183 = scmp.lt.s32.totalorder %s10, 1
        %s184 = scalar_select %p183, %s10, 1
        %s185 = smul.addr %s184, 8
        %s186 = scalar_lea.vmem %s3, %s185
      $region32: #{transformer_forward.26} parent=15 // pred_fallthru
        _
    $region16: #{transformer_forward.26} parent=5 // pred_fallthru
      _
    %p187 = scmp.le.s32.totalorder 1, %s10
    %p188 = scmp.lt.s32.totalorder %s10, 3
    %p189 = pnand %p187, %p188
    %p190 = pneg %p189
    // Predicated region
    $region33: #{transformer_forward.26} parent=5 // pred_check
      _
    $region34: #{transformer_forward.26} parent=5 // pred_check_branch
      %192 = sbr.rel (%p189) target = $region36
    $region35: #{transformer_forward.26} parent=5 // pred_region
      %s193 = ssub.s32 %s10, 1
      %p194 = scmp.lt.s32.totalorder %s15, 1
      %s195 = scalar_select %p194, %s15, 1
      %s196 = smul.addr %s195, 4
      %s197 = scalar_lea.vmem %s0, %s196
      %p198 = pneg %p36
      %p199 = pneg %p33
      %p200 = scmp.lt.s32.totalorder %s15, 1
      %s201 = scalar_select %p200, %s15, 1
      %s202 = smul.addr %s201, 4
      %s203 = scalar_lea.vmem %s1, %s202
      %p204 = pneg %p62
      %p205 = pneg %p59
      %p206 = scmp.lt.s32.totalorder %s15, 1
      %s207 = scalar_select %p206, %s15, 1
      %s208 = smul.addr %s207, 4
      %s209 = scalar_lea.vmem %s2, %s208
      %p210 = pneg %p88
      %p211 = pneg %p85
      %p212 = scmp.lt.s32.totalorder %s15, 1
      %s213 = scalar_select %p212, %s15, 1
      %s214 = smul.addr %s213, 8
      %s215 = scalar_lea.vmem %s3, %s214
      %p216 = pneg %p114
      %p217 = pneg %p111
      %p218 = pneg %p140
      %p219 = pneg %p137
      %p220 = scmp.lt.s32.totalorder %s15, 1
      %s221 = scalar_select %p220, %s15, 1
      %s222 = smul.addr %s221, 8
      %s223 = scalar_lea.vmem %s4, %s222
      %p224 = scmp.lt.s32.totalorder %s15, 1
      %s225 = scalar_select %p224, %s15, 1
      %s226 = smul.addr %s225, 4
      %s227 = scalar_lea.vmem %s0, %s226
      %p228 = scmp.lt.s32.totalorder %s15, 1
      %s229 = scalar_select %p228, %s15, 1
      %s230 = smul.addr %s229, 4
      %s231 = scalar_lea.vmem %s1, %s230
      %p232 = scmp.lt.s32.totalorder %s15, 1
      %s233 = scalar_select %p232, %s15, 1
      %s234 = smul.addr %s233, 4
      %s235 = scalar_lea.vmem %s2, %s234
      %p236 = scmp.lt.s32.totalorder %s15, 1
      %s237 = scalar_select %p236, %s15, 1
      %s238 = smul.addr %s237, 8
      %s239 = scalar_lea.vmem %s3, %s238
      %p240 = scmp.lt.s32.totalorder %s15, 1
      %s241 = scalar_select %p240, %s15, 1
      %s242 = smul.addr %s241, 8
      %s243 = scalar_lea.vmem %s4, %s242
      %v245 = vld [vmem:[%s227] sm:$0xf]
      %v246 = vld [vmem:[%s231] sm:$0xf]
      %v247 = vld [vmem:[%s235] sm:$0xf]
      %v248 = vld [vmem:[%s239] sm:$0xff]
      %vm249 = vcmask 64512
      %v251 = vsel %vm249, %v245, 0
      %v254 = vsel %vm249, %v246, 0
      %256 = vmatpush.bf16.xpose.msra.mxu0 0
      %257 = vmatpush.bf16.xpose.msra.mxu0 0
      %258 = vmatpush.bf16.xpose.msra.mxu0 0
      %259 = vmatpush.bf16.xpose.msra.mxu0 0
      %260 = vmatpush.bf16.xpose.msra.mxu0 0
      %261 = vmatpush.bf16.xpose.msra.mxu0 0
      %262 = vmatpush.bf16.xpose.msra.mxu0 0
      %263 = vmatpush.bf16.xpose.msra.mxu0 %v254
      %264 = vmatmul.bf16.gmra.mxu0 %v251
      %v265 = vpop.f32.mrf.mxu0
      %v266 = vadd.f32 0.0, %v265
      %v267 = vpop.f32.mrf.mxu0
      %268 = vdwg.mxu0
      %v269 = vmul.f32 %v266, 0.35355338
      %v270 = vadd.f32 %v269, %v248
      %v271 = vsel %vm249, %v270, -inf
      %272 = vmax.xlane.f32.xlu0 %v271
      %v273 = vpop.xlane.xlu0 %272
      %v274 = vsub.f32 %v270, %v273
      %v275 = vmul.f32 %v274, 1.442695
      %v276 = vpow.pop %v275
      %v277 = vsel %vm249, %v276, 0.0
      %278 = vadd.xlane.f32.xlu0 %v277
      %v279 = vpop.xlane.xlu0 %278
      %v280 = vrcp.pop %v279
      %v281 = vmul.f32 %v276, %v280
      %v282 = vpack.c.bf16 %v281, %v281
      %v284 = vsel %vm249, %v282, 0
      %vm286 = vcmask 1043456
      %v288 = vsel %vm286, %v247, 0
      %290 = vmatpush.bf16.msra.mxu0 0
      %291 = vmatpush.bf16.msra.mxu0 0
      %292 = vmatpush.bf16.msra.mxu0 0
      %293 = vmatpush.bf16.msra.mxu0 0
      %294 = vmatpush.bf16.msra.mxu0 0
      %295 = vmatpush.bf16.msra.mxu0 0
      %296 = vmatpush.bf16.msra.mxu0 0
      %297 = vmatpush.bf16.msra.mxu0 %v288
      %298 = vmatmul.bf16.gmra.mxu0 %v284
      %v299 = vpop.f32.mrf.mxu0
      %v300 = vadd.f32 0.0, %v299
      %v301 = vpop.f32.mrf.mxu0
      %302 = vdwg.mxu0
      %303 = vst.msk [vmem:[%s243] sm:$0xff] %vm249, %v300
      %v305 = vunpack.c.l.b16 %v245
      %v306 = vpack.c.b16 %v305, %v305
      %307 = vrot.lane.b32.xlu0 %v306, 120
      %v308 = vpop.permute.xlu0 %307
      %v310 = vunpack.c.l.b16 %v246
      %v311 = vpack.c.b16 %v310, %v310
      %312 = vrot.lane.b32.xlu0 %v311, 120
      %v313 = vpop.permute.xlu0 %312
      %v315 = vsel %vm249, %v308, 0
      %v318 = vsel %vm249, %v313, 0
      %320 = vmatpush.bf16.xpose.msra.mxu0 0
      %321 = vmatpush.bf16.xpose.msra.mxu0 0
      %322 = vmatpush.bf16.xpose.msra.mxu0 0
      %323 = vmatpush.bf16.xpose.msra.mxu0 0
      %324 = vmatpush.bf16.xpose.msra.mxu0 0
      %325 = vmatpush.bf16.xpose.msra.mxu0 0
      %326 = vmatpush.bf16.xpose.msra.mxu0 0
      %327 = vmatpush.bf16.xpose.msra.mxu0 %v318
      %328 = vmatmul.bf16.gmra.mxu0 %v315
      %v329 = vpop.f32.mrf.mxu0
      %v330 = vadd.f32 0.0, %v329
      %v331 = vpop.f32.mrf.mxu0
      %332 = vdwg.mxu0
      %v333 = vmul.f32 %v330, 0.35355338
      %v334 = vadd.f32 %v333, %v248
      %v335 = vsel %vm249, %v334, -inf
      %336 = vmax.xlane.f32.xlu0 %v335
      %v337 = vpop.xlane.xlu0 %336
      %v338 = vsub.f32 %v334, %v337
      %v339 = vmul.f32 %v338, 1.442695
      %v340 = vpow.pop %v339
      %v341 = vsel %vm249, %v340, 0.0
      %342 = vadd.xlane.f32.xlu0 %v341
      %v343 = vpop.xlane.xlu0 %342
      %v344 = vrcp.pop %v343
      %v345 = vmul.f32 %v340, %v344
      %v346 = vpack.c.bf16 %v345, %v345
      %v348 = vunpack.c.l.b16 %v247
      %v349 = vpack.c.b16 %v348, %v348
      %350 = vrot.lane.b32.xlu0 %v349, 120
      %v351 = vpop.permute.xlu0 %350
      %v353 = vsel %vm249, %v346, 0
      %v356 = vsel %vm286, %v351, 0
      %358 = vmatpush.bf16.msra.mxu0 0
      %359 = vmatpush.bf16.msra.mxu0 0
      %360 = vmatpush.bf16.msra.mxu0 0
      %361 = vmatpush.bf16.msra.mxu0 0
      %362 = vmatpush.bf16.msra.mxu0 0
      %363 = vmatpush.bf16.msra.mxu0 0
      %364 = vmatpush.bf16.msra.mxu0 0
      %365 = vmatpush.bf16.msra.mxu0 %v356
      %366 = vmatmul.bf16.gmra.mxu0 %v353
      %v367 = vpop.f32.mrf.mxu0
      %v368 = vadd.f32 0.0, %v367
      %v369 = vpop.f32.mrf.mxu0
      %370 = vdwg.mxu0
      %372 = vrot.lane.b32.xlu0 %v368, 8
      %v373 = vpop.permute.xlu0 %372
      %vm375 = vcmask 130112
      %376 = vst.msk [vmem:[%s243] sm:$0xff] %vm375, %v373
      %377 = vrot.lane.b32.xlu0 %v306, 112
      %v378 = vpop.permute.xlu0 %377
      %379 = vrot.lane.b32.xlu0 %v311, 112
      %v380 = vpop.permute.xlu0 %379
      %v382 = vsel %vm249, %v378, 0
      %v385 = vsel %vm249, %v380, 0
      %387 = vmatpush.bf16.xpose.msra.mxu0 0
      %388 = vmatpush.bf16.xpose.msra.mxu0 0
      %389 = vmatpush.bf16.xpose.msra.mxu0 0
      %390 = vmatpush.bf16.xpose.msra.mxu0 0
      %391 = vmatpush.bf16.xpose.msra.mxu0 0
      %392 = vmatpush.bf16.xpose.msra.mxu0 0
      %393 = vmatpush.bf16.xpose.msra.mxu0 0
      %394 = vmatpush.bf16.xpose.msra.mxu0 %v385
      %395 = vmatmul.bf16.gmra.mxu0 %v382
      %v396 = vpop.f32.mrf.mxu0
      %v397 = vadd.f32 0.0, %v396
      %v398 = vpop.f32.mrf.mxu0
      %399 = vdwg.mxu0
      %v400 = vmul.f32 %v397, 0.35355338
      %v401 = vadd.f32 %v400, %v248
      %v402 = vsel %vm249, %v401, -inf
      %403 = vmax.xlane.f32.xlu0 %v402
      %v404 = vpop.xlane.xlu0 %403
      %v405 = vsub.f32 %v401, %v404
      %v406 = vmul.f32 %v405, 1.442695
      %v407 = vpow.pop %v406
      %v408 = vsel %vm249, %v407, 0.0
      %409 = vadd.xlane.f32.xlu0 %v408
      %v410 = vpop.xlane.xlu0 %409
      %v411 = vrcp.pop %v410
      %v412 = vmul.f32 %v407, %v411
      %v413 = vpack.c.bf16 %v412, %v412
      %414 = vrot.lane.b32.xlu0 %v349, 112
      %v415 = vpop.permute.xlu0 %414
      %v417 = vsel %vm249, %v413, 0
      %v420 = vsel %vm286, %v415, 0
      %422 = vmatpush.bf16.msra.mxu0 0
      %423 = vmatpush.bf16.msra.mxu0 0
      %424 = vmatpush.bf16.msra.mxu0 0
      %425 = vmatpush.bf16.msra.mxu0 0
      %426 = vmatpush.bf16.msra.mxu0 0
      %427 = vmatpush.bf16.msra.mxu0 0
      %428 = vmatpush.bf16.msra.mxu0 0
      %429 = vmatpush.bf16.msra.mxu0 %v420
      %430 = vmatmul.bf16.gmra.mxu0 %v417
      %v431 = vpop.f32.mrf.mxu0
      %v432 = vadd.f32 0.0, %v431
      %v433 = vpop.f32.mrf.mxu0
      %434 = vdwg.mxu0
      %436 = vrot.lane.b32.xlu0 %v432, 16
      %v437 = vpop.permute.xlu0 %436
      %vm439 = vcmask 195712
      %440 = vst.msk [vmem:[%s243] sm:$0xff] %vm439, %v437
      %441 = vrot.lane.b32.xlu0 %v306, 104
      %v442 = vpop.permute.xlu0 %441
      %443 = vrot.lane.b32.xlu0 %v311, 104
      %v444 = vpop.permute.xlu0 %443
      %v446 = vsel %vm249, %v442, 0
      %v449 = vsel %vm249, %v444, 0
      %451 = vmatpush.bf16.xpose.msra.mxu0 0
      %452 = vmatpush.bf16.xpose.msra.mxu0 0
      %453 = vmatpush.bf16.xpose.msra.mxu0 0
      %454 = vmatpush.bf16.xpose.msra.mxu0 0
      %455 = vmatpush.bf16.xpose.msra.mxu0 0
      %456 = vmatpush.bf16.xpose.msra.mxu0 0
      %457 = vmatpush.bf16.xpose.msra.mxu0 0
      %458 = vmatpush.bf16.xpose.msra.mxu0 %v449
      %459 = vmatmul.bf16.gmra.mxu0 %v446
      %v460 = vpop.f32.mrf.mxu0
      %v461 = vadd.f32 0.0, %v460
      %v462 = vpop.f32.mrf.mxu0
      %463 = vdwg.mxu0
      %v464 = vmul.f32 %v461, 0.35355338
      %v465 = vadd.f32 %v464, %v248
      %v466 = vsel %vm249, %v465, -inf
      %467 = vmax.xlane.f32.xlu0 %v466
      %v468 = vpop.xlane.xlu0 %467
      %v469 = vsub.f32 %v465, %v468
      %v470 = vmul.f32 %v469, 1.442695
      %v471 = vpow.pop %v470
      %v472 = vsel %vm249, %v471, 0.0
      %473 = vadd.xlane.f32.xlu0 %v472
      %v474 = vpop.xlane.xlu0 %473
      %v475 = vrcp.pop %v474
      %v476 = vmul.f32 %v471, %v475
      %v477 = vpack.c.bf16 %v476, %v476
      %478 = vrot.lane.b32.xlu0 %v349, 104
      %v479 = vpop.permute.xlu0 %478
      %v481 = vsel %vm249, %v477, 0
      %v484 = vsel %vm286, %v479, 0
      %486 = vmatpush.bf16.msra.mxu0 0
      %487 = vmatpush.bf16.msra.mxu0 0
      %488 = vmatpush.bf16.msra.mxu0 0
      %489 = vmatpush.bf16.msra.mxu0 0
      %490 = vmatpush.bf16.msra.mxu0 0
      %491 = vmatpush.bf16.msra.mxu0 0
      %492 = vmatpush.bf16.msra.mxu0 0
      %493 = vmatpush.bf16.msra.mxu0 %v484
      %494 = vmatmul.bf16.gmra.mxu0 %v481
      %v495 = vpop.f32.mrf.mxu0
      %v496 = vadd.f32 0.0, %v495
      %v497 = vpop.f32.mrf.mxu0
      %498 = vdwg.mxu0
      %500 = vrot.lane.b32.xlu0 %v496, 24
      %v501 = vpop.permute.xlu0 %500
      %vm503 = vcmask 261312
      %504 = vst.msk [vmem:[%s243] sm:$0xff] %vm503, %v501
      %p505 = scmp.lt.s32.totalorder %s15, 1
      %s506 = scalar_select %p505, %s15, 1
      %s507 = smul.addr %s506, 8
      %s508 = scalar_lea.vmem %s4, %s507
      // Predicated region
      $region37: #{transformer_forward.26} parent=35 // pred_check
        %p509 = pneg %p137
      $region38: #{transformer_forward.26} parent=35 // pred_check_branch
        %511 = sbr.rel (%p509) target = $region40
      $region39: #{transformer_forward.26} parent=35 // pred_region
        _
      $region40: #{transformer_forward.26} parent=35 // pred_fallthru
        _
    $region36: #{transformer_forward.26} parent=5 // pred_fallthru
      _
    %p512 = scmp.le.s32.totalorder 2, %s10
    // Predicated region
    $region41: #{transformer_forward.26} parent=5 // pred_check
      %p513 = pneg %p512
    $region42: #{transformer_forward.26} parent=5 // pred_check_branch
      %515 = sbr.rel (%p513) target = $region44
    $region43: #{transformer_forward.26} parent=5 // pred_region
      %s516 = ssub.s32 %s10, 2
      // Predicated region
      $region45: #{transformer_forward.26} parent=43 // pred_check
        %p517 = pneg %p143
      $region46: #{transformer_forward.26} parent=43 // pred_check_branch
        %519 = sbr.rel (%p517) target = $region48
      $region47: #{transformer_forward.26} parent=43 // pred_region
        %p520 = scmp.lt.s32.totalorder %s16, 1
        %s521 = scalar_select %p520, %s16, 1
        %s522 = smul.addr %s521, 8
        %s523 = scalar_lea.vmem %s4, %s522
      $region48: #{transformer_forward.26} parent=43 // pred_fallthru
        _
    $region44: #{transformer_forward.26} parent=5 // pred_fallthru
      _
  $region6: #{transformer_forward.26} parent=0 // loop_footer
    %s14 = sadd.s32 1, %s10
  $region7: #{transformer_forward.26} parent=0 // loop_footer_branch
    %9 = sbr.rel target = $region3
  $region8: #{transformer_forward.26} parent=0 // loop_exit
    _

// kernel: transformer_forward.28
$region0: #{transformer_forward.28}
  #allocation0 [shape = 'u32[]', space=smem, size = 0x4, offset = 0x4, fixed_abs, tag = 'smem constant byte address 0x4 - core index']
  #allocation1 [shape = 'u32[72,128]{1,0:T(1,128)}', space=vmem, size = 0x9000, scoped, tag = 'internal scratch']
  %s0 = inlined_call_operand.vmem [shape: bf16[16,32], index: 0, kind: input, shape index: {}]
  %s1 = inlined_call_operand.vmem [shape: bf16[32,64], index: 1, kind: input, shape index: {}]
  %s2 = inlined_call_operand.vmem [shape: f32[1,64], index: 2, kind: input, shape index: {}]
  %s3 = inlined_call_operand.vmem [shape: bf16[64,32], index: 3, kind: input, shape index: {}]
  %s4 = inlined_call_operand.vmem [shape: f32[1,32], index: 4, kind: input, shape index: {}]
  %s5 = inlined_call_operand.vmem [shape: f32[16,32], index: 5, kind: input, shape index: {}]
  %s6 = inlined_call_operand.vmem [shape: f32[1,32], index: 6, kind: input, shape index: {}]
  %s7 = inlined_call_operand.vmem [shape: f32[1,32], index: 7, kind: input, shape index: {}]
  %s8 = inlined_call_operand.vmem [shape: f32[16,1], index: 8, kind: input, shape index: {}]
  %s9 = inlined_call_operand.vmem [shape: f32[16,32], index: 9, kind: output, shape index: {}]
  %s10 = sld [smem:[#allocation0]]
  $region46: #{transformer_forward.28} parent=0
    _
  %s12 = ssub.s32 1, %s10
  %s13 = scalar_select 0, %s12, %s10
  // Predicated region
  $region2: #{transformer_forward.28} parent=0 // pred_check
    _
  $region3: #{transformer_forward.28} parent=0 // pred_check_branch
    %15 = sbr.rel (0) target = $region5
  $region4: #{transformer_forward.28} parent=0 // pred_region
    _
  $region5: #{transformer_forward.28} parent=0 // pred_fallthru
    _
  // Predicated region
  $region6: #{transformer_forward.28} parent=0 // pred_check
    _
  $region7: #{transformer_forward.28} parent=0 // pred_check_branch
    %17 = sbr.rel (0) target = $region9
  $region8: #{transformer_forward.28} parent=0 // pred_region
    _
  $region9: #{transformer_forward.28} parent=0 // pred_fallthru
    _
  // Predicated region
  $region10: #{transformer_forward.28} parent=0 // pred_check
    _
  $region11: #{transformer_forward.28} parent=0 // pred_check_branch
    %19 = sbr.rel (0) target = $region13
  $region12: #{transformer_forward.28} parent=0 // pred_region
    _
  $region13: #{transformer_forward.28} parent=0 // pred_fallthru
    _
  // Predicated region
  $region14: #{transformer_forward.28} parent=0 // pred_check
    _
  $region15: #{transformer_forward.28} parent=0 // pred_check_branch
    %21 = sbr.rel (0) target = $region17
  $region16: #{transformer_forward.28} parent=0 // pred_region
    _
  $region17: #{transformer_forward.28} parent=0 // pred_fallthru
    _
  // Predicated region
  $region18: #{transformer_forward.28} parent=0 // pred_check
    _
  $region19: #{transformer_forward.28} parent=0 // pred_check_branch
    %23 = sbr.rel (0) target = $region21
  $region20: #{transformer_forward.28} parent=0 // pred_region
    _
  $region21: #{transformer_forward.28} parent=0 // pred_fallthru
    _
  // Predicated region
  $region22: #{transformer_forward.28} parent=0 // pred_check
    _
  $region23: #{transformer_forward.28} parent=0 // pred_check_branch
    %25 = sbr.rel (0) target = $region25
  $region24: #{transformer_forward.28} parent=0 // pred_region
    _
  $region25: #{transformer_forward.28} parent=0 // pred_fallthru
    _
  // Predicated region
  $region26: #{transformer_forward.28} parent=0 // pred_check
    _
  $region27: #{transformer_forward.28} parent=0 // pred_check_branch
    %27 = sbr.rel (0) target = $region29
  $region28: #{transformer_forward.28} parent=0 // pred_region
    _
  $region29: #{transformer_forward.28} parent=0 // pred_fallthru
    _
  // Predicated region
  $region30: #{transformer_forward.28} parent=0 // pred_check
    _
  $region31: #{transformer_forward.28} parent=0 // pred_check_branch
    %29 = sbr.rel (0) target = $region33
  $region32: #{transformer_forward.28} parent=0 // pred_region
    _
  $region33: #{transformer_forward.28} parent=0 // pred_fallthru
    _
  // Predicated region
  $region34: #{transformer_forward.28} parent=0 // pred_check
    _
  $region35: #{transformer_forward.28} parent=0 // pred_check_branch
    %31 = sbr.rel (0) target = $region37
  $region36: #{transformer_forward.28} parent=0 // pred_region
    _
  $region37: #{transformer_forward.28} parent=0 // pred_fallthru
    _
  %v33 = vld [vmem:[%s0] sm:$0xf]
  %v34 = vld [vmem:[%s0 + $0x4] sm:$0xf]
  %v35 = vld [vmem:[%s1] sm:$0xf]
  %v36 = vld [vmem:[%s1 + $0x4] sm:$0xf]
  %v37 = vld [vmem:[%s1 + $0x8] sm:$0xf]
  %v38 = vld [vmem:[%s1 + $0xc] sm:$0xf]
  %v39 = vld [vmem:[%s2] sm:$0x1]
  %v41 = vperm.slane %v39, 0
  %v45 = vunpack.c.l.b16 %v33
  %v46 = vunpack.c.l.b16 %v34
  %v47 = vpack.c.b16 %v46, %v45
  %v52 = vunpack.c.l.b16 %v35
  %v53 = vunpack.c.l.b16 %v36
  %v54 = vunpack.c.l.b16 %v37
  %v55 = vunpack.c.l.b16 %v38
  %v56 = vpack.c.b16 %v53, %v52
  %v57 = vpack.c.b16 %v55, %v54
  %vm60 = vcmask 261120
  %v62 = vsel %vm60, %v47, 0
  %64 = vmatpush.bf16.msra.mxu0 0
  %65 = vmatpush.bf16.msra.mxu0 0
  %66 = vmatpush.bf16.msra.mxu0 0
  %67 = vmatpush.bf16.msra.mxu0 0
  %68 = vmatpush.bf16.msra.mxu0 0
  %69 = vmatpush.bf16.msra.mxu0 0
  %70 = vmatpush.bf16.msra.mxu0 %v57
  %71 = vmatpush.bf16.msra.mxu0 %v56
  %72 = vmatmul.bf16.gmra.mxu0 %v62
  %v73 = vpop.f32.mrf.mxu0
  %v74 = vadd.f32 %v41, %v73
  %v75 = vpop.f32.mrf.mxu0
  %v76 = vadd.f32 %v41, %v75
  %77 = vdwg.mxu0
  %v78 = vmax.f32 %v74, 0.0
  %v79 = vmax.f32 %v76, 0.0
  %v80 = vpack.c.bf16 %v79, %v78
  %v81 = vld [vmem:[%s3] sm:$0xf]
  %v82 = vld [vmem:[%s3 + $0x4] sm:$0xf]
  %v83 = vld [vmem:[%s3 + $0x8] sm:$0xf]
  %v84 = vld [vmem:[%s3 + $0xc] sm:$0xf]
  %v85 = vld [vmem:[%s3 + $0x10] sm:$0xf]
  %v86 = vld [vmem:[%s3 + $0x14] sm:$0xf]
  %v87 = vld [vmem:[%s3 + $0x18] sm:$0xf]
  %v88 = vld [vmem:[%s3 + $0x1c] sm:$0xf]
  %v89 = vld [vmem:[%s4] sm:$0x1]
  %v91 = vperm.slane %v89, 0
  %v101 = vunpack.c.l.b16 %v81
  %v102 = vunpack.c.l.b16 %v82
  %v103 = vunpack.c.l.b16 %v83
  %v104 = vunpack.c.l.b16 %v84
  %v105 = vunpack.c.l.b16 %v85
  %v106 = vunpack.c.l.b16 %v86
  %v107 = vunpack.c.l.b16 %v87
  %v108 = vunpack.c.l.b16 %v88
  %v109 = vpack.c.b16 %v102, %v101
  %v110 = vpack.c.b16 %v104, %v103
  %v111 = vpack.c.b16 %v106, %v105
  %v112 = vpack.c.b16 %v108, %v107
  %vm117 = vcmask 523264
  %v119 = vsel %vm117, %v80, 0
  %121 = vmatpush.bf16.msra.mxu0 0
  %122 = vmatpush.bf16.msra.mxu0 0
  %123 = vmatpush.bf16.msra.mxu0 0
  %124 = vmatpush.bf16.msra.mxu0 0
  %125 = vmatpush.bf16.msra.mxu0 %v112
  %126 = vmatpush.bf16.msra.mxu0 %v111
  %127 = vmatpush.bf16.msra.mxu0 %v110
  %128 = vmatpush.bf16.msra.mxu0 %v109
  %129 = vmatmul.bf16.gmra.mxu0 %v119
  %v130 = vpop.f32.mrf.mxu0
  %v131 = vadd.f32 %v91, %v130
  %v132 = vpop.f32.mrf.mxu0
  %v133 = vadd.f32 %v91, %v132
  %134 = vdwg.mxu0
  %v135 = vld [vmem:[%s5] sm:$0xff]
  %v136 = vld [vmem:[%s5 + $0x8] sm:$0xff]
  %v137 = vadd.f32 %v131, %v135
  %v138 = vadd.f32 %v133, %v136
  %v139 = vsel %vm60, %v137, 0.0
  %140 = vadd.xlane.f32.xlu0 %v139
  %v141 = vpop.xlane.xlu0 %140
  %v142 = vsel %vm60, %v138, 0.0
  %143 = vadd.xlane.f32.xlu0 %v142
  %v144 = vpop.xlane.xlu0 %143
  %v145 = vrcp.pop 32.0
  %v146 = vmul.f32 32.0, %v145
  %v147 = vsub.f32 1.0, %v146
  %v148 = vmul.f32 %v145, %v147
  %v149 = vadd.f32 %v145, %v148
  %vm150 = vweird.f32 %v145
  %v151 = vsel %vm150, %v145, %v149
  %v152 = vmul.f32 %v141, %v151
  %v153 = vmul.f32 %v144, %v151
  %v154 = vsub.f32 %v137, %v152
  %v155 = vsub.f32 %v138, %v153
  %v156 = vmul.f32 %v154, %v154
  %v157 = vmul.f32 %v155, %v155
  %v158 = vsel %vm60, %v156, 0.0
  %159 = vadd.xlane.f32.xlu0 %v158
  %v160 = vpop.xlane.xlu0 %159
  %v161 = vsel %vm60, %v157, 0.0
  %162 = vadd.xlane.f32.xlu0 %v161
  %v163 = vpop.xlane.xlu0 %162
  %v164 = vmul.f32 %v160, %v151
  %v165 = vmul.f32 %v163, %v151
  %v166 = vadd.f32 %v164, 1e-05
  %v167 = vadd.f32 %v165, 1e-05
  %v168 = vrsqrt.pop %v166
  %v169 = vmul.f32 %v168, %v166
  %v170 = vmul.f32 %v169, %v168
  %v171 = vmul.f32 0.5, %v170
  %v172 = vsub.f32 1.5, %v171
  %v173 = vmul.f32 %v168, %v172
  %vm174 = vweird.f32 %v166
  %vm175 = vweird.f32 %v168
  %vm176 = vmor %vm174, %vm175
  %v177 = vsel %vm176, %v168, %v173
  %v178 = vrsqrt.pop %v167
  %v179 = vmul.f32 %v178, %v167
  %v180 = vmul.f32 %v179, %v178
  %v181 = vmul.f32 0.5, %v180
  %v182 = vsub.f32 1.5, %v181
  %v183 = vmul.f32 %v178, %v182
  %vm184 = vweird.f32 %v167
  %vm185 = vweird.f32 %v178
  %vm186 = vmor %vm184, %vm185
  %v187 = vsel %vm186, %v178, %v183
  %v188 = vmul.f32 %v154, %v177
  %v189 = vmul.f32 %v155, %v187
  %v190 = vld [vmem:[%s6] sm:$0x1]
  %v192 = vperm.slane %v190, 0
  %v194 = vmul.f32 %v188, %v192
  %v195 = vmul.f32 %v189, %v192
  %v196 = vld [vmem:[%s7] sm:$0x1]
  %v198 = vperm.slane %v196, 0
  %v200 = vadd.f32 %v194, %v198
  %v201 = vadd.f32 %v195, %v198
  %v202 = vld [vmem:[%s8] sm:$0xff]
  %v203 = vld [vmem:[%s8 + $0x8] sm:$0xff]
  %205 = vset.pattern.permute.xlu0 0
  %206 = vperm.xlu0 %205, %v202
  %v207 = vpop.permute.xlu0 %206
  %210 = vset.pattern.permute.xlu0 0
  %211 = vperm.xlu0 %210, %v203
  %v212 = vpop.permute.xlu0 %211
  %v214 = vmul.f32 %v200, %v207
  %v215 = vmul.f32 %v201, %v212
  %216 = vst.msk [vmem:[%s9] sm:$0xff] %vm60, %v214
  %217 = vst.msk [vmem:[%s9 + $0x8] sm:$0xff] %vm60, %v215
  // Predicated region
  $region38: #{transformer_forward.28} parent=0 // pred_check
    _
  $region39: #{transformer_forward.28} parent=0 // pred_check_branch
    %219 = sbr.rel (0) target = $region41
  $region40: #{transformer_forward.28} parent=0 // pred_region
    _
  $region41: #{transformer_forward.28} parent=0 // pred_fallthru
    _
  // Predicated region
  $region42: #{transformer_forward.28} parent=0 // pred_check
    _
  $region43: #{transformer_forward.28} parent=0 // pred_check_branch
    %221 = sbr.rel (0) target = $region45
  $region44: #{transformer_forward.28} parent=0 // pred_region
    _
  $region45: #{transformer_forward.28} parent=0 // pred_fallthru
    _

// kernel: transformer_forward.37
$region0: #{transformer_forward.37}
  #allocation0 [shape = 'u32[]', space=smem, size = 0x4, offset = 0x4, fixed_abs, tag = 'smem constant byte address 0x4 - core index']
  #allocation1 [shape = 'u32[72,128]{1,0:T(1,128)}', space=vmem, size = 0x9000, scoped, tag = 'internal scratch']
  %s0 = inlined_call_operand.vmem [shape: bf16[16,32], index: 0, kind: input, shape index: {}]
  %s1 = inlined_call_operand.vmem [shape: bf16[32,64], index: 1, kind: input, shape index: {}]
  %s2 = inlined_call_operand.vmem [shape: f32[1,64], index: 2, kind: input, shape index: {}]
  %s3 = inlined_call_operand.vmem [shape: bf16[16,32], index: 3, kind: output, shape index: {0}]
  %s4 = inlined_call_operand.vmem [shape: bf16[16,32], index: 4, kind: output, shape index: {1}]
  %5 = xla_tuple %s3, %s4
  %s6 = sld [smem:[#allocation0]]
  $region30: #{transformer_forward.37} parent=0
    _
  %s8 = ssub.s32 1, %s6
  %s9 = scalar_select 0, %s8, %s6
  // Predicated region
  $region2: #{transformer_forward.37} parent=0 // pred_check
    _
  $region3: #{transformer_forward.37} parent=0 // pred_check_branch
    %11 = sbr.rel (0) target = $region5
  $region4: #{transformer_forward.37} parent=0 // pred_region
    _
  $region5: #{transformer_forward.37} parent=0 // pred_fallthru
    _
  // Predicated region
  $region6: #{transformer_forward.37} parent=0 // pred_check
    _
  $region7: #{transformer_forward.37} parent=0 // pred_check_branch
    %13 = sbr.rel (0) target = $region9
  $region8: #{transformer_forward.37} parent=0 // pred_region
    _
  $region9: #{transformer_forward.37} parent=0 // pred_fallthru
    _
  // Predicated region
  $region10: #{transformer_forward.37} parent=0 // pred_check
    _
  $region11: #{transformer_forward.37} parent=0 // pred_check_branch
    %15 = sbr.rel (0) target = $region13
  $region12: #{transformer_forward.37} parent=0 // pred_region
    _
  $region13: #{transformer_forward.37} parent=0 // pred_fallthru
    _
  %v17 = vld [vmem:[%s0] sm:$0xf]
  %v18 = vld [vmem:[%s0 + $0x4] sm:$0xf]
  %v19 = vld [vmem:[%s1] sm:$0xf]
  %v20 = vld [vmem:[%s1 + $0x4] sm:$0xf]
  %v21 = vld [vmem:[%s1 + $0x8] sm:$0xf]
  %v22 = vld [vmem:[%s1 + $0xc] sm:$0xf]
  %v23 = vld [vmem:[%s2] sm:$0x1]
  %v25 = vperm.slane %v23, 0
  %v29 = vunpack.c.l.b16 %v17
  %v30 = vunpack.c.l.b16 %v18
  %v31 = vpack.c.b16 %v30, %v29
  %v36 = vunpack.c.l.b16 %v19
  %v37 = vunpack.c.l.b16 %v20
  %v38 = vunpack.c.l.b16 %v21
  %v39 = vunpack.c.l.b16 %v22
  %v40 = vpack.c.b16 %v37, %v36
  %v41 = vpack.c.b16 %v39, %v38
  %vm44 = vcmask 261120
  %v46 = vsel %vm44, %v31, 0
  %48 = vmatpush.bf16.msra.mxu0 0
  %49 = vmatpush.bf16.msra.mxu0 0
  %50 = vmatpush.bf16.msra.mxu0 0
  %51 = vmatpush.bf16.msra.mxu0 0
  %52 = vmatpush.bf16.msra.mxu0 0
  %53 = vmatpush.bf16.msra.mxu0 0
  %54 = vmatpush.bf16.msra.mxu0 %v41
  %55 = vmatpush.bf16.msra.mxu0 %v40
  %56 = vmatmul.bf16.gmra.mxu0 %v46
  %v57 = vpop.f32.mrf.mxu0
  %v58 = vadd.f32 %v25, %v57
  %v59 = vpop.f32.mrf.mxu0
  %v60 = vadd.f32 %v25, %v59
  %61 = vdwg.mxu0
  %v62 = vpack.c.bf16 %v58, %v58
  %v63 = vpack.c.bf16 %v60, %v60
  %vm64 = vcmask 257024
  %65 = vst.msk [vmem:[%s3] sm:$0xf] %vm64, %v62
  %66 = vst.msk [vmem:[%s3 + $0x4] sm:$0xf] %vm64, %v63
  %69 = vrot.lane.b32.xlu0 %v62, 96
  %v70 = vpop.permute.xlu0 %69
  %71 = vrot.lane.b32.xlu0 %v63, 96
  %v72 = vpop.permute.xlu0 %71
  %75 = vst.msk [vmem:[%s4] sm:$0xf] %vm64, %v70
  %76 = vst.msk [vmem:[%s4 + $0x4] sm:$0xf] %vm64, %v72
  // Predicated region
  $region14: #{transformer_forward.37} parent=0 // pred_check
    _
  $region15: #{transformer_forward.37} parent=0 // pred_check_branch
    %78 = sbr.rel (0) target = $region17
  $region16: #{transformer_forward.37} parent=0 // pred_region
    _
  $region17: #{transformer_forward.37} parent=0 // pred_fallthru
    _
  // Predicated region
  $region18: #{transformer_forward.37} parent=0 // pred_check
    _
  $region19: #{transformer_forward.37} parent=0 // pred_check_branch
    %80 = sbr.rel (0) target = $region21
  $region20: #{transformer_forward.37} parent=0 // pred_region
    _
  $region21: #{transformer_forward.37} parent=0 // pred_fallthru
    _
  // Predicated region
  $region22: #{transformer_forward.37} parent=0 // pred_check
    _
  $region23: #{transformer_forward.37} parent=0 // pred_check_branch
    %82 = sbr.rel (0) target = $region25
  $region24: #{transformer_forward.37} parent=0 // pred_region
    _
  $region25: #{transformer_forward.37} parent=0 // pred_fallthru
    _
  // Predicated region
  $region26: #{transformer_forward.37} parent=0 // pred_check
    _
  $region27: #{transformer_forward.37} parent=0 // pred_check_branch
    %84 = sbr.rel (0) target = $region29
  $region28: #{transformer_forward.37} parent=0 // pred_region
    _
  $region29: #{transformer_forward.37} parent=0 // pred_fallthru
    _

// kernel: transformer_forward.33
$region0: #{transformer_forward.33}
  #allocation0 [shape = 'u32[]', space=smem, size = 0x4, offset = 0x4, fixed_abs, tag = 'smem constant byte address 0x4 - core index']
  #allocation1 [shape = 'u32[72,128]{1,0:T(1,128)}', space=vmem, size = 0x9000, scoped, tag = 'internal scratch']
  %s0 = inlined_call_operand.vmem [shape: bf16[14,32], index: 0, kind: input, shape index: {}]
  %s1 = inlined_call_operand.vmem [shape: bf16[32,96], index: 1, kind: input, shape index: {}]
  %s2 = inlined_call_operand.vmem [shape: f32[1,96], index: 2, kind: input, shape index: {}]
  %s3 = inlined_call_operand.vmem [shape: bf16[14,32], index: 3, kind: output, shape index: {0}]
  %s4 = inlined_call_operand.vmem [shape: bf16[14,32], index: 4, kind: output, shape index: {1}]
  %s5 = inlined_call_operand.vmem [shape: bf16[14,32], index: 5, kind: output, shape index: {2}]
  %6 = xla_tuple %s3, %s4, %s5
  %s7 = sld [smem:[#allocation0]]
  $region38: #{transformer_forward.33} parent=0
    _
  %s9 = ssub.s32 1, %s7
  %s10 = scalar_select 0, %s9, %s7
  // Predicated region
  $region2: #{transformer_forward.33} parent=0 // pred_check
    _
  $region3: #{transformer_forward.33} parent=0 // pred_check_branch
    %12 = sbr.rel (0) target = $region5
  $region4: #{transformer_forward.33} parent=0 // pred_region
    _
  $region5: #{transformer_forward.33} parent=0 // pred_fallthru
    _
  // Predicated region
  $region6: #{transformer_forward.33} parent=0 // pred_check
    _
  $region7: #{transformer_forward.33} parent=0 // pred_check_branch
    %14 = sbr.rel (0) target = $region9
  $region8: #{transformer_forward.33} parent=0 // pred_region
    _
  $region9: #{transformer_forward.33} parent=0 // pred_fallthru
    _
  // Predicated region
  $region10: #{transformer_forward.33} parent=0 // pred_check
    _
  $region11: #{transformer_forward.33} parent=0 // pred_check_branch
    %16 = sbr.rel (0) target = $region13
  $region12: #{transformer_forward.33} parent=0 // pred_region
    _
  $region13: #{transformer_forward.33} parent=0 // pred_fallthru
    _
  %v18 = vld [vmem:[%s0] sm:$0xf]
  %v19 = vld [vmem:[%s0 + $0x4] sm:$0x7]
  %v20 = vld [vmem:[%s1] sm:$0xf]
  %v21 = vld [vmem:[%s1 + $0x4] sm:$0xf]
  %v22 = vld [vmem:[%s1 + $0x8] sm:$0xf]
  %v23 = vld [vmem:[%s1 + $0xc] sm:$0xf]
  %v24 = vld [vmem:[%s2] sm:$0x1]
  %v26 = vperm.slane %v24, 0
  %v30 = vunpack.c.l.b16 %v18
  %v31 = vunpack.c.l.b16 %v19
  %v32 = vpack.c.b16 %v31, %v30
  %v37 = vunpack.c.l.b16 %v20
  %v38 = vunpack.c.l.b16 %v21
  %v39 = vunpack.c.l.b16 %v22
  %v40 = vunpack.c.l.b16 %v23
  %v41 = vpack.c.b16 %v38, %v37
  %v42 = vpack.c.b16 %v40, %v39
  %vm45 = vcmask 261120
  %v47 = vsel %vm45, %v32, 0
  %49 = vmatpush.bf16.msra.mxu0 0
  %50 = vmatpush.bf16.msra.mxu0 0
  %51 = vmatpush.bf16.msra.mxu0 0
  %52 = vmatpush.bf16.msra.mxu0 0
  %53 = vmatpush.bf16.msra.mxu0 0
  %54 = vmatpush.bf16.msra.mxu0 0
  %55 = vmatpush.bf16.msra.mxu0 %v42
  %56 = vmatpush.bf16.msra.mxu0 %v41
  %57 = vmatmul.bf16.gmra.mxu0 %v47
  %v58 = vpop.f32.mrf.mxu0
  %v59 = vadd.f32 %v26, %v58
  %v60 = vpop.f32.mrf.mxu0
  %v61 = vadd.f32 %v26, %v60
  %62 = vdwg.mxu0
  %v63 = vpack.c.bf16 %v59, %v59
  %v64 = vpack.c.bf16 %v61, %v61
  %vm65 = vcmask 257024
  %66 = vst.msk [vmem:[%s3] sm:$0xf] %vm65, %v63
  %vm67 = vcmask 256000
  %68 = vst.msk [vmem:[%s3 + $0x4] sm:$0x7] %vm67, %v64
  %71 = vrot.lane.b32.xlu0 %v63, 96
  %v72 = vpop.permute.xlu0 %71
  %73 = vrot.lane.b32.xlu0 %v64, 96
  %v74 = vpop.permute.xlu0 %73
  %77 = vst.msk [vmem:[%s4] sm:$0xf] %vm65, %v72
  %78 = vst.msk [vmem:[%s4 + $0x4] sm:$0x7] %vm67, %v74
  %79 = vrot.lane.b32.xlu0 %v63, 64
  %v80 = vpop.permute.xlu0 %79
  %81 = vrot.lane.b32.xlu0 %v64, 64
  %v82 = vpop.permute.xlu0 %81
  %85 = vst.msk [vmem:[%s5] sm:$0xf] %vm65, %v80
  %86 = vst.msk [vmem:[%s5 + $0x4] sm:$0x7] %vm67, %v82
  // Predicated region
  $region14: #{transformer_forward.33} parent=0 // pred_check
    _
  $region15: #{transformer_forward.33} parent=0 // pred_check_branch
    %88 = sbr.rel (0) target = $region17
  $region16: #{transformer_forward.33} parent=0 // pred_region
    _
  $region17: #{transformer_forward.33} parent=0 // pred_fallthru
    _
  // Predicated region
  $region18: #{transformer_forward.33} parent=0 // pred_check
    _
  $region19: #{transformer_forward.33} parent=0 // pred_check_branch
    %90 = sbr.rel (0) target = $region21
  $region20: #{transformer_forward.33} parent=0 // pred_region
    _
  $region21: #{transformer_forward.33} parent=0 // pred_fallthru
    _
  // Predicated region
  $region22: #{transformer_forward.33} parent=0 // pred_check
    _
  $region23: #{transformer_forward.33} parent=0 // pred_check_branch
    %92 = sbr.rel (0) target = $region25
  $region24: #{transformer_forward.33} parent=0 // pred_region
    _
  $region25: #{transformer_forward.33} parent=0 // pred_fallthru
    _
  // Predicated region
  $region26: #{transformer_forward.33} parent=0 // pred_check
    _
  $region27: #{transformer_forward.33} parent=0 // pred_check_branch
    %94 = sbr.rel (0) target = $region29
  $region28: #{transformer_forward.33} parent=0 // pred_region
    _
  $region29: #{transformer_forward.33} parent=0 // pred_fallthru
    _
  // Predicated region
  $region30: #{transformer_forward.33} parent=0 // pred_check
    _
  $region31: #{transformer_forward.33} parent=0 // pred_check_branch
    %96 = sbr.rel (0) target = $region33
  $region32: #{transformer_forward.33} parent=0 // pred_region
    _
  $region33: #{transformer_forward.33} parent=0 // pred_fallthru
    _
  // Predicated region
  $region34: #{transformer_forward.33} parent=0 // pred_check
    _
  $region35: #{transformer_forward.33} parent=0 // pred_check_branch
    %98 = sbr.rel (0) target = $region37
  $region36: #{transformer_forward.33} parent=0 // pred_region
    _
  $region37: #{transformer_forward.33} parent=0 // pred_fallthru
    _

// kernel: transformer_forward.36
$region0: #{transformer_forward.36}
  #allocation0 [shape = 'u32[]', space=smem, size = 0x4, offset = 0x4, fixed_abs, tag = 'smem constant byte address 0x4 - core index']
  #allocation1 [shape = 'u32[72,128]{1,0:T(1,128)}', space=vmem, size = 0x9000, scoped, tag = 'internal scratch']
  %s0 = inlined_call_operand.vmem [shape: bf16[14,32], index: 0, kind: input, shape index: {}]
  %s1 = inlined_call_operand.vmem [shape: bf16[32,32], index: 1, kind: input, shape index: {}]
  %s2 = inlined_call_operand.vmem [shape: f32[1,32], index: 2, kind: input, shape index: {}]
  %s3 = inlined_call_operand.vmem [shape: bf16[14,32], index: 3, kind: output, shape index: {}]
  %s4 = sld [smem:[#allocation0]]
  $region22: #{transformer_forward.36} parent=0
    _
  %s6 = ssub.s32 1, %s4
  %s7 = scalar_select 0, %s6, %s4
  // Predicated region
  $region2: #{transformer_forward.36} parent=0 // pred_check
    _
  $region3: #{transformer_forward.36} parent=0 // pred_check_branch
    %9 = sbr.rel (0) target = $region5
  $region4: #{transformer_forward.36} parent=0 // pred_region
    _
  $region5: #{transformer_forward.36} parent=0 // pred_fallthru
    _
  // Predicated region
  $region6: #{transformer_forward.36} parent=0 // pred_check
    _
  $region7: #{transformer_forward.36} parent=0 // pred_check_branch
    %11 = sbr.rel (0) target = $region9
  $region8: #{transformer_forward.36} parent=0 // pred_region
    _
  $region9: #{transformer_forward.36} parent=0 // pred_fallthru
    _
  // Predicated region
  $region10: #{transformer_forward.36} parent=0 // pred_check
    _
  $region11: #{transformer_forward.36} parent=0 // pred_check_branch
    %13 = sbr.rel (0) target = $region13
  $region12: #{transformer_forward.36} parent=0 // pred_region
    _
  $region13: #{transformer_forward.36} parent=0 // pred_fallthru
    _
  %v15 = vld [vmem:[%s0] sm:$0xf]
  %v16 = vld [vmem:[%s0 + $0x4] sm:$0x7]
  %v17 = vld [vmem:[%s1] sm:$0xf]
  %v18 = vld [vmem:[%s1 + $0x4] sm:$0xf]
  %v19 = vld [vmem:[%s1 + $0x8] sm:$0xf]
  %v20 = vld [vmem:[%s1 + $0xc] sm:$0xf]
  %v21 = vld [vmem:[%s2] sm:$0x1]
  %v23 = vperm.slane %v21, 0
  %v27 = vunpack.c.l.b16 %v15
  %v28 = vunpack.c.l.b16 %v16
  %v29 = vpack.c.b16 %v28, %v27
  %v34 = vunpack.c.l.b16 %v17
  %v35 = vunpack.c.l.b16 %v18
  %v36 = vunpack.c.l.b16 %v19
  %v37 = vunpack.c.l.b16 %v20
  %v38 = vpack.c.b16 %v35, %v34
  %v39 = vpack.c.b16 %v37, %v36
  %vm42 = vcmask 261120
  %v44 = vsel %vm42, %v29, 0
  %46 = vmatpush.bf16.msra.mxu0 0
  %47 = vmatpush.bf16.msra.mxu0 0
  %48 = vmatpush.bf16.msra.mxu0 0
  %49 = vmatpush.bf16.msra.mxu0 0
  %50 = vmatpush.bf16.msra.mxu0 0
  %51 = vmatpush.bf16.msra.mxu0 0
  %52 = vmatpush.bf16.msra.mxu0 %v39
  %53 = vmatpush.bf16.msra.mxu0 %v38
  %54 = vmatmul.bf16.gmra.mxu0 %v44
  %v55 = vpop.f32.mrf.mxu0
  %v56 = vadd.f32 %v23, %v55
  %v57 = vpop.f32.mrf.mxu0
  %v58 = vadd.f32 %v23, %v57
  %59 = vdwg.mxu0
  %v60 = vpack.c.bf16 %v56, %v56
  %v61 = vpack.c.bf16 %v58, %v58
  %vm62 = vcmask 257024
  %63 = vst.msk [vmem:[%s3] sm:$0xf] %vm62, %v60
  %vm64 = vcmask 256000
  %65 = vst.msk [vmem:[%s3 + $0x4] sm:$0x7] %vm64, %v61
  // Predicated region
  $region14: #{transformer_forward.36} parent=0 // pred_check
    _
  $region15: #{transformer_forward.36} parent=0 // pred_check_branch
    %67 = sbr.rel (0) target = $region17
  $region16: #{transformer_forward.36} parent=0 // pred_region
    _
  $region17: #{transformer_forward.36} parent=0 // pred_fallthru
    _
  // Predicated region
  $region18: #{transformer_forward.36} parent=0 // pred_check
    _
  $region19: #{transformer_forward.36} parent=0 // pred_check_branch
    %69 = sbr.rel (0) target = $region21
  $region20: #{transformer_forward.36} parent=0 // pred_region
    _
  $region21: #{transformer_forward.36} parent=0 // pred_fallthru
    _

// kernel: transformer_forward.34
$region0: #{transformer_forward.34}
  #allocation0 [shape = 'u32[]', space=smem, size = 0x4, offset = 0x4, fixed_abs, tag = 'smem constant byte address 0x4 - core index']
  #allocation1 [shape = 'u32[72,128]{1,0:T(1,128)}', space=vmem, size = 0x9000, scoped, tag = 'internal scratch']
  %s0 = inlined_call_operand.vmem [shape: bf16[2,7,32], index: 0, kind: input, shape index: {}]
  %s1 = inlined_call_operand.vmem [shape: bf16[2,7,32], index: 1, kind: input, shape index: {}]
  %s2 = inlined_call_operand.vmem [shape: bf16[2,7,32], index: 2, kind: input, shape index: {}]
  %s3 = inlined_call_operand.vmem [shape: f32[2,7,7], index: 3, kind: input, shape index: {}]
  %s4 = inlined_call_operand.vmem [shape: f32[2,7,32], index: 4, kind: output, shape index: {}]
  %s5 = sld [smem:[#allocation0]]
  $region49: #{transformer_forward.34} parent=0
    _
  %s7 = ssub.s32 1, %s5
  %s8 = scalar_select 0, %s7, %s5
  loop: start=0, step=1, limit=4
  $region2: #{transformer_forward.34} parent=0 // loop_pre_header
    _
  $region3: #{transformer_forward.34} parent=0 // loop_header
    %s10 = sphi 0, %s14
    %p11 = scmp.ge.s32.totalorder %s10, 4
    %s20 = sphi 0, %s22
    %s23 = sphi 0, %s20
    %s24 = sphi 0, %s23
    %s40 = sphi 0, %s24
    %s46 = sphi 0, %s48
    %s49 = sphi 0, %s46
    %s50 = sphi 0, %s49
    %s66 = sphi 0, %s50
    %s72 = sphi 0, %s74
    %s75 = sphi 0, %s72
    %s76 = sphi 0, %s75
    %s92 = sphi 0, %s76
    %s98 = sphi 0, %s100
    %s101 = sphi 0, %s98
    %s102 = sphi 0, %s101
    %s118 = sphi 0, %s102
    %s124 = sphi 0, %s126
    %s127 = sphi 0, %s124
    %s128 = sphi 0, %s127
    %s144 = sphi 0, %s128
  $region4: #{transformer_forward.34} parent=0 // loop_header_branch
    %13 = sbr.rel (%p11) target = $region8
  $region5: #{transformer_forward.34} parent=0 // loop_body
    %s15 = ssub.s32 %s10, 1
    %s16 = ssub.s32 %s10, 2
    %s17 = sadd.s32 %s10, 1
    %s18 = ssub.s32 %s10, %s17
    %p19 = scmp.eq.s32.totalorder %s18, 0
    %s21 = sadd.s32 %s20, 1
    %s22 = scalar_select %p19, %s20, %s21
    %p25 = pneg %p19
    %p26 = scmp.eq.s32.totalorder %s10, 1
    %p27 = por %p25, %p26
    %p28 = scmp.ne.s32.totalorder %s20, %s23
    %p29 = scmp.eq.s32.totalorder %s10, 0
    %p30 = por %p28, %p29
    %p31 = scmp.ne.s32.totalorder %s20, %s23
    %p32 = scmp.eq.s32.totalorder %s15, 1
    %p33 = por %p31, %p32
    %p34 = scmp.ne.s32.totalorder %s23, %s24
    %p35 = scmp.eq.s32.totalorder %s15, 0
    %p36 = por %p34, %p35
    %p37 = scmp.ne.s32.totalorder %s23, %s24
    %p38 = scmp.eq.s32.totalorder %s16, 1
    %p39 = por %p37, %p38
    %p41 = scmp.ne.s32.totalorder %s24, %s40
    %p42 = scmp.eq.s32.totalorder %s16, 0
    %p43 = por %p41, %p42
    %s44 = ssub.s32 %s10, %s17
    %p45 = scmp.eq.s32.totalorder %s44, 0
    %s47 = sadd.s32 %s46, 1
    %s48 = scalar_select %p45, %s46, %s47
    %p51 = pneg %p45
    %p52 = scmp.eq.s32.totalorder %s10, 1
    %p53 = por %p51, %p52
    %p54 = scmp.ne.s32.totalorder %s46, %s49
    %p55 = scmp.eq.s32.totalorder %s10, 0
    %p56 = por %p54, %p55
    %p57 = scmp.ne.s32.totalorder %s46, %s49
    %p58 = scmp.eq.s32.totalorder %s15, 1
    %p59 = por %p57, %p58
    %p60 = scmp.ne.s32.totalorder %s49, %s50
    %p61 = scmp.eq.s32.totalorder %s15, 0
    %p62 = por %p60, %p61
    %p63 = scmp.ne.s32.totalorder %s49, %s50
    %p64 = scmp.eq.s32.totalorder %s16, 1
    %p65 = por %p63, %p64
    %p67 = scmp.ne.s32.totalorder %s50, %s66
    %p68 = scmp.eq.s32.totalorder %s16, 0
    %p69 = por %p67, %p68
    %s70 = ssub.s32 %s10, %s17
    %p71 = scmp.eq.s32.totalorder %s70, 0
    %s73 = sadd.s32 %s72, 1
    %s74 = scalar_select %p71, %s72, %s73
    %p77 = pneg %p71
    %p78 = scmp.eq.s32.totalorder %s10, 1
    %p79 = por %p77, %p78
    %p80 = scmp.ne.s32.totalorder %s72, %s75
    %p81 = scmp.eq.s32.totalorder %s10, 0
    %p82 = por %p80, %p81
    %p83 = scmp.ne.s32.totalorder %s72, %s75
    %p84 = scmp.eq.s32.totalorder %s15, 1
    %p85 = por %p83, %p84
    %p86 = scmp.ne.s32.totalorder %s75, %s76
    %p87 = scmp.eq.s32.totalorder %s15, 0
    %p88 = por %p86, %p87
    %p89 = scmp.ne.s32.totalorder %s75, %s76
    %p90 = scmp.eq.s32.totalorder %s16, 1
    %p91 = por %p89, %p90
    %p93 = scmp.ne.s32.totalorder %s76, %s92
    %p94 = scmp.eq.s32.totalorder %s16, 0
    %p95 = por %p93, %p94
    %s96 = ssub.s32 %s10, %s17
    %p97 = scmp.eq.s32.totalorder %s96, 0
    %s99 = sadd.s32 %s98, 1
    %s100 = scalar_select %p97, %s98, %s99
    %p103 = pneg %p97
    %p104 = scmp.eq.s32.totalorder %s10, 1
    %p105 = por %p103, %p104
    %p106 = scmp.ne.s32.totalorder %s98, %s101
    %p107 = scmp.eq.s32.totalorder %s10, 0
    %p108 = por %p106, %p107
    %p109 = scmp.ne.s32.totalorder %s98, %s101
    %p110 = scmp.eq.s32.totalorder %s15, 1
    %p111 = por %p109, %p110
    %p112 = scmp.ne.s32.totalorder %s101, %s102
    %p113 = scmp.eq.s32.totalorder %s15, 0
    %p114 = por %p112, %p113
    %p115 = scmp.ne.s32.totalorder %s101, %s102
    %p116 = scmp.eq.s32.totalorder %s16, 1
    %p117 = por %p115, %p116
    %p119 = scmp.ne.s32.totalorder %s102, %s118
    %p120 = scmp.eq.s32.totalorder %s16, 0
    %p121 = por %p119, %p120
    %s122 = ssub.s32 %s10, %s17
    %p123 = scmp.eq.s32.totalorder %s122, 0
    %s125 = sadd.s32 %s124, 1
    %s126 = scalar_select %p123, %s124, %s125
    %p129 = pneg %p123
    %p130 = scmp.eq.s32.totalorder %s10, 1
    %p131 = por %p129, %p130
    %p132 = scmp.ne.s32.totalorder %s124, %s127
    %p133 = scmp.eq.s32.totalorder %s10, 0
    %p134 = por %p132, %p133
    %p135 = scmp.ne.s32.totalorder %s124, %s127
    %p136 = scmp.eq.s32.totalorder %s15, 1
    %p137 = por %p135, %p136
    %p138 = scmp.ne.s32.totalorder %s127, %s128
    %p139 = scmp.eq.s32.totalorder %s15, 0
    %p140 = por %p138, %p139
    %p141 = scmp.ne.s32.totalorder %s127, %s128
    %p142 = scmp.eq.s32.totalorder %s16, 1
    %p143 = por %p141, %p142
    %p145 = scmp.ne.s32.totalorder %s128, %s144
    %p146 = scmp.eq.s32.totalorder %s16, 0
    %p147 = por %p145, %p146
    %p148 = scmp.le.s32.totalorder 1, %s10
    %p149 = scmp.lt.s32.totalorder %s10, 3
    %p150 = pnand %p148, %p149
    %p151 = pneg %p150
    // Predicated region
    $region9: #{transformer_forward.34} parent=5 // pred_check
      _
    $region10: #{transformer_forward.34} parent=5 // pred_check_branch
      %153 = sbr.rel (%p150) target = $region12
    $region11: #{transformer_forward.34} parent=5 // pred_region
      %s154 = ssub.s32 %s10, 1
    $region12: #{transformer_forward.34} parent=5 // pred_fallthru
      _
    %p155 = scmp.lt.s32.totalorder %s10, 2
    // Predicated region
    $region13: #{transformer_forward.34} parent=5 // pred_check
      %p156 = pneg %p155
    $region14: #{transformer_forward.34} parent=5 // pred_check_branch
      %158 = sbr.rel (%p156) target = $region16
    $region15: #{transformer_forward.34} parent=5 // pred_region
      // Predicated region
      $region17: #{transformer_forward.34} parent=15 // pred_check
        %p159 = pneg %p30
      $region18: #{transformer_forward.34} parent=15 // pred_check_branch
        %161 = sbr.rel (%p159) target = $region20
      $region19: #{transformer_forward.34} parent=15 // pred_region
        %p162 = scmp.lt.s32.totalorder %s10, 1
        %s163 = scalar_select %p162, %s10, 1
        %s164 = smul.addr %s163, 4
        %s165 = scalar_lea.vmem %s0, %s164
      $region20: #{transformer_forward.34} parent=15 // pred_fallthru
        _
      // Predicated region
      $region21: #{transformer_forward.34} parent=15 // pred_check
        %p166 = pneg %p56
      $region22: #{transformer_forward.34} parent=15 // pred_check_branch
        %168 = sbr.rel (%p166) target = $region24
      $region23: #{transformer_forward.34} parent=15 // pred_region
        %p169 = scmp.lt.s32.totalorder %s10, 1
        %s170 = scalar_select %p169, %s10, 1
        %s171 = smul.addr %s170, 4
        %s172 = scalar_lea.vmem %s1, %s171
      $region24: #{transformer_forward.34} parent=15 // pred_fallthru
        _
      // Predicated region
      $region25: #{transformer_forward.34} parent=15 // pred_check
        %p173 = pneg %p82
      $region26: #{transformer_forward.34} parent=15 // pred_check_branch
        %175 = sbr.rel (%p173) target = $region28
      $region27: #{transformer_forward.34} parent=15 // pred_region
        %p176 = scmp.lt.s32.totalorder %s10, 1
        %s177 = scalar_select %p176, %s10, 1
        %s178 = smul.addr %s177, 4
        %s179 = scalar_lea.vmem %s2, %s178
      $region28: #{transformer_forward.34} parent=15 // pred_fallthru
        _
      // Predicated region
      $region29: #{transformer_forward.34} parent=15 // pred_check
        %p180 = pneg %p108
      $region30: #{transformer_forward.34} parent=15 // pred_check_branch
        %182 = sbr.rel (%p180) target = $region32
      $region31: #{transformer_forward.34} parent=15 // pred_region
        %p183 = scmp.lt.s32.totalorder %s10, 1
        %s184 = scalar_select %p183, %s10, 1
        %s185 = smul.addr %s184, 8
        %s186 = scalar_lea.vmem %s3, %s185
      $region32: #{transformer_forward.34} parent=15 // pred_fallthru
        _
    $region16: #{transformer_forward.34} parent=5 // pred_fallthru
      _
    %p187 = scmp.le.s32.totalorder 1, %s10
    %p188 = scmp.lt.s32.totalorder %s10, 3
    %p189 = pnand %p187, %p188
    %p190 = pneg %p189
    // Predicated region
    $region33: #{transformer_forward.34} parent=5 // pred_check
      _
    $region34: #{transformer_forward.34} parent=5 // pred_check_branch
      %192 = sbr.rel (%p189) target = $region36
    $region35: #{transformer_forward.34} parent=5 // pred_region
      %s193 = ssub.s32 %s10, 1
      %p194 = scmp.lt.s32.totalorder %s15, 1
      %s195 = scalar_select %p194, %s15, 1
      %s196 = smul.addr %s195, 4
      %s197 = scalar_lea.vmem %s0, %s196
      %p198 = pneg %p36
      %p199 = pneg %p33
      %p200 = scmp.lt.s32.totalorder %s15, 1
      %s201 = scalar_select %p200, %s15, 1
      %s202 = smul.addr %s201, 4
      %s203 = scalar_lea.vmem %s1, %s202
      %p204 = pneg %p62
      %p205 = pneg %p59
      %p206 = scmp.lt.s32.totalorder %s15, 1
      %s207 = scalar_select %p206, %s15, 1
      %s208 = smul.addr %s207, 4
      %s209 = scalar_lea.vmem %s2, %s208
      %p210 = pneg %p88
      %p211 = pneg %p85
      %p212 = scmp.lt.s32.totalorder %s15, 1
      %s213 = scalar_select %p212, %s15, 1
      %s214 = smul.addr %s213, 8
      %s215 = scalar_lea.vmem %s3, %s214
      %p216 = pneg %p114
      %p217 = pneg %p111
      %p218 = pneg %p140
      %p219 = pneg %p137
      %p220 = scmp.lt.s32.totalorder %s15, 1
      %s221 = scalar_select %p220, %s15, 1
      %s222 = smul.addr %s221, 8
      %s223 = scalar_lea.vmem %s4, %s222
      %p224 = scmp.lt.s32.totalorder %s15, 1
      %s225 = scalar_select %p224, %s15, 1
      %s226 = smul.addr %s225, 4
      %s227 = scalar_lea.vmem %s0, %s226
      %p228 = scmp.lt.s32.totalorder %s15, 1
      %s229 = scalar_select %p228, %s15, 1
      %s230 = smul.addr %s229, 4
      %s231 = scalar_lea.vmem %s1, %s230
      %p232 = scmp.lt.s32.totalorder %s15, 1
      %s233 = scalar_select %p232, %s15, 1
      %s234 = smul.addr %s233, 4
      %s235 = scalar_lea.vmem %s2, %s234
      %p236 = scmp.lt.s32.totalorder %s15, 1
      %s237 = scalar_select %p236, %s15, 1
      %s238 = smul.addr %s237, 8
      %s239 = scalar_lea.vmem %s3, %s238
      %p240 = scmp.lt.s32.totalorder %s15, 1
      %s241 = scalar_select %p240, %s15, 1
      %s242 = smul.addr %s241, 8
      %s243 = scalar_lea.vmem %s4, %s242
      %v245 = vld [vmem:[%s227] sm:$0xf]
      %v246 = vld [vmem:[%s231] sm:$0xf]
      %v247 = vld [vmem:[%s235] sm:$0xf]
      %v248 = vld [vmem:[%s239] sm:$0x7f]
      %vm249 = vcmask 64512
      %v251 = vsel %vm249, %v245, 0
      %v254 = vsel %vm249, %v246, 0
      %256 = vmatpush.bf16.xpose.msra.mxu0 0
      %257 = vmatpush.bf16.xpose.msra.mxu0 0
      %258 = vmatpush.bf16.xpose.msra.mxu0 0
      %259 = vmatpush.bf16.xpose.msra.mxu0 0
      %260 = vmatpush.bf16.xpose.msra.mxu0 0
      %261 = vmatpush.bf16.xpose.msra.mxu0 0
      %262 = vmatpush.bf16.xpose.msra.mxu0 0
      %263 = vmatpush.bf16.xpose.msra.mxu0 %v254
      %264 = vmatmul.bf16.gmra.mxu0 %v251
      %v265 = vpop.f32.mrf.mxu0
      %v266 = vadd.f32 0.0, %v265
      %v267 = vpop.f32.mrf.mxu0
      %268 = vdwg.mxu0
      %v269 = vmul.f32 %v266, 0.35355338
      %v270 = vadd.f32 %v269, %v248
      %vm271 = vcmask 55296
      %v272 = vsel %vm271, %v270, -inf
      %273 = vmax.xlane.f32.xlu0 %v272
      %v274 = vpop.xlane.xlu0 %273
      %v275 = vsub.f32 %v270, %v274
      %v276 = vmul.f32 %v275, 1.442695
      %v277 = vpow.pop %v276
      %v278 = vsel %vm271, %v277, 0.0
      %279 = vadd.xlane.f32.xlu0 %v278
      %v280 = vpop.xlane.xlu0 %279
      %v281 = vrcp.pop %v280
      %v282 = vmul.f32 %v277, %v281
      %v283 = vpack.c.bf16 %v282, %v282
      %vm284 = vcmask 56320
      %v286 = vsel %vm284, %v283, 0
      %vm288 = vcmask 1042432
      %vm289 = vcmask 1043456
      %v290 = vsel %vm288, 4294967295, 65535
      %v291 = vsel %vm289, %v290, 0
      %v293 = vand.u32 %v247, %v291
      %295 = vmatpush.bf16.msra.mxu0 0
      %296 = vmatpush.bf16.msra.mxu0 0
      %297 = vmatpush.bf16.msra.mxu0 0
      %298 = vmatpush.bf16.msra.mxu0 0
      %299 = vmatpush.bf16.msra.mxu0 0
      %300 = vmatpush.bf16.msra.mxu0 0
      %301 = vmatpush.bf16.msra.mxu0 0
      %302 = vmatpush.bf16.msra.mxu0 %v293
      %303 = vmatmul.bf16.gmra.mxu0 %v286
      %v304 = vpop.f32.mrf.mxu0
      %v305 = vadd.f32 0.0, %v304
      %v306 = vpop.f32.mrf.mxu0
      %307 = vdwg.mxu0
      %vm308 = vcmask 63488
      %309 = vst.msk [vmem:[%s243] sm:$0x7f] %vm308, %v305
      %v311 = vunpack.c.l.b16 %v245
      %v312 = vpack.c.b16 %v311, %v311
      %313 = vrot.lane.b32.xlu0 %v312, 120
      %v314 = vpop.permute.xlu0 %313
      %v316 = vunpack.c.l.b16 %v246
      %v317 = vpack.c.b16 %v316, %v316
      %318 = vrot.lane.b32.xlu0 %v317, 120
      %v319 = vpop.permute.xlu0 %318
      %v321 = vsel %vm249, %v314, 0
      %v324 = vsel %vm249, %v319, 0
      %326 = vmatpush.bf16.xpose.msra.mxu0 0
      %327 = vmatpush.bf16.xpose.msra.mxu0 0
      %328 = vmatpush.bf16.xpose.msra.mxu0 0
      %329 = vmatpush.bf16.xpose.msra.mxu0 0
      %330 = vmatpush.bf16.xpose.msra.mxu0 0
      %331 = vmatpush.bf16.xpose.msra.mxu0 0
      %332 = vmatpush.bf16.xpose.msra.mxu0 0
      %333 = vmatpush.bf16.xpose.msra.mxu0 %v324
      %334 = vmatmul.bf16.gmra.mxu0 %v321
      %v335 = vpop.f32.mrf.mxu0
      %v336 = vadd.f32 0.0, %v335
      %v337 = vpop.f32.mrf.mxu0
      %338 = vdwg.mxu0
      %v339 = vmul.f32 %v336, 0.35355338
      %v340 = vadd.f32 %v339, %v248
      %v341 = vsel %vm271, %v340, -inf
      %342 = vmax.xlane.f32.xlu0 %v341
      %v343 = vpop.xlane.xlu0 %342
      %v344 = vsub.f32 %v340, %v343
      %v345 = vmul.f32 %v344, 1.442695
      %v346 = vpow.pop %v345
      %v347 = vsel %vm271, %v346, 0.0
      %348 = vadd.xlane.f32.xlu0 %v347
      %v349 = vpop.xlane.xlu0 %348
      %v350 = vrcp.pop %v349
      %v351 = vmul.f32 %v346, %v350
      %v352 = vpack.c.bf16 %v351, %v351
      %v354 = vunpack.c.l.b16 %v247
      %v355 = vpack.c.b16 %v354, %v354
      %356 = vrot.lane.b32.xlu0 %v355, 120
      %v357 = vpop.permute.xlu0 %356
      %v359 = vsel %vm284, %v352, 0
      %v362 = vand.u32 %v357, %v291
      %364 = vmatpush.bf16.msra.mxu0 0
      %365 = vmatpush.bf16.msra.mxu0 0
      %366 = vmatpush.bf16.msra.mxu0 0
      %367 = vmatpush.bf16.msra.mxu0 0
      %368 = vmatpush.bf16.msra.mxu0 0
      %369 = vmatpush.bf16.msra.mxu0 0
      %370 = vmatpush.bf16.msra.mxu0 0
      %371 = vmatpush.bf16.msra.mxu0 %v362
      %372 = vmatmul.bf16.gmra.mxu0 %v359
      %v373 = vpop.f32.mrf.mxu0
      %v374 = vadd.f32 0.0, %v373
      %v375 = vpop.f32.mrf.mxu0
      %376 = vdwg.mxu0
      %378 = vrot.lane.b32.xlu0 %v374, 8
      %v379 = vpop.permute.xlu0 %378
      %vm381 = vcmask 129088
      %382 = vst.msk [vmem:[%s243] sm:$0x7f] %vm381, %v379
      %383 = vrot.lane.b32.xlu0 %v312, 112
      %v384 = vpop.permute.xlu0 %383
      %385 = vrot.lane.b32.xlu0 %v317, 112
      %v386 = vpop.permute.xlu0 %385
      %v388 = vsel %vm249, %v384, 0
      %v391 = vsel %vm249, %v386, 0
      %393 = vmatpush.bf16.xpose.msra.mxu0 0
      %394 = vmatpush.bf16.xpose.msra.mxu0 0
      %395 = vmatpush.bf16.xpose.msra.mxu0 0
      %396 = vmatpush.bf16.xpose.msra.mxu0 0
      %397 = vmatpush.bf16.xpose.msra.mxu0 0
      %398 = vmatpush.bf16.xpose.msra.mxu0 0
      %399 = vmatpush.bf16.xpose.msra.mxu0 0
      %400 = vmatpush.bf16.xpose.msra.mxu0 %v391
      %401 = vmatmul.bf16.gmra.mxu0 %v388
      %v402 = vpop.f32.mrf.mxu0
      %v403 = vadd.f32 0.0, %v402
      %v404 = vpop.f32.mrf.mxu0
      %405 = vdwg.mxu0
      %v406 = vmul.f32 %v403, 0.35355338
      %v407 = vadd.f32 %v406, %v248
      %v408 = vsel %vm271, %v407, -inf
      %409 = vmax.xlane.f32.xlu0 %v408
      %v410 = vpop.xlane.xlu0 %409
      %v411 = vsub.f32 %v407, %v410
      %v412 = vmul.f32 %v411, 1.442695
      %v413 = vpow.pop %v412
      %v414 = vsel %vm271, %v413, 0.0
      %415 = vadd.xlane.f32.xlu0 %v414
      %v416 = vpop.xlane.xlu0 %415
      %v417 = vrcp.pop %v416
      %v418 = vmul.f32 %v413, %v417
      %v419 = vpack.c.bf16 %v418, %v418
      %420 = vrot.lane.b32.xlu0 %v355, 112
      %v421 = vpop.permute.xlu0 %420
      %v423 = vsel %vm284, %v419, 0
      %v426 = vand.u32 %v421, %v291
      %428 = vmatpush.bf16.msra.mxu0 0
      %429 = vmatpush.bf16.msra.mxu0 0
      %430 = vmatpush.bf16.msra.mxu0 0
      %431 = vmatpush.bf16.msra.mxu0 0
      %432 = vmatpush.bf16.msra.mxu0 0
      %433 = vmatpush.bf16.msra.mxu0 0
      %434 = vmatpush.bf16.msra.mxu0 0
      %435 = vmatpush.bf16.msra.mxu0 %v426
      %436 = vmatmul.bf16.gmra.mxu0 %v423
      %v437 = vpop.f32.mrf.mxu0
      %v438 = vadd.f32 0.0, %v437
      %v439 = vpop.f32.mrf.mxu0
      %440 = vdwg.mxu0
      %442 = vrot.lane.b32.xlu0 %v438, 16
      %v443 = vpop.permute.xlu0 %442
      %vm445 = vcmask 194688
      %446 = vst.msk [vmem:[%s243] sm:$0x7f] %vm445, %v443
      %447 = vrot.lane.b32.xlu0 %v312, 104
      %v448 = vpop.permute.xlu0 %447
      %449 = vrot.lane.b32.xlu0 %v317, 104
      %v450 = vpop.permute.xlu0 %449
      %v452 = vsel %vm249, %v448, 0
      %v455 = vsel %vm249, %v450, 0
      %457 = vmatpush.bf16.xpose.msra.mxu0 0
      %458 = vmatpush.bf16.xpose.msra.mxu0 0
      %459 = vmatpush.bf16.xpose.msra.mxu0 0
      %460 = vmatpush.bf16.xpose.msra.mxu0 0
      %461 = vmatpush.bf16.xpose.msra.mxu0 0
      %462 = vmatpush.bf16.xpose.msra.mxu0 0
      %463 = vmatpush.bf16.xpose.msra.mxu0 0
      %464 = vmatpush.bf16.xpose.msra.mxu0 %v455
      %465 = vmatmul.bf16.gmra.mxu0 %v452
      %v466 = vpop.f32.mrf.mxu0
      %v467 = vadd.f32 0.0, %v466
      %v468 = vpop.f32.mrf.mxu0
      %469 = vdwg.mxu0
      %v470 = vmul.f32 %v467, 0.35355338
      %v471 = vadd.f32 %v470, %v248
      %v472 = vsel %vm271, %v471, -inf
      %473 = vmax.xlane.f32.xlu0 %v472
      %v474 = vpop.xlane.xlu0 %473
      %v475 = vsub.f32 %v471, %v474
      %v476 = vmul.f32 %v475, 1.442695
      %v477 = vpow.pop %v476
      %v478 = vsel %vm271, %v477, 0.0
      %479 = vadd.xlane.f32.xlu0 %v478
      %v480 = vpop.xlane.xlu0 %479
      %v481 = vrcp.pop %v480
      %v482 = vmul.f32 %v477, %v481
      %v483 = vpack.c.bf16 %v482, %v482
      %484 = vrot.lane.b32.xlu0 %v355, 104
      %v485 = vpop.permute.xlu0 %484
      %v487 = vsel %vm284, %v483, 0
      %v490 = vand.u32 %v485, %v291
      %492 = vmatpush.bf16.msra.mxu0 0
      %493 = vmatpush.bf16.msra.mxu0 0
      %494 = vmatpush.bf16.msra.mxu0 0
      %495 = vmatpush.bf16.msra.mxu0 0
      %496 = vmatpush.bf16.msra.mxu0 0
      %497 = vmatpush.bf16.msra.mxu0 0
      %498 = vmatpush.bf16.msra.mxu0 0
      %499 = vmatpush.bf16.msra.mxu0 %v490
      %500 = vmatmul.bf16.gmra.mxu0 %v487
      %v501 = vpop.f32.mrf.mxu0
      %v502 = vadd.f32 0.0, %v501
      %v503 = vpop.f32.mrf.mxu0
      %504 = vdwg.mxu0
      %506 = vrot.lane.b32.xlu0 %v502, 24
      %v507 = vpop.permute.xlu0 %506
      %vm509 = vcmask 260288
      %510 = vst.msk [vmem:[%s243] sm:$0x7f] %vm509, %v507
      %p511 = scmp.lt.s32.totalorder %s15, 1
      %s512 = scalar_select %p511, %s15, 1
      %s513 = smul.addr %s512, 8
      %s514 = scalar_lea.vmem %s4, %s513
      // Predicated region
      $region37: #{transformer_forward.34} parent=35 // pred_check
        %p515 = pneg %p137
      $region38: #{transformer_forward.34} parent=35 // pred_check_branch
        %517 = sbr.rel (%p515) target = $region40
      $region39: #{transformer_forward.34} parent=35 // pred_region
        _
      $region40: #{transformer_forward.34} parent=35 // pred_fallthru
        _
    $region36: #{transformer_forward.34} parent=5 // pred_fallthru
      _
    %p518 = scmp.le.s32.totalorder 2, %s10
    // Predicated region
    $region41: #{transformer_forward.34} parent=5 // pred_check
      %p519 = pneg %p518
    $region42: #{transformer_forward.34} parent=5 // pred_check_branch
      %521 = sbr.rel (%p519) target = $region44
    $region43: #{transformer_forward.34} parent=5 // pred_region
      %s522 = ssub.s32 %s10, 2
      // Predicated region
      $region45: #{transformer_forward.34} parent=43 // pred_check
        %p523 = pneg %p143
      $region46: #{transformer_forward.34} parent=43 // pred_check_branch
        %525 = sbr.rel (%p523) target = $region48
      $region47: #{transformer_forward.34} parent=43 // pred_region
        %p526 = scmp.lt.s32.totalorder %s16, 1
        %s527 = scalar_select %p526, %s16, 1
        %s528 = smul.addr %s527, 8
        %s529 = scalar_lea.vmem %s4, %s528
      $region48: #{transformer_forward.34} parent=43 // pred_fallthru
        _
    $region44: #{transformer_forward.34} parent=5 // pred_fallthru
      _
  $region6: #{transformer_forward.34} parent=0 // loop_footer
    %s14 = sadd.s32 1, %s10
  $region7: #{transformer_forward.34} parent=0 // loop_footer_branch
    %9 = sbr.rel target = $region3
  $region8: #{transformer_forward.34} parent=0 // loop_exit
    _

// kernel: transformer_forward.35
$region0: #{transformer_forward.35}
  #allocation0 [shape = 'u32[]', space=smem, size = 0x4, offset = 0x4, fixed_abs, tag = 'smem constant byte address 0x4 - core index']
  #allocation1 [shape = 'u32[72,128]{1,0:T(1,128)}', space=vmem, size = 0x9000, scoped, tag = 'internal scratch']
  %s0 = inlined_call_operand.vmem [shape: bf16[14,32], index: 0, kind: input, shape index: {}]
  %s1 = inlined_call_operand.vmem [shape: bf16[32,32], index: 1, kind: input, shape index: {}]
  %s2 = inlined_call_operand.vmem [shape: f32[1,32], index: 2, kind: input, shape index: {}]
  %s3 = inlined_call_operand.vmem [shape: f32[14,32], index: 3, kind: input, shape index: {}]
  %s4 = inlined_call_operand.vmem [shape: f32[1,32], index: 4, kind: input, shape index: {}]
  %s5 = inlined_call_operand.vmem [shape: f32[1,32], index: 5, kind: input, shape index: {}]
  %s6 = inlined_call_operand.vmem [shape: f32[14,1], index: 6, kind: input, shape index: {}]
  %s7 = inlined_call_operand.vmem [shape: f32[14,32], index: 7, kind: output, shape index: {}]
  %s8 = sld [smem:[#allocation0]]
  $region38: #{transformer_forward.35} parent=0
    _
  %s10 = ssub.s32 1, %s8
  %s11 = scalar_select 0, %s10, %s8
  // Predicated region
  $region2: #{transformer_forward.35} parent=0 // pred_check
    _
  $region3: #{transformer_forward.35} parent=0 // pred_check_branch
    %13 = sbr.rel (0) target = $region5
  $region4: #{transformer_forward.35} parent=0 // pred_region
    _
  $region5: #{transformer_forward.35} parent=0 // pred_fallthru
    _
  // Predicated region
  $region6: #{transformer_forward.35} parent=0 // pred_check
    _
  $region7: #{transformer_forward.35} parent=0 // pred_check_branch
    %15 = sbr.rel (0) target = $region9
  $region8: #{transformer_forward.35} parent=0 // pred_region
    _
  $region9: #{transformer_forward.35} parent=0 // pred_fallthru
    _
  // Predicated region
  $region10: #{transformer_forward.35} parent=0 // pred_check
    _
  $region11: #{transformer_forward.35} parent=0 // pred_check_branch
    %17 = sbr.rel (0) target = $region13
  $region12: #{transformer_forward.35} parent=0 // pred_region
    _
  $region13: #{transformer_forward.35} parent=0 // pred_fallthru
    _
  // Predicated region
  $region14: #{transformer_forward.35} parent=0 // pred_check
    _
  $region15: #{transformer_forward.35} parent=0 // pred_check_branch
    %19 = sbr.rel (0) target = $region17
  $region16: #{transformer_forward.35} parent=0 // pred_region
    _
  $region17: #{transformer_forward.35} parent=0 // pred_fallthru
    _
  // Predicated region
  $region18: #{transformer_forward.35} parent=0 // pred_check
    _
  $region19: #{transformer_forward.35} parent=0 // pred_check_branch
    %21 = sbr.rel (0) target = $region21
  $region20: #{transformer_forward.35} parent=0 // pred_region
    _
  $region21: #{transformer_forward.35} parent=0 // pred_fallthru
    _
  // Predicated region
  $region22: #{transformer_forward.35} parent=0 // pred_check
    _
  $region23: #{transformer_forward.35} parent=0 // pred_check_branch
    %23 = sbr.rel (0) target = $region25
  $region24: #{transformer_forward.35} parent=0 // pred_region
    _
  $region25: #{transformer_forward.35} parent=0 // pred_fallthru
    _
  // Predicated region
  $region26: #{transformer_forward.35} parent=0 // pred_check
    _
  $region27: #{transformer_forward.35} parent=0 // pred_check_branch
    %25 = sbr.rel (0) target = $region29
  $region28: #{transformer_forward.35} parent=0 // pred_region
    _
  $region29: #{transformer_forward.35} parent=0 // pred_fallthru
    _
  %v27 = vld [vmem:[%s0] sm:$0xf]
  %v28 = vld [vmem:[%s0 + $0x4] sm:$0x7]
  %v29 = vld [vmem:[%s1] sm:$0xf]
  %v30 = vld [vmem:[%s1 + $0x4] sm:$0xf]
  %v31 = vld [vmem:[%s1 + $0x8] sm:$0xf]
  %v32 = vld [vmem:[%s1 + $0xc] sm:$0xf]
  %v33 = vld [vmem:[%s2] sm:$0x1]
  %v35 = vperm.slane %v33, 0
  %v39 = vunpack.c.l.b16 %v27
  %v40 = vunpack.c.l.b16 %v28
  %v41 = vpack.c.b16 %v40, %v39
  %v46 = vunpack.c.l.b16 %v29
  %v47 = vunpack.c.l.b16 %v30
  %v48 = vunpack.c.l.b16 %v31
  %v49 = vunpack.c.l.b16 %v32
  %v50 = vpack.c.b16 %v47, %v46
  %v51 = vpack.c.b16 %v49, %v48
  %vm54 = vcmask 261120
  %v56 = vsel %vm54, %v41, 0
  %58 = vmatpush.bf16.msra.mxu0 0
  %59 = vmatpush.bf16.msra.mxu0 0
  %60 = vmatpush.bf16.msra.mxu0 0
  %61 = vmatpush.bf16.msra.mxu0 0
  %62 = vmatpush.bf16.msra.mxu0 0
  %63 = vmatpush.bf16.msra.mxu0 0
  %64 = vmatpush.bf16.msra.mxu0 %v51
  %65 = vmatpush.bf16.msra.mxu0 %v50
  %66 = vmatmul.bf16.gmra.mxu0 %v56
  %v67 = vpop.f32.mrf.mxu0
  %v68 = vadd.f32 %v35, %v67
  %v69 = vpop.f32.mrf.mxu0
  %v70 = vadd.f32 %v35, %v69
  %71 = vdwg.mxu0
  %v72 = vld [vmem:[%s3] sm:$0xff]
  %v73 = vld [vmem:[%s3 + $0x8] sm:$0x3f]
  %v74 = vadd.f32 %v68, %v72
  %v75 = vadd.f32 %v70, %v73
  %v76 = vsel %vm54, %v74, 0.0
  %77 = vadd.xlane.f32.xlu0 %v76
  %v78 = vpop.xlane.xlu0 %77
  %vm79 = vcmask 259072
  %v80 = vsel %vm79, %v75, 0.0
  %81 = vadd.xlane.f32.xlu0 %v80
  %v82 = vpop.xlane.xlu0 %81
  %v83 = vrcp.pop 32.0
  %v84 = vmul.f32 32.0, %v83
  %v85 = vsub.f32 1.0, %v84
  %v86 = vmul.f32 %v83, %v85
  %v87 = vadd.f32 %v83, %v86
  %vm88 = vweird.f32 %v83
  %v89 = vsel %vm88, %v83, %v87
  %v90 = vmul.f32 %v78, %v89
  %v91 = vmul.f32 %v82, %v89
  %v92 = vsub.f32 %v74, %v90
  %v93 = vsub.f32 %v75, %v91
  %v94 = vmul.f32 %v92, %v92
  %v95 = vmul.f32 %v93, %v93
  %v96 = vsel %vm54, %v94, 0.0
  %97 = vadd.xlane.f32.xlu0 %v96
  %v98 = vpop.xlane.xlu0 %97
  %v99 = vsel %vm79, %v95, 0.0
  %100 = vadd.xlane.f32.xlu0 %v99
  %v101 = vpop.xlane.xlu0 %100
  %v102 = vmul.f32 %v98, %v89
  %v103 = vmul.f32 %v101, %v89
  %v104 = vadd.f32 %v102, 1e-05
  %v105 = vadd.f32 %v103, 1e-05
  %v106 = vrsqrt.pop %v104
  %v107 = vmul.f32 %v106, %v104
  %v108 = vmul.f32 %v107, %v106
  %v109 = vmul.f32 0.5, %v108
  %v110 = vsub.f32 1.5, %v109
  %v111 = vmul.f32 %v106, %v110
  %vm112 = vweird.f32 %v104
  %vm113 = vweird.f32 %v106
  %vm114 = vmor %vm112, %vm113
  %v115 = vsel %vm114, %v106, %v111
  %v116 = vrsqrt.pop %v105
  %v117 = vmul.f32 %v116, %v105
  %v118 = vmul.f32 %v117, %v116
  %v119 = vmul.f32 0.5, %v118
  %v120 = vsub.f32 1.5, %v119
  %v121 = vmul.f32 %v116, %v120
  %vm122 = vweird.f32 %v105
  %vm123 = vweird.f32 %v116
  %vm124 = vmor %vm122, %vm123
  %v125 = vsel %vm124, %v116, %v121
  %v126 = vmul.f32 %v92, %v115
  %v127 = vmul.f32 %v93, %v125
  %v128 = vld [vmem:[%s4] sm:$0x1]
  %v130 = vperm.slane %v128, 0
  %v132 = vmul.f32 %v126, %v130
  %v133 = vmul.f32 %v127, %v130
  %v134 = vld [vmem:[%s5] sm:$0x1]
  %v136 = vperm.slane %v134, 0
  %v138 = vadd.f32 %v132, %v136
  %v139 = vadd.f32 %v133, %v136
  %v140 = vld [vmem:[%s6] sm:$0xff]
  %v141 = vld [vmem:[%s6 + $0x8] sm:$0x3f]
  %143 = vset.pattern.permute.xlu0 0
  %144 = vperm.xlu0 %143, %v140
  %v145 = vpop.permute.xlu0 %144
  %148 = vset.pattern.permute.xlu0 0
  %149 = vperm.xlu0 %148, %v141
  %v150 = vpop.permute.xlu0 %149
  %v152 = vmul.f32 %v138, %v145
  %v153 = vmul.f32 %v139, %v150
  %154 = vst.msk [vmem:[%s7] sm:$0xff] %vm54, %v152
  %155 = vst.msk [vmem:[%s7 + $0x8] sm:$0x3f] %vm79, %v153
  // Predicated region
  $region30: #{transformer_forward.35} parent=0 // pred_check
    _
  $region31: #{transformer_forward.35} parent=0 // pred_check_branch
    %157 = sbr.rel (0) target = $region33
  $region32: #{transformer_forward.35} parent=0 // pred_region
    _
  $region33: #{transformer_forward.35} parent=0 // pred_fallthru
    _
  // Predicated region
  $region34: #{transformer_forward.35} parent=0 // pred_check
    _
  $region35: #{transformer_forward.35} parent=0 // pred_check_branch
    %159 = sbr.rel (0) target = $region37
  $region36: #{transformer_forward.35} parent=0 // pred_region
    _
  $region37: #{transformer_forward.35} parent=0 // pred_fallthru
    _

// kernel: transformer_forward.38
$region0: #{transformer_forward.38}
  #allocation0 [shape = 'u32[]', space=smem, size = 0x4, offset = 0x4, fixed_abs, tag = 'smem constant byte address 0x4 - core index']
  #allocation1 [shape = 'u32[72,128]{1,0:T(1,128)}', space=vmem, size = 0x9000, scoped, tag = 'internal scratch']
  %s0 = inlined_call_operand.vmem [shape: bf16[2,7,32], index: 0, kind: input, shape index: {}]
  %s1 = inlined_call_operand.vmem [shape: bf16[2,8,32], index: 1, kind: input, shape index: {}]
  %s2 = inlined_call_operand.vmem [shape: bf16[2,8,32], index: 2, kind: input, shape index: {}]
  %s3 = inlined_call_operand.vmem [shape: f32[2,7,8], index: 3, kind: input, shape index: {}]
  %s4 = inlined_call_operand.vmem [shape: f32[2,7,32], index: 4, kind: output, shape index: {}]
  %s5 = sld [smem:[#allocation0]]
  $region49: #{transformer_forward.38} parent=0
    _
  %s7 = ssub.s32 1, %s5
  %s8 = scalar_select 0, %s7, %s5
  loop: start=0, step=1, limit=4
  $region2: #{transformer_forward.38} parent=0 // loop_pre_header
    _
  $region3: #{transformer_forward.38} parent=0 // loop_header
    %s10 = sphi 0, %s14
    %p11 = scmp.ge.s32.totalorder %s10, 4
    %s20 = sphi 0, %s22
    %s23 = sphi 0, %s20
    %s24 = sphi 0, %s23
    %s40 = sphi 0, %s24
    %s46 = sphi 0, %s48
    %s49 = sphi 0, %s46
    %s50 = sphi 0, %s49
    %s66 = sphi 0, %s50
    %s72 = sphi 0, %s74
    %s75 = sphi 0, %s72
    %s76 = sphi 0, %s75
    %s92 = sphi 0, %s76
    %s98 = sphi 0, %s100
    %s101 = sphi 0, %s98
    %s102 = sphi 0, %s101
    %s118 = sphi 0, %s102
    %s124 = sphi 0, %s126
    %s127 = sphi 0, %s124
    %s128 = sphi 0, %s127
    %s144 = sphi 0, %s128
  $region4: #{transformer_forward.38} parent=0 // loop_header_branch
    %13 = sbr.rel (%p11) target = $region8
  $region5: #{transformer_forward.38} parent=0 // loop_body
    %s15 = ssub.s32 %s10, 1
    %s16 = ssub.s32 %s10, 2
    %s17 = sadd.s32 %s10, 1
    %s18 = ssub.s32 %s10, %s17
    %p19 = scmp.eq.s32.totalorder %s18, 0
    %s21 = sadd.s32 %s20, 1
    %s22 = scalar_select %p19, %s20, %s21
    %p25 = pneg %p19
    %p26 = scmp.eq.s32.totalorder %s10, 1
    %p27 = por %p25, %p26
    %p28 = scmp.ne.s32.totalorder %s20, %s23
    %p29 = scmp.eq.s32.totalorder %s10, 0
    %p30 = por %p28, %p29
    %p31 = scmp.ne.s32.totalorder %s20, %s23
    %p32 = scmp.eq.s32.totalorder %s15, 1
    %p33 = por %p31, %p32
    %p34 = scmp.ne.s32.totalorder %s23, %s24
    %p35 = scmp.eq.s32.totalorder %s15, 0
    %p36 = por %p34, %p35
    %p37 = scmp.ne.s32.totalorder %s23, %s24
    %p38 = scmp.eq.s32.totalorder %s16, 1
    %p39 = por %p37, %p38
    %p41 = scmp.ne.s32.totalorder %s24, %s40
    %p42 = scmp.eq.s32.totalorder %s16, 0
    %p43 = por %p41, %p42
    %s44 = ssub.s32 %s10, %s17
    %p45 = scmp.eq.s32.totalorder %s44, 0
    %s47 = sadd.s32 %s46, 1
    %s48 = scalar_select %p45, %s46, %s47
    %p51 = pneg %p45
    %p52 = scmp.eq.s32.totalorder %s10, 1
    %p53 = por %p51, %p52
    %p54 = scmp.ne.s32.totalorder %s46, %s49
    %p55 = scmp.eq.s32.totalorder %s10, 0
    %p56 = por %p54, %p55
    %p57 = scmp.ne.s32.totalorder %s46, %s49
    %p58 = scmp.eq.s32.totalorder %s15, 1
    %p59 = por %p57, %p58
    %p60 = scmp.ne.s32.totalorder %s49, %s50
    %p61 = scmp.eq.s32.totalorder %s15, 0
    %p62 = por %p60, %p61
    %p63 = scmp.ne.s32.totalorder %s49, %s50
    %p64 = scmp.eq.s32.totalorder %s16, 1
    %p65 = por %p63, %p64
    %p67 = scmp.ne.s32.totalorder %s50, %s66
    %p68 = scmp.eq.s32.totalorder %s16, 0
    %p69 = por %p67, %p68
    %s70 = ssub.s32 %s10, %s17
    %p71 = scmp.eq.s32.totalorder %s70, 0
    %s73 = sadd.s32 %s72, 1
    %s74 = scalar_select %p71, %s72, %s73
    %p77 = pneg %p71
    %p78 = scmp.eq.s32.totalorder %s10, 1
    %p79 = por %p77, %p78
    %p80 = scmp.ne.s32.totalorder %s72, %s75
    %p81 = scmp.eq.s32.totalorder %s10, 0
    %p82 = por %p80, %p81
    %p83 = scmp.ne.s32.totalorder %s72, %s75
    %p84 = scmp.eq.s32.totalorder %s15, 1
    %p85 = por %p83, %p84
    %p86 = scmp.ne.s32.totalorder %s75, %s76
    %p87 = scmp.eq.s32.totalorder %s15, 0
    %p88 = por %p86, %p87
    %p89 = scmp.ne.s32.totalorder %s75, %s76
    %p90 = scmp.eq.s32.totalorder %s16, 1
    %p91 = por %p89, %p90
    %p93 = scmp.ne.s32.totalorder %s76, %s92
    %p94 = scmp.eq.s32.totalorder %s16, 0
    %p95 = por %p93, %p94
    %s96 = ssub.s32 %s10, %s17
    %p97 = scmp.eq.s32.totalorder %s96, 0
    %s99 = sadd.s32 %s98, 1
    %s100 = scalar_select %p97, %s98, %s99
    %p103 = pneg %p97
    %p104 = scmp.eq.s32.totalorder %s10, 1
    %p105 = por %p103, %p104
    %p106 = scmp.ne.s32.totalorder %s98, %s101
    %p107 = scmp.eq.s32.totalorder %s10, 0
    %p108 = por %p106, %p107
    %p109 = scmp.ne.s32.totalorder %s98, %s101
    %p110 = scmp.eq.s32.totalorder %s15, 1
    %p111 = por %p109, %p110
    %p112 = scmp.ne.s32.totalorder %s101, %s102
    %p113 = scmp.eq.s32.totalorder %s15, 0
    %p114 = por %p112, %p113
    %p115 = scmp.ne.s32.totalorder %s101, %s102
    %p116 = scmp.eq.s32.totalorder %s16, 1
    %p117 = por %p115, %p116
    %p119 = scmp.ne.s32.totalorder %s102, %s118
    %p120 = scmp.eq.s32.totalorder %s16, 0
    %p121 = por %p119, %p120
    %s122 = ssub.s32 %s10, %s17
    %p123 = scmp.eq.s32.totalorder %s122, 0
    %s125 = sadd.s32 %s124, 1
    %s126 = scalar_select %p123, %s124, %s125
    %p129 = pneg %p123
    %p130 = scmp.eq.s32.totalorder %s10, 1
    %p131 = por %p129, %p130
    %p132 = scmp.ne.s32.totalorder %s124, %s127
    %p133 = scmp.eq.s32.totalorder %s10, 0
    %p134 = por %p132, %p133
    %p135 = scmp.ne.s32.totalorder %s124, %s127
    %p136 = scmp.eq.s32.totalorder %s15, 1
    %p137 = por %p135, %p136
    %p138 = scmp.ne.s32.totalorder %s127, %s128
    %p139 = scmp.eq.s32.totalorder %s15, 0
    %p140 = por %p138, %p139
    %p141 = scmp.ne.s32.totalorder %s127, %s128
    %p142 = scmp.eq.s32.totalorder %s16, 1
    %p143 = por %p141, %p142
    %p145 = scmp.ne.s32.totalorder %s128, %s144
    %p146 = scmp.eq.s32.totalorder %s16, 0
    %p147 = por %p145, %p146
    %p148 = scmp.le.s32.totalorder 1, %s10
    %p149 = scmp.lt.s32.totalorder %s10, 3
    %p150 = pnand %p148, %p149
    %p151 = pneg %p150
    // Predicated region
    $region9: #{transformer_forward.38} parent=5 // pred_check
      _
    $region10: #{transformer_forward.38} parent=5 // pred_check_branch
      %153 = sbr.rel (%p150) target = $region12
    $region11: #{transformer_forward.38} parent=5 // pred_region
      %s154 = ssub.s32 %s10, 1
    $region12: #{transformer_forward.38} parent=5 // pred_fallthru
      _
    %p155 = scmp.lt.s32.totalorder %s10, 2
    // Predicated region
    $region13: #{transformer_forward.38} parent=5 // pred_check
      %p156 = pneg %p155
    $region14: #{transformer_forward.38} parent=5 // pred_check_branch
      %158 = sbr.rel (%p156) target = $region16
    $region15: #{transformer_forward.38} parent=5 // pred_region
      // Predicated region
      $region17: #{transformer_forward.38} parent=15 // pred_check
        %p159 = pneg %p30
      $region18: #{transformer_forward.38} parent=15 // pred_check_branch
        %161 = sbr.rel (%p159) target = $region20
      $region19: #{transformer_forward.38} parent=15 // pred_region
        %p162 = scmp.lt.s32.totalorder %s10, 1
        %s163 = scalar_select %p162, %s10, 1
        %s164 = smul.addr %s163, 4
        %s165 = scalar_lea.vmem %s0, %s164
      $region20: #{transformer_forward.38} parent=15 // pred_fallthru
        _
      // Predicated region
      $region21: #{transformer_forward.38} parent=15 // pred_check
        %p166 = pneg %p56
      $region22: #{transformer_forward.38} parent=15 // pred_check_branch
        %168 = sbr.rel (%p166) target = $region24
      $region23: #{transformer_forward.38} parent=15 // pred_region
        %p169 = scmp.lt.s32.totalorder %s10, 1
        %s170 = scalar_select %p169, %s10, 1
        %s171 = smul.addr %s170, 4
        %s172 = scalar_lea.vmem %s1, %s171
      $region24: #{transformer_forward.38} parent=15 // pred_fallthru
        _
      // Predicated region
      $region25: #{transformer_forward.38} parent=15 // pred_check
        %p173 = pneg %p82
      $region26: #{transformer_forward.38} parent=15 // pred_check_branch
        %175 = sbr.rel (%p173) target = $region28
      $region27: #{transformer_forward.38} parent=15 // pred_region
        %p176 = scmp.lt.s32.totalorder %s10, 1
        %s177 = scalar_select %p176, %s10, 1
        %s178 = smul.addr %s177, 4
        %s179 = scalar_lea.vmem %s2, %s178
      $region28: #{transformer_forward.38} parent=15 // pred_fallthru
        _
      // Predicated region
      $region29: #{transformer_forward.38} parent=15 // pred_check
        %p180 = pneg %p108
      $region30: #{transformer_forward.38} parent=15 // pred_check_branch
        %182 = sbr.rel (%p180) target = $region32
      $region31: #{transformer_forward.38} parent=15 // pred_region
        %p183 = scmp.lt.s32.totalorder %s10, 1
        %s184 = scalar_select %p183, %s10, 1
        %s185 = smul.addr %s184, 8
        %s186 = scalar_lea.vmem %s3, %s185
      $region32: #{transformer_forward.38} parent=15 // pred_fallthru
        _
    $region16: #{transformer_forward.38} parent=5 // pred_fallthru
      _
    %p187 = scmp.le.s32.totalorder 1, %s10
    %p188 = scmp.lt.s32.totalorder %s10, 3
    %p189 = pnand %p187, %p188
    %p190 = pneg %p189
    // Predicated region
    $region33: #{transformer_forward.38} parent=5 // pred_check
      _
    $region34: #{transformer_forward.38} parent=5 // pred_check_branch
      %192 = sbr.rel (%p189) target = $region36
    $region35: #{transformer_forward.38} parent=5 // pred_region
      %s193 = ssub.s32 %s10, 1
      %p194 = scmp.lt.s32.totalorder %s15, 1
      %s195 = scalar_select %p194, %s15, 1
      %s196 = smul.addr %s195, 4
      %s197 = scalar_lea.vmem %s0, %s196
      %p198 = pneg %p36
      %p199 = pneg %p33
      %p200 = scmp.lt.s32.totalorder %s15, 1
      %s201 = scalar_select %p200, %s15, 1
      %s202 = smul.addr %s201, 4
      %s203 = scalar_lea.vmem %s1, %s202
      %p204 = pneg %p62
      %p205 = pneg %p59
      %p206 = scmp.lt.s32.totalorder %s15, 1
      %s207 = scalar_select %p206, %s15, 1
      %s208 = smul.addr %s207, 4
      %s209 = scalar_lea.vmem %s2, %s208
      %p210 = pneg %p88
      %p211 = pneg %p85
      %p212 = scmp.lt.s32.totalorder %s15, 1
      %s213 = scalar_select %p212, %s15, 1
      %s214 = smul.addr %s213, 8
      %s215 = scalar_lea.vmem %s3, %s214
      %p216 = pneg %p114
      %p217 = pneg %p111
      %p218 = pneg %p140
      %p219 = pneg %p137
      %p220 = scmp.lt.s32.totalorder %s15, 1
      %s221 = scalar_select %p220, %s15, 1
      %s222 = smul.addr %s221, 8
      %s223 = scalar_lea.vmem %s4, %s222
      %p224 = scmp.lt.s32.totalorder %s15, 1
      %s225 = scalar_select %p224, %s15, 1
      %s226 = smul.addr %s225, 4
      %s227 = scalar_lea.vmem %s0, %s226
      %p228 = scmp.lt.s32.totalorder %s15, 1
      %s229 = scalar_select %p228, %s15, 1
      %s230 = smul.addr %s229, 4
      %s231 = scalar_lea.vmem %s1, %s230
      %p232 = scmp.lt.s32.totalorder %s15, 1
      %s233 = scalar_select %p232, %s15, 1
      %s234 = smul.addr %s233, 4
      %s235 = scalar_lea.vmem %s2, %s234
      %p236 = scmp.lt.s32.totalorder %s15, 1
      %s237 = scalar_select %p236, %s15, 1
      %s238 = smul.addr %s237, 8
      %s239 = scalar_lea.vmem %s3, %s238
      %p240 = scmp.lt.s32.totalorder %s15, 1
      %s241 = scalar_select %p240, %s15, 1
      %s242 = smul.addr %s241, 8
      %s243 = scalar_lea.vmem %s4, %s242
      %v245 = vld [vmem:[%s227] sm:$0xf]
      %v246 = vld [vmem:[%s231] sm:$0xf]
      %v247 = vld [vmem:[%s235] sm:$0xf]
      %v248 = vld [vmem:[%s239] sm:$0x7f]
      %vm249 = vcmask 64512
      %v251 = vsel %vm249, %v245, 0
      %v254 = vsel %vm249, %v246, 0
      %256 = vmatpush.bf16.xpose.msra.mxu0 0
      %257 = vmatpush.bf16.xpose.msra.mxu0 0
      %258 = vmatpush.bf16.xpose.msra.mxu0 0
      %259 = vmatpush.bf16.xpose.msra.mxu0 0
      %260 = vmatpush.bf16.xpose.msra.mxu0 0
      %261 = vmatpush.bf16.xpose.msra.mxu0 0
      %262 = vmatpush.bf16.xpose.msra.mxu0 0
      %263 = vmatpush.bf16.xpose.msra.mxu0 %v254
      %264 = vmatmul.bf16.gmra.mxu0 %v251
      %v265 = vpop.f32.mrf.mxu0
      %v266 = vadd.f32 0.0, %v265
      %v267 = vpop.f32.mrf.mxu0
      %268 = vdwg.mxu0
      %v269 = vmul.f32 %v266, 0.35355338
      %v270 = vadd.f32 %v269, %v248
      %vm271 = vcmask 63488
      %v272 = vsel %vm271, %v270, -inf
      %273 = vmax.xlane.f32.xlu0 %v272
      %v274 = vpop.xlane.xlu0 %273
      %v275 = vsub.f32 %v270, %v274
      %v276 = vmul.f32 %v275, 1.442695
      %v277 = vpow.pop %v276
      %v278 = vsel %vm271, %v277, 0.0
      %279 = vadd.xlane.f32.xlu0 %v278
      %v280 = vpop.xlane.xlu0 %279
      %v281 = vrcp.pop %v280
      %v282 = vmul.f32 %v277, %v281
      %v283 = vpack.c.bf16 %v282, %v282
      %v285 = vsel %vm249, %v283, 0
      %vm287 = vcmask 1043456
      %v289 = vsel %vm287, %v247, 0
      %291 = vmatpush.bf16.msra.mxu0 0
      %292 = vmatpush.bf16.msra.mxu0 0
      %293 = vmatpush.bf16.msra.mxu0 0
      %294 = vmatpush.bf16.msra.mxu0 0
      %295 = vmatpush.bf16.msra.mxu0 0
      %296 = vmatpush.bf16.msra.mxu0 0
      %297 = vmatpush.bf16.msra.mxu0 0
      %298 = vmatpush.bf16.msra.mxu0 %v289
      %299 = vmatmul.bf16.gmra.mxu0 %v285
      %v300 = vpop.f32.mrf.mxu0
      %v301 = vadd.f32 0.0, %v300
      %v302 = vpop.f32.mrf.mxu0
      %303 = vdwg.mxu0
      %304 = vst.msk [vmem:[%s243] sm:$0x7f] %vm271, %v301
      %v306 = vunpack.c.l.b16 %v245
      %v307 = vpack.c.b16 %v306, %v306
      %308 = vrot.lane.b32.xlu0 %v307, 120
      %v309 = vpop.permute.xlu0 %308
      %v311 = vunpack.c.l.b16 %v246
      %v312 = vpack.c.b16 %v311, %v311
      %313 = vrot.lane.b32.xlu0 %v312, 120
      %v314 = vpop.permute.xlu0 %313
      %v316 = vsel %vm249, %v309, 0
      %v319 = vsel %vm249, %v314, 0
      %321 = vmatpush.bf16.xpose.msra.mxu0 0
      %322 = vmatpush.bf16.xpose.msra.mxu0 0
      %323 = vmatpush.bf16.xpose.msra.mxu0 0
      %324 = vmatpush.bf16.xpose.msra.mxu0 0
      %325 = vmatpush.bf16.xpose.msra.mxu0 0
      %326 = vmatpush.bf16.xpose.msra.mxu0 0
      %327 = vmatpush.bf16.xpose.msra.mxu0 0
      %328 = vmatpush.bf16.xpose.msra.mxu0 %v319
      %329 = vmatmul.bf16.gmra.mxu0 %v316
      %v330 = vpop.f32.mrf.mxu0
      %v331 = vadd.f32 0.0, %v330
      %v332 = vpop.f32.mrf.mxu0
      %333 = vdwg.mxu0
      %v334 = vmul.f32 %v331, 0.35355338
      %v335 = vadd.f32 %v334, %v248
      %v336 = vsel %vm271, %v335, -inf
      %337 = vmax.xlane.f32.xlu0 %v336
      %v338 = vpop.xlane.xlu0 %337
      %v339 = vsub.f32 %v335, %v338
      %v340 = vmul.f32 %v339, 1.442695
      %v341 = vpow.pop %v340
      %v342 = vsel %vm271, %v341, 0.0
      %343 = vadd.xlane.f32.xlu0 %v342
      %v344 = vpop.xlane.xlu0 %343
      %v345 = vrcp.pop %v344
      %v346 = vmul.f32 %v341, %v345
      %v347 = vpack.c.bf16 %v346, %v346
      %v349 = vunpack.c.l.b16 %v247
      %v350 = vpack.c.b16 %v349, %v349
      %351 = vrot.lane.b32.xlu0 %v350, 120
      %v352 = vpop.permute.xlu0 %351
      %v354 = vsel %vm249, %v347, 0
      %v357 = vsel %vm287, %v352, 0
      %359 = vmatpush.bf16.msra.mxu0 0
      %360 = vmatpush.bf16.msra.mxu0 0
      %361 = vmatpush.bf16.msra.mxu0 0
      %362 = vmatpush.bf16.msra.mxu0 0
      %363 = vmatpush.bf16.msra.mxu0 0
      %364 = vmatpush.bf16.msra.mxu0 0
      %365 = vmatpush.bf16.msra.mxu0 0
      %366 = vmatpush.bf16.msra.mxu0 %v357
      %367 = vmatmul.bf16.gmra.mxu0 %v354
      %v368 = vpop.f32.mrf.mxu0
      %v369 = vadd.f32 0.0, %v368
      %v370 = vpop.f32.mrf.mxu0
      %371 = vdwg.mxu0
      %373 = vrot.lane.b32.xlu0 %v369, 8
      %v374 = vpop.permute.xlu0 %373
      %vm376 = vcmask 129088
      %377 = vst.msk [vmem:[%s243] sm:$0x7f] %vm376, %v374
      %378 = vrot.lane.b32.xlu0 %v307, 112
      %v379 = vpop.permute.xlu0 %378
      %380 = vrot.lane.b32.xlu0 %v312, 112
      %v381 = vpop.permute.xlu0 %380
      %v383 = vsel %vm249, %v379, 0
      %v386 = vsel %vm249, %v381, 0
      %388 = vmatpush.bf16.xpose.msra.mxu0 0
      %389 = vmatpush.bf16.xpose.msra.mxu0 0
      %390 = vmatpush.bf16.xpose.msra.mxu0 0
      %391 = vmatpush.bf16.xpose.msra.mxu0 0
      %392 = vmatpush.bf16.xpose.msra.mxu0 0
      %393 = vmatpush.bf16.xpose.msra.mxu0 0
      %394 = vmatpush.bf16.xpose.msra.mxu0 0
      %395 = vmatpush.bf16.xpose.msra.mxu0 %v386
      %396 = vmatmul.bf16.gmra.mxu0 %v383
      %v397 = vpop.f32.mrf.mxu0
      %v398 = vadd.f32 0.0, %v397
      %v399 = vpop.f32.mrf.mxu0
      %400 = vdwg.mxu0
      %v401 = vmul.f32 %v398, 0.35355338
      %v402 = vadd.f32 %v401, %v248
      %v403 = vsel %vm271, %v402, -inf
      %404 = vmax.xlane.f32.xlu0 %v403
      %v405 = vpop.xlane.xlu0 %404
      %v406 = vsub.f32 %v402, %v405
      %v407 = vmul.f32 %v406, 1.442695
      %v408 = vpow.pop %v407
      %v409 = vsel %vm271, %v408, 0.0
      %410 = vadd.xlane.f32.xlu0 %v409
      %v411 = vpop.xlane.xlu0 %410
      %v412 = vrcp.pop %v411
      %v413 = vmul.f32 %v408, %v412
      %v414 = vpack.c.bf16 %v413, %v413
      %415 = vrot.lane.b32.xlu0 %v350, 112
      %v416 = vpop.permute.xlu0 %415
      %v418 = vsel %vm249, %v414, 0
      %v421 = vsel %vm287, %v416, 0
      %423 = vmatpush.bf16.msra.mxu0 0
      %424 = vmatpush.bf16.msra.mxu0 0
      %425 = vmatpush.bf16.msra.mxu0 0
      %426 = vmatpush.bf16.msra.mxu0 0
      %427 = vmatpush.bf16.msra.mxu0 0
      %428 = vmatpush.bf16.msra.mxu0 0
      %429 = vmatpush.bf16.msra.mxu0 0
      %430 = vmatpush.bf16.msra.mxu0 %v421
      %431 = vmatmul.bf16.gmra.mxu0 %v418
      %v432 = vpop.f32.mrf.mxu0
      %v433 = vadd.f32 0.0, %v432
      %v434 = vpop.f32.mrf.mxu0
      %435 = vdwg.mxu0
      %437 = vrot.lane.b32.xlu0 %v433, 16
      %v438 = vpop.permute.xlu0 %437
      %vm440 = vcmask 194688
      %441 = vst.msk [vmem:[%s243] sm:$0x7f] %vm440, %v438
      %442 = vrot.lane.b32.xlu0 %v307, 104
      %v443 = vpop.permute.xlu0 %442
      %444 = vrot.lane.b32.xlu0 %v312, 104
      %v445 = vpop.permute.xlu0 %444
      %v447 = vsel %vm249, %v443, 0
      %v450 = vsel %vm249, %v445, 0
      %452 = vmatpush.bf16.xpose.msra.mxu0 0
      %453 = vmatpush.bf16.xpose.msra.mxu0 0
      %454 = vmatpush.bf16.xpose.msra.mxu0 0
      %455 = vmatpush.bf16.xpose.msra.mxu0 0
      %456 = vmatpush.bf16.xpose.msra.mxu0 0
      %457 = vmatpush.bf16.xpose.msra.mxu0 0
      %458 = vmatpush.bf16.xpose.msra.mxu0 0
      %459 = vmatpush.bf16.xpose.msra.mxu0 %v450
      %460 = vmatmul.bf16.gmra.mxu0 %v447
      %v461 = vpop.f32.mrf.mxu0
      %v462 = vadd.f32 0.0, %v461
      %v463 = vpop.f32.mrf.mxu0
      %464 = vdwg.mxu0
      %v465 = vmul.f32 %v462, 0.35355338
      %v466 = vadd.f32 %v465, %v248
      %v467 = vsel %vm271, %v466, -inf
      %468 = vmax.xlane.f32.xlu0 %v467
      %v469 = vpop.xlane.xlu0 %468
      %v470 = vsub.f32 %v466, %v469
      %v471 = vmul.f32 %v470, 1.442695
      %v472 = vpow.pop %v471
      %v473 = vsel %vm271, %v472, 0.0
      %474 = vadd.xlane.f32.xlu0 %v473
      %v475 = vpop.xlane.xlu0 %474
      %v476 = vrcp.pop %v475
      %v477 = vmul.f32 %v472, %v476
      %v478 = vpack.c.bf16 %v477, %v477
      %479 = vrot.lane.b32.xlu0 %v350, 104
      %v480 = vpop.permute.xlu0 %479
      %v482 = vsel %vm249, %v478, 0
      %v485 = vsel %vm287, %v480, 0
      %487 = vmatpush.bf16.msra.mxu0 0
      %488 = vmatpush.bf16.msra.mxu0 0
      %489 = vmatpush.bf16.msra.mxu0 0
      %490 = vmatpush.bf16.msra.mxu0 0
      %491 = vmatpush.bf16.msra.mxu0 0
      %492 = vmatpush.bf16.msra.mxu0 0
      %493 = vmatpush.bf16.msra.mxu0 0
      %494 = vmatpush.bf16.msra.mxu0 %v485
      %495 = vmatmul.bf16.gmra.mxu0 %v482
      %v496 = vpop.f32.mrf.mxu0
      %v497 = vadd.f32 0.0, %v496
      %v498 = vpop.f32.mrf.mxu0
      %499 = vdwg.mxu0
      %501 = vrot.lane.b32.xlu0 %v497, 24
      %v502 = vpop.permute.xlu0 %501
      %vm504 = vcmask 260288
      %505 = vst.msk [vmem:[%s243] sm:$0x7f] %vm504, %v502
      %p506 = scmp.lt.s32.totalorder %s15, 1
      %s507 = scalar_select %p506, %s15, 1
      %s508 = smul.addr %s507, 8
      %s509 = scalar_lea.vmem %s4, %s508
      // Predicated region
      $region37: #{transformer_forward.38} parent=35 // pred_check
        %p510 = pneg %p137
      $region38: #{transformer_forward.38} parent=35 // pred_check_branch
        %512 = sbr.rel (%p510) target = $region40
      $region39: #{transformer_forward.38} parent=35 // pred_region
        _
      $region40: #{transformer_forward.38} parent=35 // pred_fallthru
        _
    $region36: #{transformer_forward.38} parent=5 // pred_fallthru
      _
    %p513 = scmp.le.s32.totalorder 2, %s10
    // Predicated region
    $region41: #{transformer_forward.38} parent=5 // pred_check
      %p514 = pneg %p513
    $region42: #{transformer_forward.38} parent=5 // pred_check_branch
      %516 = sbr.rel (%p514) target = $region44
    $region43: #{transformer_forward.38} parent=5 // pred_region
      %s517 = ssub.s32 %s10, 2
      // Predicated region
      $region45: #{transformer_forward.38} parent=43 // pred_check
        %p518 = pneg %p143
      $region46: #{transformer_forward.38} parent=43 // pred_check_branch
        %520 = sbr.rel (%p518) target = $region48
      $region47: #{transformer_forward.38} parent=43 // pred_region
        %p521 = scmp.lt.s32.totalorder %s16, 1
        %s522 = scalar_select %p521, %s16, 1
        %s523 = smul.addr %s522, 8
        %s524 = scalar_lea.vmem %s4, %s523
      $region48: #{transformer_forward.38} parent=43 // pred_fallthru
        _
    $region44: #{transformer_forward.38} parent=5 // pred_fallthru
      _
  $region6: #{transformer_forward.38} parent=0 // loop_footer
    %s14 = sadd.s32 1, %s10
  $region7: #{transformer_forward.38} parent=0 // loop_footer_branch
    %9 = sbr.rel target = $region3
  $region8: #{transformer_forward.38} parent=0 // loop_exit
    _

// kernel: transformer_forward.40
$region0: #{transformer_forward.40}
  #allocation0 [shape = 'u32[]', space=smem, size = 0x4, offset = 0x4, fixed_abs, tag = 'smem constant byte address 0x4 - core index']
  #allocation1 [shape = 'u32[72,128]{1,0:T(1,128)}', space=vmem, size = 0x9000, scoped, tag = 'internal scratch']
  %s0 = inlined_call_operand.vmem [shape: bf16[14,32], index: 0, kind: input, shape index: {}]
  %s1 = inlined_call_operand.vmem [shape: bf16[32,64], index: 1, kind: input, shape index: {}]
  %s2 = inlined_call_operand.vmem [shape: f32[1,64], index: 2, kind: input, shape index: {}]
  %s3 = inlined_call_operand.vmem [shape: bf16[64,32], index: 3, kind: input, shape index: {}]
  %s4 = inlined_call_operand.vmem [shape: f32[1,32], index: 4, kind: input, shape index: {}]
  %s5 = inlined_call_operand.vmem [shape: f32[14,32], index: 5, kind: input, shape index: {}]
  %s6 = inlined_call_operand.vmem [shape: f32[1,32], index: 6, kind: input, shape index: {}]
  %s7 = inlined_call_operand.vmem [shape: f32[1,32], index: 7, kind: input, shape index: {}]
  %s8 = inlined_call_operand.vmem [shape: f32[14,1], index: 8, kind: input, shape index: {}]
  %s9 = inlined_call_operand.vmem [shape: f32[14,32], index: 9, kind: output, shape index: {}]
  %s10 = sld [smem:[#allocation0]]
  $region46: #{transformer_forward.40} parent=0
    _
  %s12 = ssub.s32 1, %s10
  %s13 = scalar_select 0, %s12, %s10
  // Predicated region
  $region2: #{transformer_forward.40} parent=0 // pred_check
    _
  $region3: #{transformer_forward.40} parent=0 // pred_check_branch
    %15 = sbr.rel (0) target = $region5
  $region4: #{transformer_forward.40} parent=0 // pred_region
    _
  $region5: #{transformer_forward.40} parent=0 // pred_fallthru
    _
  // Predicated region
  $region6: #{transformer_forward.40} parent=0 // pred_check
    _
  $region7: #{transformer_forward.40} parent=0 // pred_check_branch
    %17 = sbr.rel (0) target = $region9
  $region8: #{transformer_forward.40} parent=0 // pred_region
    _
  $region9: #{transformer_forward.40} parent=0 // pred_fallthru
    _
  // Predicated region
  $region10: #{transformer_forward.40} parent=0 // pred_check
    _
  $region11: #{transformer_forward.40} parent=0 // pred_check_branch
    %19 = sbr.rel (0) target = $region13
  $region12: #{transformer_forward.40} parent=0 // pred_region
    _
  $region13: #{transformer_forward.40} parent=0 // pred_fallthru
    _
  // Predicated region
  $region14: #{transformer_forward.40} parent=0 // pred_check
    _
  $region15: #{transformer_forward.40} parent=0 // pred_check_branch
    %21 = sbr.rel (0) target = $region17
  $region16: #{transformer_forward.40} parent=0 // pred_region
    _
  $region17: #{transformer_forward.40} parent=0 // pred_fallthru
    _
  // Predicated region
  $region18: #{transformer_forward.40} parent=0 // pred_check
    _
  $region19: #{transformer_forward.40} parent=0 // pred_check_branch
    %23 = sbr.rel (0) target = $region21
  $region20: #{transformer_forward.40} parent=0 // pred_region
    _
  $region21: #{transformer_forward.40} parent=0 // pred_fallthru
    _
  // Predicated region
  $region22: #{transformer_forward.40} parent=0 // pred_check
    _
  $region23: #{transformer_forward.40} parent=0 // pred_check_branch
    %25 = sbr.rel (0) target = $region25
  $region24: #{transformer_forward.40} parent=0 // pred_region
    _
  $region25: #{transformer_forward.40} parent=0 // pred_fallthru
    _
  // Predicated region
  $region26: #{transformer_forward.40} parent=0 // pred_check
    _
  $region27: #{transformer_forward.40} parent=0 // pred_check_branch
    %27 = sbr.rel (0) target = $region29
  $region28: #{transformer_forward.40} parent=0 // pred_region
    _
  $region29: #{transformer_forward.40} parent=0 // pred_fallthru
    _
  // Predicated region
  $region30: #{transformer_forward.40} parent=0 // pred_check
    _
  $region31: #{transformer_forward.40} parent=0 // pred_check_branch
    %29 = sbr.rel (0) target = $region33
  $region32: #{transformer_forward.40} parent=0 // pred_region
    _
  $region33: #{transformer_forward.40} parent=0 // pred_fallthru
    _
  // Predicated region
  $region34: #{transformer_forward.40} parent=0 // pred_check
    _
  $region35: #{transformer_forward.40} parent=0 // pred_check_branch
    %31 = sbr.rel (0) target = $region37
  $region36: #{transformer_forward.40} parent=0 // pred_region
    _
  $region37: #{transformer_forward.40} parent=0 // pred_fallthru
    _
  %v33 = vld [vmem:[%s0] sm:$0xf]
  %v34 = vld [vmem:[%s0 + $0x4] sm:$0x7]
  %v35 = vld [vmem:[%s1] sm:$0xf]
  %v36 = vld [vmem:[%s1 + $0x4] sm:$0xf]
  %v37 = vld [vmem:[%s1 + $0x8] sm:$0xf]
  %v38 = vld [vmem:[%s1 + $0xc] sm:$0xf]
  %v39 = vld [vmem:[%s2] sm:$0x1]
  %v41 = vperm.slane %v39, 0
  %v45 = vunpack.c.l.b16 %v33
  %v46 = vunpack.c.l.b16 %v34
  %v47 = vpack.c.b16 %v46, %v45
  %v52 = vunpack.c.l.b16 %v35
  %v53 = vunpack.c.l.b16 %v36
  %v54 = vunpack.c.l.b16 %v37
  %v55 = vunpack.c.l.b16 %v38
  %v56 = vpack.c.b16 %v53, %v52
  %v57 = vpack.c.b16 %v55, %v54
  %vm60 = vcmask 261120
  %v62 = vsel %vm60, %v47, 0
  %64 = vmatpush.bf16.msra.mxu0 0
  %65 = vmatpush.bf16.msra.mxu0 0
  %66 = vmatpush.bf16.msra.mxu0 0
  %67 = vmatpush.bf16.msra.mxu0 0
  %68 = vmatpush.bf16.msra.mxu0 0
  %69 = vmatpush.bf16.msra.mxu0 0
  %70 = vmatpush.bf16.msra.mxu0 %v57
  %71 = vmatpush.bf16.msra.mxu0 %v56
  %72 = vmatmul.bf16.gmra.mxu0 %v62
  %v73 = vpop.f32.mrf.mxu0
  %v74 = vadd.f32 %v41, %v73
  %v75 = vpop.f32.mrf.mxu0
  %v76 = vadd.f32 %v41, %v75
  %77 = vdwg.mxu0
  %v78 = vmax.f32 %v74, 0.0
  %v79 = vmax.f32 %v76, 0.0
  %v80 = vpack.c.bf16 %v79, %v78
  %v81 = vld [vmem:[%s3] sm:$0xf]
  %v82 = vld [vmem:[%s3 + $0x4] sm:$0xf]
  %v83 = vld [vmem:[%s3 + $0x8] sm:$0xf]
  %v84 = vld [vmem:[%s3 + $0xc] sm:$0xf]
  %v85 = vld [vmem:[%s3 + $0x10] sm:$0xf]
  %v86 = vld [vmem:[%s3 + $0x14] sm:$0xf]
  %v87 = vld [vmem:[%s3 + $0x18] sm:$0xf]
  %v88 = vld [vmem:[%s3 + $0x1c] sm:$0xf]
  %v89 = vld [vmem:[%s4] sm:$0x1]
  %v91 = vperm.slane %v89, 0
  %v101 = vunpack.c.l.b16 %v81
  %v102 = vunpack.c.l.b16 %v82
  %v103 = vunpack.c.l.b16 %v83
  %v104 = vunpack.c.l.b16 %v84
  %v105 = vunpack.c.l.b16 %v85
  %v106 = vunpack.c.l.b16 %v86
  %v107 = vunpack.c.l.b16 %v87
  %v108 = vunpack.c.l.b16 %v88
  %v109 = vpack.c.b16 %v102, %v101
  %v110 = vpack.c.b16 %v104, %v103
  %v111 = vpack.c.b16 %v106, %v105
  %v112 = vpack.c.b16 %v108, %v107
  %vm117 = vcmask 523264
  %v119 = vsel %vm117, %v80, 0
  %121 = vmatpush.bf16.msra.mxu0 0
  %122 = vmatpush.bf16.msra.mxu0 0
  %123 = vmatpush.bf16.msra.mxu0 0
  %124 = vmatpush.bf16.msra.mxu0 0
  %125 = vmatpush.bf16.msra.mxu0 %v112
  %126 = vmatpush.bf16.msra.mxu0 %v111
  %127 = vmatpush.bf16.msra.mxu0 %v110
  %128 = vmatpush.bf16.msra.mxu0 %v109
  %129 = vmatmul.bf16.gmra.mxu0 %v119
  %v130 = vpop.f32.mrf.mxu0
  %v131 = vadd.f32 %v91, %v130
  %v132 = vpop.f32.mrf.mxu0
  %v133 = vadd.f32 %v91, %v132
  %134 = vdwg.mxu0
  %v135 = vld [vmem:[%s5] sm:$0xff]
  %v136 = vld [vmem:[%s5 + $0x8] sm:$0x3f]
  %v137 = vadd.f32 %v131, %v135
  %v138 = vadd.f32 %v133, %v136
  %v139 = vsel %vm60, %v137, 0.0
  %140 = vadd.xlane.f32.xlu0 %v139
  %v141 = vpop.xlane.xlu0 %140
  %vm142 = vcmask 259072
  %v143 = vsel %vm142, %v138, 0.0
  %144 = vadd.xlane.f32.xlu0 %v143
  %v145 = vpop.xlane.xlu0 %144
  %v146 = vrcp.pop 32.0
  %v147 = vmul.f32 32.0, %v146
  %v148 = vsub.f32 1.0, %v147
  %v149 = vmul.f32 %v146, %v148
  %v150 = vadd.f32 %v146, %v149
  %vm151 = vweird.f32 %v146
  %v152 = vsel %vm151, %v146, %v150
  %v153 = vmul.f32 %v141, %v152
  %v154 = vmul.f32 %v145, %v152
  %v155 = vsub.f32 %v137, %v153
  %v156 = vsub.f32 %v138, %v154
  %v157 = vmul.f32 %v155, %v155
  %v158 = vmul.f32 %v156, %v156
  %v159 = vsel %vm60, %v157, 0.0
  %160 = vadd.xlane.f32.xlu0 %v159
  %v161 = vpop.xlane.xlu0 %160
  %v162 = vsel %vm142, %v158, 0.0
  %163 = vadd.xlane.f32.xlu0 %v162
  %v164 = vpop.xlane.xlu0 %163
  %v165 = vmul.f32 %v161, %v152
  %v166 = vmul.f32 %v164, %v152
  %v167 = vadd.f32 %v165, 1e-05
  %v168 = vadd.f32 %v166, 1e-05
  %v169 = vrsqrt.pop %v167
  %v170 = vmul.f32 %v169, %v167
  %v171 = vmul.f32 %v170, %v169
  %v172 = vmul.f32 0.5, %v171
  %v173 = vsub.f32 1.5, %v172
  %v174 = vmul.f32 %v169, %v173
  %vm175 = vweird.f32 %v167
  %vm176 = vweird.f32 %v169
  %vm177 = vmor %vm175, %vm176
  %v178 = vsel %vm177, %v169, %v174
  %v179 = vrsqrt.pop %v168
  %v180 = vmul.f32 %v179, %v168
  %v181 = vmul.f32 %v180, %v179
  %v182 = vmul.f32 0.5, %v181
  %v183 = vsub.f32 1.5, %v182
  %v184 = vmul.f32 %v179, %v183
  %vm185 = vweird.f32 %v168
  %vm186 = vweird.f32 %v179
  %vm187 = vmor %vm185, %vm186
  %v188 = vsel %vm187, %v179, %v184
  %v189 = vmul.f32 %v155, %v178
  %v190 = vmul.f32 %v156, %v188
  %v191 = vld [vmem:[%s6] sm:$0x1]
  %v193 = vperm.slane %v191, 0
  %v195 = vmul.f32 %v189, %v193
  %v196 = vmul.f32 %v190, %v193
  %v197 = vld [vmem:[%s7] sm:$0x1]
  %v199 = vperm.slane %v197, 0
  %v201 = vadd.f32 %v195, %v199
  %v202 = vadd.f32 %v196, %v199
  %v203 = vld [vmem:[%s8] sm:$0xff]
  %v204 = vld [vmem:[%s8 + $0x8] sm:$0x3f]
  %206 = vset.pattern.permute.xlu0 0
  %207 = vperm.xlu0 %206, %v203
  %v208 = vpop.permute.xlu0 %207
  %211 = vset.pattern.permute.xlu0 0
  %212 = vperm.xlu0 %211, %v204
  %v213 = vpop.permute.xlu0 %212
  %v215 = vmul.f32 %v201, %v208
  %v216 = vmul.f32 %v202, %v213
  %217 = vst.msk [vmem:[%s9] sm:$0xff] %vm60, %v215
  %218 = vst.msk [vmem:[%s9 + $0x8] sm:$0x3f] %vm142, %v216
  // Predicated region
  $region38: #{transformer_forward.40} parent=0 // pred_check
    _
  $region39: #{transformer_forward.40} parent=0 // pred_check_branch
    %220 = sbr.rel (0) target = $region41
  $region40: #{transformer_forward.40} parent=0 // pred_region
    _
  $region41: #{transformer_forward.40} parent=0 // pred_fallthru
    _
  // Predicated region
  $region42: #{transformer_forward.40} parent=0 // pred_check
    _
  $region43: #{transformer_forward.40} parent=0 // pred_check_branch
    %222 = sbr.rel (0) target = $region45
  $region44: #{transformer_forward.40} parent=0 // pred_region
    _
  $region45: #{transformer_forward.40} parent=0 // pred_fallthru
    _

// kernel: transformer_forward.49
$region0: #{transformer_forward.49}
  #allocation0 [shape = 'u32[]', space=smem, size = 0x4, offset = 0x4, fixed_abs, tag = 'smem constant byte address 0x4 - core index']
  #allocation1 [shape = 'u32[72,128]{1,0:T(1,128)}', space=vmem, size = 0x9000, scoped, tag = 'internal scratch']
  #allocation2 [shape = 'f32[14,48]{1,0:T(8,128)}', space=vmem, size = 0x2000, scoped, tag = 'scratch operand']
  %s0 = inlined_call_operand.vmem [shape: bf16[14,32], index: 0, kind: input, shape index: {}]
  %s1 = inlined_call_operand.vmem [shape: bf16[48,32], index: 1, kind: input, shape index: {}]
  %s2 = inlined_call_operand.hbm [shape: f32[14,48], index: 2, kind: output, shape index: {}]
  %s3 = sld [smem:[#allocation0]]
  $region26: #{transformer_forward.49} parent=0
    _
  %s5 = ssub.s32 1, %s3
  %s6 = scalar_select 0, %s5, %s3
  $region1: #{transformer_forward.49} parent=0
    #allocation3 [shape = 'u8[8192]{0}', space=vmem, size = 0x2000, scoped, tag = 'output window, operand 0, single buffered']
    #allocation4 [shape = 's32[1]{0}', space=sflag, size = 0x4, scoped, tag = 'scoped memory for transformer_forward.49']
    %7 = vsyncpa [#allocation4], 0
    // Predicated region
    $region2: #{transformer_forward.49} parent=1 // pred_check
      _
    $region3: #{transformer_forward.49} parent=1 // pred_check_branch
      %9 = sbr.rel (0) target = $region5
    $region4: #{transformer_forward.49} parent=1 // pred_region
      _
    $region5: #{transformer_forward.49} parent=1 // pred_fallthru
      _
    // Predicated region
    $region6: #{transformer_forward.49} parent=1 // pred_check
      _
    $region7: #{transformer_forward.49} parent=1 // pred_check_branch
      %11 = sbr.rel (0) target = $region9
    $region8: #{transformer_forward.49} parent=1 // pred_region
      _
    $region9: #{transformer_forward.49} parent=1 // pred_fallthru
      _
    %p13 = scmp.eq.s32.totalorder 0, 0
    // Predicated region
    $region10: #{transformer_forward.49} parent=1 // pred_check
      %p14 = pneg %p13
    $region11: #{transformer_forward.49} parent=1 // pred_check_branch
      %16 = sbr.rel (%p14) target = $region13
    $region12: #{transformer_forward.49} parent=1 // pred_region
      %vm17 = vcmask 392192
      %18 = vst.msk [vmem:[#allocation2] sm:$0xff] %vm17, 0.0
      %vm19 = vcmask 390144
      %20 = vst.msk [vmem:[#allocation2 + $0x8] sm:$0x3f] %vm19, 0.0
    $region13: #{transformer_forward.49} parent=1 // pred_fallthru
      _
    %v21 = vld [vmem:[#allocation2] sm:$0xff]
    %v22 = vld [vmem:[#allocation2 + $0x8] sm:$0x3f]
    %v23 = vld [vmem:[%s0] sm:$0xf]
    %v24 = vld [vmem:[%s0 + $0x4] sm:$0x7]
    %v25 = vld [vmem:[%s1] sm:$0xf]
    %v26 = vld [vmem:[%s1 + $0x4] sm:$0xf]
    %v27 = vld [vmem:[%s1 + $0x8] sm:$0xf]
    %v28 = vld [vmem:[%s1 + $0xc] sm:$0xf]
    %v29 = vld [vmem:[%s1 + $0x10] sm:$0xf]
    %v30 = vld [vmem:[%s1 + $0x14] sm:$0xf]
    %v33 = vunpack.c.l.b16 %v23
    %v34 = vunpack.c.l.b16 %v24
    %v35 = vpack.c.b16 %v34, %v33
    %v42 = vunpack.c.l.b16 %v25
    %v43 = vunpack.c.l.b16 %v26
    %v44 = vunpack.c.l.b16 %v27
    %v45 = vunpack.c.l.b16 %v28
    %v46 = vunpack.c.l.b16 %v29
    %v47 = vunpack.c.l.b16 %v30
    %v48 = vpack.c.b16 %v43, %v42
    %v49 = vpack.c.b16 %v45, %v44
    %v50 = vpack.c.b16 %v47, %v46
    %vm51 = vcmask 261120
    %v53 = vsel %vm51, %v35, 0
    %v56 = vsel %vm51, %v48, 0
    %v59 = vsel %vm51, %v49, 0
    %v62 = vsel %vm51, %v50, 0
    %64 = vmatpush.bf16.xpose.msra.mxu0 0
    %65 = vmatpush.bf16.xpose.msra.mxu0 0
    %66 = vmatpush.bf16.xpose.msra.mxu0 0
    %67 = vmatpush.bf16.xpose.msra.mxu0 0
    %68 = vmatpush.bf16.xpose.msra.mxu0 0
    %69 = vmatpush.bf16.xpose.msra.mxu0 %v62
    %70 = vmatpush.bf16.xpose.msra.mxu0 %v59
    %71 = vmatpush.bf16.xpose.msra.mxu0 %v56
    %72 = vmatmul.bf16.gmra.mxu0 %v53
    %v73 = vpop.f32.mrf.mxu0
    %v74 = vadd.f32 0.0, %v73
    %v75 = vpop.f32.mrf.mxu0
    %v76 = vadd.f32 0.0, %v75
    %77 = vdwg.mxu0
    %v78 = vadd.f32 %v21, %v74
    %v79 = vadd.f32 %v22, %v76
    %vm80 = vcmask 392192
    %81 = vst.msk [vmem:[#allocation2] sm:$0xff] %vm80, %v78
    %vm82 = vcmask 390144
    %83 = vst.msk [vmem:[#allocation2 + $0x8] sm:$0x3f] %vm82, %v79
    // Predicated region
    $region14: #{transformer_forward.49} parent=1 // pred_check
      %p84 = pneg %p13
    $region15: #{transformer_forward.49} parent=1 // pred_check_branch
      %86 = sbr.rel (%p84) target = $region17
    $region16: #{transformer_forward.49} parent=1 // pred_region
      %v87 = vld [vmem:[#allocation2] sm:$0xff]
      %v88 = vld [vmem:[#allocation2 + $0x8] sm:$0x3f]
      %v89 = vmul.f32 %v87, 0.17677669
      %v90 = vmul.f32 %v88, 0.17677669
      %91 = vst.msk [vmem:[#allocation3] sm:$0xff] %vm80, %v89
      %92 = vst.msk [vmem:[#allocation3 + $0x8] sm:$0x3f] %vm82, %v90
    $region17: #{transformer_forward.49} parent=1 // pred_fallthru
      _
    // Predicated region
    $region18: #{transformer_forward.49} parent=1 // pred_check
      _
    $region19: #{transformer_forward.49} parent=1 // pred_check_branch
      %94 = sbr.rel (0) target = $region21
    $region20: #{transformer_forward.49} parent=1 // pred_region
      %96 = vsyncadd [#allocation4], 0
      %s97 = sshll.u32 [#allocation3], 4
      %s98 = int_to_ptr.vmem [resolvable:$true] %s97
      %s99 = sshll.u32 %s2, 4
      %s100 = int_to_ptr.hbm [resolvable:$true] %s99
      %105 = dma.vmem_to_hbm [thread:$0]  %s98, 256, %s100, [#allocation4], 128, 128, 8
    $region21: #{transformer_forward.49} parent=1 // pred_fallthru
      _
    // Predicated region
    $region22: #{transformer_forward.49} parent=1 // pred_check
      _
    $region23: #{transformer_forward.49} parent=1 // pred_check_branch
      %107 = sbr.rel (0) target = $region25
    $region24: #{transformer_forward.49} parent=1 // pred_region
      %109 = dma.done [#allocation4], 256
    $region25: #{transformer_forward.49} parent=1 // pred_fallthru
      _
    %110 = vsyncpa [#allocation4], 1

</llo_original>
